<compile_context>
chip_gen: v6e
topology: v6e:2x2x1
jax: 0.10.0
libtpu: 0.0.40
codegen_flags: <defaults>
</compile_context>

<pallas_src>
import functools

import jax
import jax.numpy as jnp
from jax.experimental import pallas as pl
from jax.experimental.pallas import tpu as pltpu


# ---------------------------------------------------------------------------
# Fused kernel: per-point MLP (conv1 3->64, conv2 64->128 each folded-BN+ReLU,
# conv3 128->1024 *without* bias/ReLU), chunked running max over points
# (global max pool), and — on the last point tile of each batch element —
# conv3's bias+ReLU on the pooled vector plus the FC head
# fc1(1024->512)+BN+ReLU, fc2(512->256)+BN+ReLU, fc3(256->9) (+ identity,
# pre-folded into the fc3 bias).
# ---------------------------------------------------------------------------
def _make_stn3d_kernel(n_chunks, chunk):
    def kernel(x_ref, w1_ref, b1_ref, w2_ref, b2_ref, w3_ref, b3_ref,
               fw1_ref, fb1_ref, fw2_ref, fb2_ref, fw3_ref, fb3_ref,
               out_ref, feat_ref):
        t = pl.program_id(1)

        # Reset the per-batch pooled-feature accumulator on the first tile.
        # conv3's bias+ReLU is applied after the pool, so the running max is
        # over pre-bias values and must start at -inf (not 0).
        @pl.when(t == 0)
        def _():
            feat_ref[...] = jnp.full(feat_ref.shape, -jnp.inf, feat_ref.dtype)

        # ---- per-point MLP on the MXU (bf16 operands, f32 accumulate) -----
        x = x_ref[0].astype(jnp.bfloat16)                          # (tn, 3)
        h = jnp.dot(x, w1_ref[...], preferred_element_type=jnp.float32)
        h = jnp.maximum(h + b1_ref[...], 0.0)                      # (tn, 64)
        h = jnp.dot(h.astype(jnp.bfloat16), w2_ref[...],
                    preferred_element_type=jnp.float32)
        h = jnp.maximum(h + b2_ref[...], 0.0)                      # (tn, 128)
        h2 = h.astype(jnp.bfloat16)

        # conv3 WITHOUT bias/ReLU, chunked over the 1024 output channels:
        # each (tn, chunk) slab is max-reduced into feat_ref immediately so
        # the full (tn, 1024) f32 activation is never live at once and the
        # only per-element VPU work on the big tensor is the max-reduce.
        # Padded rows (edge-replicated valid points) cannot change the max.
        for c in range(n_chunks):
            lo = c * chunk
            s = jnp.dot(h2, w3_ref[:, lo:lo + chunk],
                        preferred_element_type=jnp.float32)        # (tn, chk)
            feat_ref[:, lo:lo + chunk] = jnp.maximum(
                feat_ref[:, lo:lo + chunk], s.max(axis=0, keepdims=True))

        # ---- FC head, fused into the last point tile of this batch elem ---
        @pl.when(t == pl.num_programs(1) - 1)
        def _():
            # conv3 bias + ReLU applied once to the pooled (1, 1024) vector:
            # max_p(relu(s_p + b)) == relu(max_p(s_p) + b)  (exact).
            f = jnp.maximum(feat_ref[...] + b3_ref[...], 0.0)      # (1, 1024)
            g = jnp.dot(f.astype(jnp.bfloat16), fw1_ref[...],
                        preferred_element_type=jnp.float32)
            g = jnp.maximum(g + fb1_ref[...], 0.0)                 # (1, 512)
            g = jnp.dot(g.astype(jnp.bfloat16), fw2_ref[...],
                        preferred_element_type=jnp.float32)
            g = jnp.maximum(g + fb2_ref[...], 0.0)                 # (1, 256)
            g = jnp.dot(g.astype(jnp.bfloat16), fw3_ref[...],
                        preferred_element_type=jnp.float32)
            out_ref[...] = (g + fb3_ref[...])[None]                # (1, 1, 9)

    return kernel


def stn3d_forward(x, params, *, tile_n=None, max_tile_n=2048):
    """x: (B, N, 3) float32. Returns (B, 3, 3) float32."""
    B, N, _ = x.shape
    (w1, b1, w2, b2, w3, b3, fw1, fb1, fw2, fb2, fw3, fb3) = params

    # ---- balanced tiling over the points axis (sublane-aligned) -----------
    if tile_n is None:
        n_tiles = pl.cdiv(N, max_tile_n)
        tile_n = pl.cdiv(pl.cdiv(N, n_tiles), 8) * 8
    else:
        tile_n = max(8, (tile_n // 8) * 8)
    n_tiles = pl.cdiv(N, tile_n)
    n_pad = n_tiles * tile_n
    if n_pad != N:
        # Edge-replicate the last valid point: padded rows duplicate a real
        # point, so the global max over points is unchanged — no in-kernel
        # masking needed.
        x = jnp.pad(x, ((0, 0), (0, n_pad - N), (0, 0)), mode="edge")

    # ---- fold the identity offset into the fc3 bias ------------------------
    fb3 = fb3 + jnp.eye(3, dtype=jnp.float32).reshape(1, 9)

    # ---- bf16 matmul operands (biases stay f32) ----------------------------
    bf = jnp.bfloat16
    w1b, w2b, w3b = w1.astype(bf), w2.astype(bf), w3.astype(bf)
    fw1b, fw2b, fw3b = fw1.astype(bf), fw2.astype(bf), fw3.astype(bf)

    flops = (2 * B * n_pad * (3 * 64 + 64 * 128 + 128 * 1024)
             + 2 * B * (1024 * 512 + 512 * 256 + 256 * 9))
    bytes_accessed = (int(x.size) * 4 + B * 9 * 4
                      + sum(int(a.size) * 2
                            for a in (w1b, w2b, w3b, fw1b, fw2b, fw3b))
                      + sum(int(a.size) * 4
                            for a in (b1, b2, b3, fb1, fb2, fb3)))

    chunk = 256
    kernel = _make_stn3d_kernel(1024 // chunk, chunk)
    const = lambda b, t: (0, 0)

    out = pl.pallas_call(
        kernel,
        out_shape=jax.ShapeDtypeStruct((B, 1, 9), jnp.float32),
        grid=(B, n_tiles),
        in_specs=[
            pl.BlockSpec((1, tile_n, 3), lambda b, t: (b, t, 0)),
            pl.BlockSpec((3, 64), const),
            pl.BlockSpec((1, 64), const),
            pl.BlockSpec((64, 128), const),
            pl.BlockSpec((1, 128), const),
            pl.BlockSpec((128, 1024), const),
            pl.BlockSpec((1, 1024), const),
            pl.BlockSpec((1024, 512), const),
            pl.BlockSpec((1, 512), const),
            pl.BlockSpec((512, 256), const),
            pl.BlockSpec((1, 256), const),
            pl.BlockSpec((256, 9), const),
            pl.BlockSpec((1, 9), const),
        ],
        out_specs=pl.BlockSpec((1, 1, 9), lambda b, t: (b, 0, 0)),
        scratch_shapes=[pltpu.VMEM((1, 1024), jnp.float32)],
        compiler_params=pltpu.CompilerParams(
            dimension_semantics=("parallel", "arbitrary"),
            # Chunked conv3 activation keeps peak VMEM small even at
            # tile_n=2048; 48 MiB leaves headroom on v7x's 64 MiB part and is
            # trivial on v5e/v6e's 128 MiB.
            vmem_limit_bytes=48 * 1024 * 1024),
        cost_estimate=pl.CostEstimate(
            flops=flops, transcendentals=0, bytes_accessed=bytes_accessed),
    )(x, w1b, b1, w2b, b2, w3b, b3, fw1b, fb1, fw2b, fb2, fw3b, fb3)
    return out.reshape(B, 3, 3)


# ---------------------------------------------------------------------------
# Deterministic parameter construction (synthetic; mirrors module shapes) and
# inference-mode BatchNorm folding:  y = g*(Wx+b - mu)/sqrt(v+eps) + beta
#   => W' = W * s,  b' = s*(b - mu) + beta,  s = g/sqrt(v+eps)
# ---------------------------------------------------------------------------
def _make_params(key):
    def dense(key, cin, cout, scale=0.1):
        return scale * jax.random.normal(key, (cin, cout), jnp.float32)

    def bn(key, c):
        kg, kb, km, kv = jax.random.split(key, 4)
        gamma = 1.0 + 0.1 * jax.random.normal(kg, (c,), jnp.float32)
        beta = 0.05 * jax.random.normal(kb, (c,), jnp.float32)
        mean = 0.05 * jax.random.normal(km, (c,), jnp.float32)
        var = 1.0 + 0.1 * jax.random.uniform(kv, (c,), jnp.float32)
        return gamma, beta, mean, var

    def fold(w, b, bn_params, eps=1e-5):
        gamma, beta, mean, var = bn_params
        s = gamma / jnp.sqrt(var + eps)
        return w * s[None, :], (s * (b - mean) + beta)[None, :]

    keys = jax.random.split(key, 16)
    dims = [(3, 64), (64, 128), (128, 1024), (1024, 512), (512, 256)]
    params = []
    for i, (cin, cout) in enumerate(dims):
        w = dense(keys[2 * i], cin, cout)
        b = 0.05 * jax.random.normal(keys[2 * i + 1], (cout,), jnp.float32)
        w, b = fold(w, b, bn(keys[10 + i], cout))
        params += [w, b]
    # fc3: 256 -> 9, no BN
    fw3 = dense(keys[15], 256, 9)
    fb3 = jnp.zeros((1, 9), jnp.float32)
    params += [fw3, fb3]
    return tuple(params)


def _reference_forward(x, params):
    """Pure-JAX f32 reference (matches the PyTorch module semantics)."""
    (w1, b1, w2, b2, w3, b3, fw1, fb1, fw2, fb2, fw3, fb3) = params
    B = x.shape[0]
    h = jnp.maximum(x @ w1 + b1, 0.0)
    h = jnp.maximum(h @ w2 + b2, 0.0)
    h = jnp.maximum(h @ w3 + b3, 0.0)          # (B, N, 1024)
    f = h.max(axis=1)                          # (B, 1024)
    f = jnp.maximum(f @ fw1 + fb1, 0.0)
    f = jnp.maximum(f @ fw2 + fb2, 0.0)
    f = f @ fw3 + fb3
    f = f + jnp.eye(3, dtype=jnp.float32).reshape(1, 9)
    return f.reshape(B, 3, 3)


if __name__ == "__main__":
    key = jax.random.PRNGKey(0)
    kp, kx = jax.random.split(key)
    params = _make_params(kp)

    # N deliberately not a multiple of 8 / the tile size, to exercise the
    # edge-padding path on top of the running-max accumulator.
    B, N = 2, 500
    x = jax.random.normal(kx, (B, N, 3), jnp.float32)   # (batch, points, xyz)

    ref = _reference_forward(x, params)

    # multi-tile path: grid = (B, 4), exercises accumulator + FC-head fusion
    out1 = jax.block_until_ready(
        jax.jit(functools.partial(stn3d_forward, params=params, tile_n=128))(x))
    # default path: one balanced point tile per batch element (tile_n = 504)
    out2 = jax.block_until_ready(
        jax.jit(functools.partial(stn3d_forward, params=params))(x))

    for out in (out1, out2):
        assert out.shape == (B, 3, 3)
        # bf16 matmul operands => loosened tolerance vs the f32 reference
        assert jnp.allclose(out, ref, atol=5e-2, rtol=5e-2), (
            f"max abs err {jnp.max(jnp.abs(out - ref))}")
    print("KERNEL_OK")
</pallas_src>

<mosaic_0001>
module attributes {stable_mosaic.version = 11 : i64} {
  func.func @kernel(%arg0: i32, %arg1: i32, %arg2: memref<1x128x3xf32, #tpu.memory_space<vmem>>, %arg3: memref<3x64xbf16, #tpu.memory_space<vmem>>, %arg4: memref<1x64xf32, #tpu.memory_space<vmem>>, %arg5: memref<64x128xbf16, #tpu.memory_space<vmem>>, %arg6: memref<1x128xf32, #tpu.memory_space<vmem>>, %arg7: memref<128x1024xbf16, #tpu.memory_space<vmem>>, %arg8: memref<1x1024xf32, #tpu.memory_space<vmem>>, %arg9: memref<1024x512xbf16, #tpu.memory_space<vmem>>, %arg10: memref<1x512xf32, #tpu.memory_space<vmem>>, %arg11: memref<512x256xbf16, #tpu.memory_space<vmem>>, %arg12: memref<1x256xf32, #tpu.memory_space<vmem>>, %arg13: memref<256x9xbf16, #tpu.memory_space<vmem>>, %arg14: memref<1x9xf32, #tpu.memory_space<vmem>>, %arg15: memref<1x1x9xf32, #tpu.memory_space<vmem>>, %arg16: memref<1x1024xf32, #tpu.memory_space<vmem>>) attributes {dimension_semantics = [#tpu.dimension_semantics<parallel>, #tpu.dimension_semantics<arbitrary>], iteration_bounds = array<i64: 2, 4>, scalar_prefetch = 0 : i64, scratch_operands = 1 : i64, tpu.core_type = #tpu.core_type<tc>, window_params = [{transform_indices = @transform_0, window_bounds = array<i64: 1, 128, 3>}, {pipeline_mode = #tpu.pipeline_mode<synchronous>, transform_indices = @transform_1, window_bounds = array<i64: 3, 64>}, {pipeline_mode = #tpu.pipeline_mode<synchronous>, transform_indices = @transform_2, window_bounds = array<i64: 1, 64>}, {pipeline_mode = #tpu.pipeline_mode<synchronous>, transform_indices = @transform_3, window_bounds = array<i64: 64, 128>}, {pipeline_mode = #tpu.pipeline_mode<synchronous>, transform_indices = @transform_4, window_bounds = array<i64: 1, 128>}, {pipeline_mode = #tpu.pipeline_mode<synchronous>, transform_indices = @transform_5, window_bounds = array<i64: 128, 1024>}, {pipeline_mode = #tpu.pipeline_mode<synchronous>, transform_indices = @transform_6, window_bounds = array<i64: 1, 1024>}, {pipeline_mode = #tpu.pipeline_mode<synchronous>, transform_indices = @transform_7, window_bounds = array<i64: 1024, 512>}, {pipeline_mode = #tpu.pipeline_mode<synchronous>, transform_indices = @transform_8, window_bounds = array<i64: 1, 512>}, {pipeline_mode = #tpu.pipeline_mode<synchronous>, transform_indices = @transform_9, window_bounds = array<i64: 512, 256>}, {pipeline_mode = #tpu.pipeline_mode<synchronous>, transform_indices = @transform_10, window_bounds = array<i64: 1, 256>}, {pipeline_mode = #tpu.pipeline_mode<synchronous>, transform_indices = @transform_11, window_bounds = array<i64: 256, 9>}, {pipeline_mode = #tpu.pipeline_mode<synchronous>, transform_indices = @transform_12, window_bounds = array<i64: 1, 9>}, {transform_indices = @transform_13, window_bounds = array<i64: 1, 1, 9>}]} {
    %c0_i32 = arith.constant 0 : i32
    %0 = arith.cmpi eq, %arg1, %c0_i32 : i32
    %1 = arith.extui %0 : i1 to i32
    %c0_i32_0 = arith.constant 0 : i32
    %2 = arith.cmpi ne, %1, %c0_i32_0 : i32
    scf.if %2 {
      %cst_44 = arith.constant 0xFF800000 : f32
      %53 = vector.broadcast %cst_44 : f32 to vector<1x1024xf32>
      %c0_45 = arith.constant 0 : index
      %c0_46 = arith.constant 0 : index
      %54 = vector.load %arg16[%c0_45, %c0_46] : memref<1x1024xf32, #tpu.memory_space<vmem>>, vector<1x1024xf32>
      tpu.vector_store %arg16[%c0_45, %c0_46], %53 {strides = array<i32>} : memref<1x1024xf32, #tpu.memory_space<vmem>>, vector<1x1024xf32>,
    } else {
    }
    %c0 = arith.constant 0 : index
    %c0_1 = arith.constant 0 : index
    %c0_2 = arith.constant 0 : index
    %3 = vector.load %arg2[%c0, %c0_1, %c0_2] : memref<1x128x3xf32, #tpu.memory_space<vmem>>, vector<1x128x3xf32>
    %4 = vector.shape_cast %3 : vector<1x128x3xf32> to vector<128x3xf32>
    %5 = arith.truncf %4 : vector<128x3xf32> to vector<128x3xbf16>
    %c0_3 = arith.constant 0 : index
    %c0_4 = arith.constant 0 : index
    %6 = vector.load %arg3[%c0_3, %c0_4] : memref<3x64xbf16, #tpu.memory_space<vmem>>, vector<3x64xbf16>
    %cst = arith.constant dense<0.000000e+00> : vector<128x64xf32>
    %7 = tpu.matmul %5, %6, %cst {dimension_numbers = #tpu.dot_dimension_numbers<[1], [0], [0], [1], [0, 0, 1, 1], [], []>} : vector<128x3xbf16>, vector<3x64xbf16>, vector<128x64xf32> -> vector<128x64xf32>
    %c0_5 = arith.constant 0 : index
    %c0_6 = arith.constant 0 : index
    %8 = vector.load %arg4[%c0_5, %c0_6] : memref<1x64xf32, #tpu.memory_space<vmem>>, vector<1x64xf32>
    %9 = vector.broadcast %8 : vector<1x64xf32> to vector<128x64xf32>
    %10 = arith.addf %7, %9 : vector<128x64xf32>
    %cst_7 = arith.constant 0.000000e+00 : f32
    %11 = vector.broadcast %cst_7 : f32 to vector<128x64xf32>
    %12 = arith.maximumf %10, %11 : vector<128x64xf32>
    %13 = arith.truncf %12 : vector<128x64xf32> to vector<128x64xbf16>
    %c0_8 = arith.constant 0 : index
    %c0_9 = arith.constant 0 : index
    %14 = vector.load %arg5[%c0_8, %c0_9] : memref<64x128xbf16, #tpu.memory_space<vmem>>, vector<64x128xbf16>
    %cst_10 = arith.constant dense<0.000000e+00> : vector<128x128xf32>
    %15 = tpu.matmul %13, %14, %cst_10 {dimension_numbers = #tpu.dot_dimension_numbers<[1], [0], [0], [1], [0, 0, 1, 1], [], []>} : vector<128x64xbf16>, vector<64x128xbf16>, vector<128x128xf32> -> vector<128x128xf32>
    %c0_11 = arith.constant 0 : index
    %c0_12 = arith.constant 0 : index
    %16 = vector.load %arg6[%c0_11, %c0_12] : memref<1x128xf32, #tpu.memory_space<vmem>>, vector<1x128xf32>
    %17 = vector.broadcast %16 : vector<1x128xf32> to vector<128x128xf32>
    %18 = arith.addf %15, %17 : vector<128x128xf32>
    %cst_13 = arith.constant 0.000000e+00 : f32
    %19 = vector.broadcast %cst_13 : f32 to vector<128x128xf32>
    %20 = arith.maximumf %18, %19 : vector<128x128xf32>
    %21 = arith.truncf %20 : vector<128x128xf32> to vector<128x128xbf16>
    %c0_14 = arith.constant 0 : index
    %c0_15 = arith.constant 0 : index
    %22 = vector.load %arg7[%c0_14, %c0_15] : memref<128x1024xbf16, #tpu.memory_space<vmem>>, vector<128x256xbf16>
    %cst_16 = arith.constant dense<0.000000e+00> : vector<128x256xf32>
    %23 = tpu.matmul %21, %22, %cst_16 {dimension_numbers = #tpu.dot_dimension_numbers<[1], [0], [0], [1], [0, 0, 1, 1], [], []>} : vector<128x128xbf16>, vector<128x256xbf16>, vector<128x256xf32> -> vector<128x256xf32>
    %c0_17 = arith.constant 0 : index
    %c0_18 = arith.constant 0 : index
    %24 = vector.load %arg16[%c0_17, %c0_18] : memref<1x1024xf32, #tpu.memory_space<vmem>>, vector<1x256xf32>
    %cst_19 = arith.constant dense<0xFF800000> : vector<256xf32>
    %25 = vector.multi_reduction <maximumf>, %23, %cst_19 [0] : vector<128x256xf32> to vector<256xf32>
    %26 = vector.shape_cast %25 : vector<256xf32> to vector<1x256xf32>
    %27 = arith.maximumf %24, %26 : vector<1x256xf32>
    %c0_20 = arith.constant 0 : index
    %c0_21 = arith.constant 0 : index
    %28 = vector.load %arg16[%c0_20, %c0_21] : memref<1x1024xf32, #tpu.memory_space<vmem>>, vector<1x256xf32>
    tpu.vector_store %arg16[%c0_20, %c0_21], %27 {strides = array<i32>} : memref<1x1024xf32, #tpu.memory_space<vmem>>, vector<1x256xf32>,
    %c0_22 = arith.constant 0 : index
    %c256 = arith.constant 256 : index
    %29 = vector.load %arg7[%c0_22, %c256] : memref<128x1024xbf16, #tpu.memory_space<vmem>>, vector<128x256xbf16>
    %cst_23 = arith.constant dense<0.000000e+00> : vector<128x256xf32>
    %30 = tpu.matmul %21, %29, %cst_23 {dimension_numbers = #tpu.dot_dimension_numbers<[1], [0], [0], [1], [0, 0, 1, 1], [], []>} : vector<128x128xbf16>, vector<128x256xbf16>, vector<128x256xf32> -> vector<128x256xf32>
    %c0_24 = arith.constant 0 : index
    %c256_25 = arith.constant 256 : index
    %31 = vector.load %arg16[%c0_24, %c256_25] : memref<1x1024xf32, #tpu.memory_space<vmem>>, vector<1x256xf32>
    %cst_26 = arith.constant dense<0xFF800000> : vector<256xf32>
    %32 = vector.multi_reduction <maximumf>, %30, %cst_26 [0] : vector<128x256xf32> to vector<256xf32>
    %33 = vector.shape_cast %32 : vector<256xf32> to vector<1x256xf32>
    %34 = arith.maximumf %31, %33 : vector<1x256xf32>
    %c0_27 = arith.constant 0 : index
    %c256_28 = arith.constant 256 : index
    %35 = vector.load %arg16[%c0_27, %c256_28] : memref<1x1024xf32, #tpu.memory_space<vmem>>, vector<1x256xf32>
    tpu.vector_store %arg16[%c0_27, %c256_28], %34 {strides = array<i32>} : memref<1x1024xf32, #tpu.memory_space<vmem>>, vector<1x256xf32>,
    %c0_29 = arith.constant 0 : index
    %c512 = arith.constant 512 : index
    %36 = vector.load %arg7[%c0_29, %c512] : memref<128x1024xbf16, #tpu.memory_space<vmem>>, vector<128x256xbf16>
    %cst_30 = arith.constant dense<0.000000e+00> : vector<128x256xf32>
    %37 = tpu.matmul %21, %36, %cst_30 {dimension_numbers = #tpu.dot_dimension_numbers<[1], [0], [0], [1], [0, 0, 1, 1], [], []>} : vector<128x128xbf16>, vector<128x256xbf16>, vector<128x256xf32> -> vector<128x256xf32>
    %c0_31 = arith.constant 0 : index
    %c512_32 = arith.constant 512 : index
    %38 = vector.load %arg16[%c0_31, %c512_32] : memref<1x1024xf32, #tpu.memory_space<vmem>>, vector<1x256xf32>
    %cst_33 = arith.constant dense<0xFF800000> : vector<256xf32>
    %39 = vector.multi_reduction <maximumf>, %37, %cst_33 [0] : vector<128x256xf32> to vector<256xf32>
    %40 = vector.shape_cast %39 : vector<256xf32> to vector<1x256xf32>
    %41 = arith.maximumf %38, %40 : vector<1x256xf32>
    %c0_34 = arith.constant 0 : index
    %c512_35 = arith.constant 512 : index
    %42 = vector.load %arg16[%c0_34, %c512_35] : memref<1x1024xf32, #tpu.memory_space<vmem>>, vector<1x256xf32>
    tpu.vector_store %arg16[%c0_34, %c512_35], %41 {strides = array<i32>} : memref<1x1024xf32, #tpu.memory_space<vmem>>, vector<1x256xf32>,
    %c0_36 = arith.constant 0 : index
    %c768 = arith.constant 768 : index
    %43 = vector.load %arg7[%c0_36, %c768] : memref<128x1024xbf16, #tpu.memory_space<vmem>>, vector<128x256xbf16>
    %cst_37 = arith.constant dense<0.000000e+00> : vector<128x256xf32>
    %44 = tpu.matmul %21, %43, %cst_37 {dimension_numbers = #tpu.dot_dimension_numbers<[1], [0], [0], [1], [0, 0, 1, 1], [], []>} : vector<128x128xbf16>, vector<128x256xbf16>, vector<128x256xf32> -> vector<128x256xf32>
    %c0_38 = arith.constant 0 : index
    %c768_39 = arith.constant 768 : index
    %45 = vector.load %arg16[%c0_38, %c768_39] : memref<1x1024xf32, #tpu.memory_space<vmem>>, vector<1x256xf32>
    %cst_40 = arith.constant dense<0xFF800000> : vector<256xf32>
    %46 = vector.multi_reduction <maximumf>, %44, %cst_40 [0] : vector<128x256xf32> to vector<256xf32>
    %47 = vector.shape_cast %46 : vector<256xf32> to vector<1x256xf32>
    %48 = arith.maximumf %45, %47 : vector<1x256xf32>
    %c0_41 = arith.constant 0 : index
    %c768_42 = arith.constant 768 : index
    %49 = vector.load %arg16[%c0_41, %c768_42] : memref<1x1024xf32, #tpu.memory_space<vmem>>, vector<1x256xf32>
    tpu.vector_store %arg16[%c0_41, %c768_42], %48 {strides = array<i32>} : memref<1x1024xf32, #tpu.memory_space<vmem>>, vector<1x256xf32>,
    %c3_i32 = arith.constant 3 : i32
    %50 = arith.cmpi eq, %arg1, %c3_i32 : i32
    %51 = arith.extui %50 : i1 to i32
    %c0_i32_43 = arith.constant 0 : i32
    %52 = arith.cmpi ne, %51, %c0_i32_43 : i32
    scf.if %52 {
      %c0_44 = arith.constant 0 : index
      %c0_45 = arith.constant 0 : index
      %53 = vector.load %arg16[%c0_44, %c0_45] : memref<1x1024xf32, #tpu.memory_space<vmem>>, vector<1x1024xf32>
      %c0_46 = arith.constant 0 : index
      %c0_47 = arith.constant 0 : index
      %54 = vector.load %arg8[%c0_46, %c0_47] : memref<1x1024xf32, #tpu.memory_space<vmem>>, vector<1x1024xf32>
      %55 = arith.addf %53, %54 : vector<1x1024xf32>
      %cst_48 = arith.constant 0.000000e+00 : f32
      %56 = vector.broadcast %cst_48 : f32 to vector<1x1024xf32>
      %57 = arith.maximumf %55, %56 : vector<1x1024xf32>
      %58 = arith.truncf %57 : vector<1x1024xf32> to vector<1x1024xbf16>
      %c0_49 = arith.constant 0 : index
      %c0_50 = arith.constant 0 : index
      %59 = vector.load %arg9[%c0_49, %c0_50] : memref<1024x512xbf16, #tpu.memory_space<vmem>>, vector<1024x512xbf16>
      %cst_51 = arith.constant dense<0.000000e+00> : vector<1x512xf32>
      %60 = tpu.matmul %58, %59, %cst_51 {dimension_numbers = #tpu.dot_dimension_numbers<[1], [0], [0], [1], [0, 0, 1, 1], [], []>} : vector<1x1024xbf16>, vector<1024x512xbf16>, vector<1x512xf32> -> vector<1x512xf32>
      %c0_52 = arith.constant 0 : index
      %c0_53 = arith.constant 0 : index
      %61 = vector.load %arg10[%c0_52, %c0_53] : memref<1x512xf32, #tpu.memory_space<vmem>>, vector<1x512xf32>
      %62 = arith.addf %60, %61 : vector<1x512xf32>
      %cst_54 = arith.constant 0.000000e+00 : f32
      %63 = vector.broadcast %cst_54 : f32 to vector<1x512xf32>
      %64 = arith.maximumf %62, %63 : vector<1x512xf32>
      %65 = arith.truncf %64 : vector<1x512xf32> to vector<1x512xbf16>
      %c0_55 = arith.constant 0 : index
      %c0_56 = arith.constant 0 : index
      %66 = vector.load %arg11[%c0_55, %c0_56] : memref<512x256xbf16, #tpu.memory_space<vmem>>, vector<512x256xbf16>
      %cst_57 = arith.constant dense<0.000000e+00> : vector<1x256xf32>
      %67 = tpu.matmul %65, %66, %cst_57 {dimension_numbers = #tpu.dot_dimension_numbers<[1], [0], [0], [1], [0, 0, 1, 1], [], []>} : vector<1x512xbf16>, vector<512x256xbf16>, vector<1x256xf32> -> vector<1x256xf32>
      %c0_58 = arith.constant 0 : index
      %c0_59 = arith.constant 0 : index
      %68 = vector.load %arg12[%c0_58, %c0_59] : memref<1x256xf32, #tpu.memory_space<vmem>>, vector<1x256xf32>
      %69 = arith.addf %67, %68 : vector<1x256xf32>
      %cst_60 = arith.constant 0.000000e+00 : f32
      %70 = vector.broadcast %cst_60 : f32 to vector<1x256xf32>
      %71 = arith.maximumf %69, %70 : vector<1x256xf32>
      %72 = arith.truncf %71 : vector<1x256xf32> to vector<1x256xbf16>
      %c0_61 = arith.constant 0 : index
      %c0_62 = arith.constant 0 : index
      %73 = vector.load %arg13[%c0_61, %c0_62] : memref<256x9xbf16, #tpu.memory_space<vmem>>, vector<256x9xbf16>
      %cst_63 = arith.constant dense<0.000000e+00> : vector<1x9xf32>
      %74 = tpu.matmul %72, %73, %cst_63 {dimension_numbers = #tpu.dot_dimension_numbers<[1], [0], [0], [1], [0, 0, 1, 1], [], []>} : vector<1x256xbf16>, vector<256x9xbf16>, vector<1x9xf32> -> vector<1x9xf32>
      %c0_64 = arith.constant 0 : index
      %c0_65 = arith.constant 0 : index
      %75 = vector.load %arg14[%c0_64, %c0_65] : memref<1x9xf32, #tpu.memory_space<vmem>>, vector<1x9xf32>
      %76 = arith.addf %74, %75 : vector<1x9xf32>
      %77 = vector.shape_cast %76 : vector<1x9xf32> to vector<1x1x9xf32>
      %c0_66 = arith.constant 0 : index
      %c0_67 = arith.constant 0 : index
      %c0_68 = arith.constant 0 : index
      %78 = vector.load %arg15[%c0_66, %c0_67, %c0_68] : memref<1x1x9xf32, #tpu.memory_space<vmem>>, vector<1x1x9xf32>
      tpu.vector_store %arg15[%c0_66, %c0_67, %c0_68], %77 {strides = array<i32>} : memref<1x1x9xf32, #tpu.memory_space<vmem>>, vector<1x1x9xf32>,
    } else {
    }
    return
  }
  func.func @transform_0(%arg0: i32, %arg1: i32) -> (i32, i32, i32) {
    %c0_i32 = arith.constant 0 : i32
    %c0_i32_0 = arith.constant 0 : i32
    return %arg0, %arg1, %c0_i32 : i32, i32, i32
  }
  func.func @transform_1(%arg0: i32, %arg1: i32) -> (i32, i32) {
    %c0_i32 = arith.constant 0 : i32
    %c0_i32_0 = arith.constant 0 : i32
    %c0_i32_1 = arith.constant 0 : i32
    return %c0_i32, %c0_i32_0 : i32, i32
  }
  func.func @transform_2(%arg0: i32, %arg1: i32) -> (i32, i32) {
    %c0_i32 = arith.constant 0 : i32
    %c0_i32_0 = arith.constant 0 : i32
    %c0_i32_1 = arith.constant 0 : i32
    return %c0_i32, %c0_i32_0 : i32, i32
  }
  func.func @transform_3(%arg0: i32, %arg1: i32) -> (i32, i32) {
    %c0_i32 = arith.constant 0 : i32
    %c0_i32_0 = arith.constant 0 : i32
    %c0_i32_1 = arith.constant 0 : i32
    return %c0_i32, %c0_i32_0 : i32, i32
  }
  func.func @transform_4(%arg0: i32, %arg1: i32) -> (i32, i32) {
    %c0_i32 = arith.constant 0 : i32
    %c0_i32_0 = arith.constant 0 : i32
    %c0_i32_1 = arith.constant 0 : i32
    return %c0_i32, %c0_i32_0 : i32, i32
  }
  func.func @transform_5(%arg0: i32, %arg1: i32) -> (i32, i32) {
    %c0_i32 = arith.constant 0 : i32
    %c0_i32_0 = arith.constant 0 : i32
    %c0_i32_1 = arith.constant 0 : i32
    return %c0_i32, %c0_i32_0 : i32, i32
  }
  func.func @transform_6(%arg0: i32, %arg1: i32) -> (i32, i32) {
    %c0_i32 = arith.constant 0 : i32
    %c0_i32_0 = arith.constant 0 : i32
    %c0_i32_1 = arith.constant 0 : i32
    return %c0_i32, %c0_i32_0 : i32, i32
  }
  func.func @transform_7(%arg0: i32, %arg1: i32) -> (i32, i32) {
    %c0_i32 = arith.constant 0 : i32
    %c0_i32_0 = arith.constant 0 : i32
    %c0_i32_1 = arith.constant 0 : i32
    return %c0_i32, %c0_i32_0 : i32, i32
  }
  func.func @transform_8(%arg0: i32, %arg1: i32) -> (i32, i32) {
    %c0_i32 = arith.constant 0 : i32
    %c0_i32_0 = arith.constant 0 : i32
    %c0_i32_1 = arith.constant 0 : i32
    return %c0_i32, %c0_i32_0 : i32, i32
  }
  func.func @transform_9(%arg0: i32, %arg1: i32) -> (i32, i32) {
    %c0_i32 = arith.constant 0 : i32
    %c0_i32_0 = arith.constant 0 : i32
    %c0_i32_1 = arith.constant 0 : i32
    return %c0_i32, %c0_i32_0 : i32, i32
  }
  func.func @transform_10(%arg0: i32, %arg1: i32) -> (i32, i32) {
    %c0_i32 = arith.constant 0 : i32
    %c0_i32_0 = arith.constant 0 : i32
    %c0_i32_1 = arith.constant 0 : i32
    return %c0_i32, %c0_i32_0 : i32, i32
  }
  func.func @transform_11(%arg0: i32, %arg1: i32) -> (i32, i32) {
    %c0_i32 = arith.constant 0 : i32
    %c0_i32_0 = arith.constant 0 : i32
    %c0_i32_1 = arith.constant 0 : i32
    return %c0_i32, %c0_i32_0 : i32, i32
  }
  func.func @transform_12(%arg0: i32, %arg1: i32) -> (i32, i32) {
    %c0_i32 = arith.constant 0 : i32
    %c0_i32_0 = arith.constant 0 : i32
    %c0_i32_1 = arith.constant 0 : i32
    return %c0_i32, %c0_i32_0 : i32, i32
  }
  func.func @transform_13(%arg0: i32, %arg1: i32) -> (i32, i32, i32) {
    %c0_i32 = arith.constant 0 : i32
    %c0_i32_0 = arith.constant 0 : i32
    %c0_i32_1 = arith.constant 0 : i32
    return %arg0, %c0_i32, %c0_i32_0 : i32, i32, i32
  }
}

</mosaic_0001>

<llo_original>
// kernel: stn3d_forward.1
$region0: #{stn3d_forward.1}
  #allocation0 [shape = 'u32[]', space=smem, size = 0x4, offset = 0x4, fixed_abs, tag = 'smem constant byte address 0x4 - core index']
  #allocation1 [shape = 'u32[144,128]{1,0:T(1,128)}', space=vmem, size = 0x12000, scoped, tag = 'internal scratch']
  #allocation2 [shape = 'f32[1,1024]{1,0:T(1,128)}', space=vmem, size = 0x1000, scoped, tag = 'scratch operand']
  %s0 = inlined_call_operand.vmem [shape: f32[2,512,3], index: 0, kind: input, shape index: {}]
  %s1 = inlined_call_operand.hbm [shape: bf16[3,64], index: 1, kind: input, shape index: {}]
  %s2 = inlined_call_operand.vmem [shape: f32[1,64], index: 2, kind: input, shape index: {}]
  %s3 = inlined_call_operand.hbm [shape: bf16[64,128], index: 3, kind: input, shape index: {}]
  %s4 = inlined_call_operand.hbm [shape: f32[1,128], index: 4, kind: input, shape index: {}]
  %s5 = inlined_call_operand.vmem [shape: bf16[128,1024], index: 5, kind: input, shape index: {}]
  %s6 = inlined_call_operand.vmem [shape: f32[1,1024], index: 6, kind: input, shape index: {}]
  %s7 = inlined_call_operand.hbm [shape: bf16[1024,512], index: 7, kind: input, shape index: {}]
  %s8 = inlined_call_operand.hbm [shape: f32[1,512], index: 8, kind: input, shape index: {}]
  %s9 = inlined_call_operand.vmem [shape: bf16[512,256], index: 9, kind: input, shape index: {}]
  %s10 = inlined_call_operand.hbm [shape: f32[1,256], index: 10, kind: input, shape index: {}]
  %s11 = inlined_call_operand.vmem [shape: bf16[256,9], index: 11, kind: input, shape index: {}]
  %s12 = inlined_call_operand.vmem [shape: f32[1,9], index: 12, kind: input, shape index: {}]
  %s13 = inlined_call_operand.vmem [shape: f32[2,1,9], index: 13, kind: output, shape index: {}]
  %s14 = sld [smem:[#allocation0]]
  $region117: #{stn3d_forward.1} parent=0
    _
  %s16 = ssub.s32 1, %s14
  %s17 = scalar_select 0, %s16, %s14
  $region1: #{stn3d_forward.1} parent=0
    #allocation3 [shape = 'u8[1024]{0}', space=vmem, size = 0x400, scoped, tag = 'input window, operand 1, single buffered']
    #allocation4 [shape = 's32[2]{0}', space=sflag, size = 0x8, scoped, tag = 'scoped memory for stn3d_forward.1']
    #allocation5 [shape = 'u8[16384]{0}', space=vmem, size = 0x4000, scoped, tag = 'input window, operand 3, single buffered']
    #allocation6 [shape = 's32[1]{0}', space=sflag, size = 0x4, scoped, tag = 'scoped memory for stn3d_forward.1']
    #allocation7 [shape = 'u8[512]{0}', space=vmem, size = 0x400, scoped, tag = 'input window, operand 4, single buffered']
    #allocation8 [shape = 'u8[1048576]{0}', space=vmem, size = 0x100000, scoped, tag = 'input window, operand 7, single buffered']
    #allocation9 [shape = 's32[1]{0}', space=sflag, size = 0x4, scoped, tag = 'scoped memory for stn3d_forward.1']
    #allocation10 [shape = 'u8[2048]{0}', space=vmem, size = 0x800, scoped, tag = 'input window, operand 8, single buffered']
    #allocation11 [shape = 'u8[1024]{0}', space=vmem, size = 0x400, scoped, tag = 'input window, operand 10, single buffered']
    #allocation12 [shape = 's32[1]{0}', space=sflag, size = 0x4, scoped, tag = 'scoped memory for stn3d_forward.1']
    %18 = vsyncpa [#allocation4], 0
    %19 = vsyncpa [#allocation6], 0
    %20 = vsyncpa [#allocation9], 0
    %21 = vsyncpa [#allocation12], 0
    loop: start=0, step=1, limit=10
    $region2: #{stn3d_forward.1} parent=1 // loop_pre_header
      _
    $region3: #{stn3d_forward.1} parent=1 // loop_header
      %s23 = sphi 0, %s27
      %p24 = scmp.ge.s32.totalorder %s23, 10
      %s30 = sphi 0, %s42
      %s31 = sphi 0, %s38
      %s32 = sphi 0, %s30
      %s33 = sphi 0, %s31
      %s34 = sphi 0, %s32
      %s35 = sphi 0, %s33
      %s47 = sphi 0, %s49
      %s50 = sphi 0, %s47
      %s51 = sphi 0, %s50
      %s67 = sphi 0, %s51
      %s71 = sphi 0, %s71
      %s73 = sphi 0, %s71
      %s74 = sphi 0, %s73
      %s88 = sphi 0, %s74
      %s92 = sphi 0, %s92
      %s94 = sphi 0, %s92
      %s95 = sphi 0, %s94
      %s109 = sphi 0, %s95
      %s113 = sphi 0, %s113
      %s115 = sphi 0, %s113
      %s116 = sphi 0, %s115
      %s130 = sphi 0, %s116
      %s134 = sphi 0, %s134
      %s136 = sphi 0, %s134
      %s137 = sphi 0, %s136
      %s151 = sphi 0, %s137
      %s155 = sphi 0, %s155
      %s157 = sphi 0, %s155
      %s158 = sphi 0, %s157
      %s172 = sphi 0, %s158
      %s176 = sphi 0, %s176
      %s178 = sphi 0, %s176
      %s179 = sphi 0, %s178
      %s193 = sphi 0, %s179
      %s197 = sphi 0, %s197
      %s199 = sphi 0, %s197
      %s200 = sphi 0, %s199
      %s214 = sphi 0, %s200
      %s218 = sphi 0, %s218
      %s220 = sphi 0, %s218
      %s221 = sphi 0, %s220
      %s235 = sphi 0, %s221
      %s239 = sphi 0, %s239
      %s241 = sphi 0, %s239
      %s242 = sphi 0, %s241
      %s256 = sphi 0, %s242
      %s260 = sphi 0, %s260
      %s262 = sphi 0, %s260
      %s263 = sphi 0, %s262
      %s277 = sphi 0, %s263
      %s281 = sphi 0, %s281
      %s283 = sphi 0, %s281
      %s284 = sphi 0, %s283
      %s298 = sphi 0, %s284
      %s302 = sphi 0, %s302
      %s304 = sphi 0, %s302
      %s305 = sphi 0, %s304
      %s319 = sphi 0, %s305
      %s325 = sphi 0, %s327
      %s328 = sphi 0, %s325
      %s329 = sphi 0, %s328
      %s345 = sphi 0, %s329
    $region4: #{stn3d_forward.1} parent=1 // loop_header_branch
      %26 = sbr.rel (%p24) target = $region8
    $region5: #{stn3d_forward.1} parent=1 // loop_body
      %s28 = ssub.s32 %s23, 1
      %s29 = ssub.s32 %s23, 2
      %s36 = sadd.s32 1, %s31
      %p37 = scmp.ge.s32.totalorder %s36, 4
      %s38 = scalar_select %p37, 0, %s36
      %s39 = sadd.s32 1, %s30
      %s40 = scalar_select %p37, %s39, %s30
      %p41 = scmp.ge.s32.totalorder %s40, 2
      %s42 = scalar_select %p41, 0, %s40
      %s43 = ssub.s32 %s30, %s42
      %s44 = ssub.s32 %s31, %s38
      %s45 = sor.u32 %s43, %s44
      %p46 = scmp.eq.s32.totalorder %s45, 0
      %s48 = sadd.s32 %s47, 1
      %s49 = scalar_select %p46, %s47, %s48
      %p52 = pneg %p46
      %p53 = scmp.eq.s32.totalorder %s23, 7
      %p54 = por %p52, %p53
      %p55 = scmp.ne.s32.totalorder %s47, %s50
      %p56 = scmp.eq.s32.totalorder %s23, 0
      %p57 = por %p55, %p56
      %p58 = scmp.ne.s32.totalorder %s47, %s50
      %p59 = scmp.eq.s32.totalorder %s28, 7
      %p60 = por %p58, %p59
      %p61 = scmp.ne.s32.totalorder %s50, %s51
      %p62 = scmp.eq.s32.totalorder %s28, 0
      %p63 = por %p61, %p62
      %p64 = scmp.ne.s32.totalorder %s50, %s51
      %p65 = scmp.eq.s32.totalorder %s29, 7
      %p66 = por %p64, %p65
      %p68 = scmp.ne.s32.totalorder %s51, %s67
      %p69 = scmp.eq.s32.totalorder %s29, 0
      %p70 = por %p68, %p69
      %s72 = sadd.s32 %s71, 1
      %p75 = scmp.eq.s32.totalorder %s23, 7
      %p76 = scmp.ne.s32.totalorder %s71, %s73
      %p77 = scmp.eq.s32.totalorder %s23, 0
      %p78 = por %p76, %p77
      %p79 = scmp.ne.s32.totalorder %s71, %s73
      %p80 = scmp.eq.s32.totalorder %s28, 7
      %p81 = por %p79, %p80
      %p82 = scmp.ne.s32.totalorder %s73, %s74
      %p83 = scmp.eq.s32.totalorder %s28, 0
      %p84 = por %p82, %p83
      %p85 = scmp.ne.s32.totalorder %s73, %s74
      %p86 = scmp.eq.s32.totalorder %s29, 7
      %p87 = por %p85, %p86
      %p89 = scmp.ne.s32.totalorder %s74, %s88
      %p90 = scmp.eq.s32.totalorder %s29, 0
      %p91 = por %p89, %p90
      %s93 = sadd.s32 %s92, 1
      %p96 = scmp.eq.s32.totalorder %s23, 7
      %p97 = scmp.ne.s32.totalorder %s92, %s94
      %p98 = scmp.eq.s32.totalorder %s23, 0
      %p99 = por %p97, %p98
      %p100 = scmp.ne.s32.totalorder %s92, %s94
      %p101 = scmp.eq.s32.totalorder %s28, 7
      %p102 = por %p100, %p101
      %p103 = scmp.ne.s32.totalorder %s94, %s95
      %p104 = scmp.eq.s32.totalorder %s28, 0
      %p105 = por %p103, %p104
      %p106 = scmp.ne.s32.totalorder %s94, %s95
      %p107 = scmp.eq.s32.totalorder %s29, 7
      %p108 = por %p106, %p107
      %p110 = scmp.ne.s32.totalorder %s95, %s109
      %p111 = scmp.eq.s32.totalorder %s29, 0
      %p112 = por %p110, %p111
      %s114 = sadd.s32 %s113, 1
      %p117 = scmp.eq.s32.totalorder %s23, 7
      %p118 = scmp.ne.s32.totalorder %s113, %s115
      %p119 = scmp.eq.s32.totalorder %s23, 0
      %p120 = por %p118, %p119
      %p121 = scmp.ne.s32.totalorder %s113, %s115
      %p122 = scmp.eq.s32.totalorder %s28, 7
      %p123 = por %p121, %p122
      %p124 = scmp.ne.s32.totalorder %s115, %s116
      %p125 = scmp.eq.s32.totalorder %s28, 0
      %p126 = por %p124, %p125
      %p127 = scmp.ne.s32.totalorder %s115, %s116
      %p128 = scmp.eq.s32.totalorder %s29, 7
      %p129 = por %p127, %p128
      %p131 = scmp.ne.s32.totalorder %s116, %s130
      %p132 = scmp.eq.s32.totalorder %s29, 0
      %p133 = por %p131, %p132
      %s135 = sadd.s32 %s134, 1
      %p138 = scmp.eq.s32.totalorder %s23, 7
      %p139 = scmp.ne.s32.totalorder %s134, %s136
      %p140 = scmp.eq.s32.totalorder %s23, 0
      %p141 = por %p139, %p140
      %p142 = scmp.ne.s32.totalorder %s134, %s136
      %p143 = scmp.eq.s32.totalorder %s28, 7
      %p144 = por %p142, %p143
      %p145 = scmp.ne.s32.totalorder %s136, %s137
      %p146 = scmp.eq.s32.totalorder %s28, 0
      %p147 = por %p145, %p146
      %p148 = scmp.ne.s32.totalorder %s136, %s137
      %p149 = scmp.eq.s32.totalorder %s29, 7
      %p150 = por %p148, %p149
      %p152 = scmp.ne.s32.totalorder %s137, %s151
      %p153 = scmp.eq.s32.totalorder %s29, 0
      %p154 = por %p152, %p153
      %s156 = sadd.s32 %s155, 1
      %p159 = scmp.eq.s32.totalorder %s23, 7
      %p160 = scmp.ne.s32.totalorder %s155, %s157
      %p161 = scmp.eq.s32.totalorder %s23, 0
      %p162 = por %p160, %p161
      %p163 = scmp.ne.s32.totalorder %s155, %s157
      %p164 = scmp.eq.s32.totalorder %s28, 7
      %p165 = por %p163, %p164
      %p166 = scmp.ne.s32.totalorder %s157, %s158
      %p167 = scmp.eq.s32.totalorder %s28, 0
      %p168 = por %p166, %p167
      %p169 = scmp.ne.s32.totalorder %s157, %s158
      %p170 = scmp.eq.s32.totalorder %s29, 7
      %p171 = por %p169, %p170
      %p173 = scmp.ne.s32.totalorder %s158, %s172
      %p174 = scmp.eq.s32.totalorder %s29, 0
      %p175 = por %p173, %p174
      %s177 = sadd.s32 %s176, 1
      %p180 = scmp.eq.s32.totalorder %s23, 7
      %p181 = scmp.ne.s32.totalorder %s176, %s178
      %p182 = scmp.eq.s32.totalorder %s23, 0
      %p183 = por %p181, %p182
      %p184 = scmp.ne.s32.totalorder %s176, %s178
      %p185 = scmp.eq.s32.totalorder %s28, 7
      %p186 = por %p184, %p185
      %p187 = scmp.ne.s32.totalorder %s178, %s179
      %p188 = scmp.eq.s32.totalorder %s28, 0
      %p189 = por %p187, %p188
      %p190 = scmp.ne.s32.totalorder %s178, %s179
      %p191 = scmp.eq.s32.totalorder %s29, 7
      %p192 = por %p190, %p191
      %p194 = scmp.ne.s32.totalorder %s179, %s193
      %p195 = scmp.eq.s32.totalorder %s29, 0
      %p196 = por %p194, %p195
      %s198 = sadd.s32 %s197, 1
      %p201 = scmp.eq.s32.totalorder %s23, 7
      %p202 = scmp.ne.s32.totalorder %s197, %s199
      %p203 = scmp.eq.s32.totalorder %s23, 0
      %p204 = por %p202, %p203
      %p205 = scmp.ne.s32.totalorder %s197, %s199
      %p206 = scmp.eq.s32.totalorder %s28, 7
      %p207 = por %p205, %p206
      %p208 = scmp.ne.s32.totalorder %s199, %s200
      %p209 = scmp.eq.s32.totalorder %s28, 0
      %p210 = por %p208, %p209
      %p211 = scmp.ne.s32.totalorder %s199, %s200
      %p212 = scmp.eq.s32.totalorder %s29, 7
      %p213 = por %p211, %p212
      %p215 = scmp.ne.s32.totalorder %s200, %s214
      %p216 = scmp.eq.s32.totalorder %s29, 0
      %p217 = por %p215, %p216
      %s219 = sadd.s32 %s218, 1
      %p222 = scmp.eq.s32.totalorder %s23, 7
      %p223 = scmp.ne.s32.totalorder %s218, %s220
      %p224 = scmp.eq.s32.totalorder %s23, 0
      %p225 = por %p223, %p224
      %p226 = scmp.ne.s32.totalorder %s218, %s220
      %p227 = scmp.eq.s32.totalorder %s28, 7
      %p228 = por %p226, %p227
      %p229 = scmp.ne.s32.totalorder %s220, %s221
      %p230 = scmp.eq.s32.totalorder %s28, 0
      %p231 = por %p229, %p230
      %p232 = scmp.ne.s32.totalorder %s220, %s221
      %p233 = scmp.eq.s32.totalorder %s29, 7
      %p234 = por %p232, %p233
      %p236 = scmp.ne.s32.totalorder %s221, %s235
      %p237 = scmp.eq.s32.totalorder %s29, 0
      %p238 = por %p236, %p237
      %s240 = sadd.s32 %s239, 1
      %p243 = scmp.eq.s32.totalorder %s23, 7
      %p244 = scmp.ne.s32.totalorder %s239, %s241
      %p245 = scmp.eq.s32.totalorder %s23, 0
      %p246 = por %p244, %p245
      %p247 = scmp.ne.s32.totalorder %s239, %s241
      %p248 = scmp.eq.s32.totalorder %s28, 7
      %p249 = por %p247, %p248
      %p250 = scmp.ne.s32.totalorder %s241, %s242
      %p251 = scmp.eq.s32.totalorder %s28, 0
      %p252 = por %p250, %p251
      %p253 = scmp.ne.s32.totalorder %s241, %s242
      %p254 = scmp.eq.s32.totalorder %s29, 7
      %p255 = por %p253, %p254
      %p257 = scmp.ne.s32.totalorder %s242, %s256
      %p258 = scmp.eq.s32.totalorder %s29, 0
      %p259 = por %p257, %p258
      %s261 = sadd.s32 %s260, 1
      %p264 = scmp.eq.s32.totalorder %s23, 7
      %p265 = scmp.ne.s32.totalorder %s260, %s262
      %p266 = scmp.eq.s32.totalorder %s23, 0
      %p267 = por %p265, %p266
      %p268 = scmp.ne.s32.totalorder %s260, %s262
      %p269 = scmp.eq.s32.totalorder %s28, 7
      %p270 = por %p268, %p269
      %p271 = scmp.ne.s32.totalorder %s262, %s263
      %p272 = scmp.eq.s32.totalorder %s28, 0
      %p273 = por %p271, %p272
      %p274 = scmp.ne.s32.totalorder %s262, %s263
      %p275 = scmp.eq.s32.totalorder %s29, 7
      %p276 = por %p274, %p275
      %p278 = scmp.ne.s32.totalorder %s263, %s277
      %p279 = scmp.eq.s32.totalorder %s29, 0
      %p280 = por %p278, %p279
      %s282 = sadd.s32 %s281, 1
      %p285 = scmp.eq.s32.totalorder %s23, 7
      %p286 = scmp.ne.s32.totalorder %s281, %s283
      %p287 = scmp.eq.s32.totalorder %s23, 0
      %p288 = por %p286, %p287
      %p289 = scmp.ne.s32.totalorder %s281, %s283
      %p290 = scmp.eq.s32.totalorder %s28, 7
      %p291 = por %p289, %p290
      %p292 = scmp.ne.s32.totalorder %s283, %s284
      %p293 = scmp.eq.s32.totalorder %s28, 0
      %p294 = por %p292, %p293
      %p295 = scmp.ne.s32.totalorder %s283, %s284
      %p296 = scmp.eq.s32.totalorder %s29, 7
      %p297 = por %p295, %p296
      %p299 = scmp.ne.s32.totalorder %s284, %s298
      %p300 = scmp.eq.s32.totalorder %s29, 0
      %p301 = por %p299, %p300
      %s303 = sadd.s32 %s302, 1
      %p306 = scmp.eq.s32.totalorder %s23, 7
      %p307 = scmp.ne.s32.totalorder %s302, %s304
      %p308 = scmp.eq.s32.totalorder %s23, 0
      %p309 = por %p307, %p308
      %p310 = scmp.ne.s32.totalorder %s302, %s304
      %p311 = scmp.eq.s32.totalorder %s28, 7
      %p312 = por %p310, %p311
      %p313 = scmp.ne.s32.totalorder %s304, %s305
      %p314 = scmp.eq.s32.totalorder %s28, 0
      %p315 = por %p313, %p314
      %p316 = scmp.ne.s32.totalorder %s304, %s305
      %p317 = scmp.eq.s32.totalorder %s29, 7
      %p318 = por %p316, %p317
      %p320 = scmp.ne.s32.totalorder %s305, %s319
      %p321 = scmp.eq.s32.totalorder %s29, 0
      %p322 = por %p320, %p321
      %s323 = ssub.s32 %s30, %s42
      %p324 = scmp.eq.s32.totalorder %s323, 0
      %s326 = sadd.s32 %s325, 1
      %s327 = scalar_select %p324, %s325, %s326
      %p330 = pneg %p324
      %p331 = scmp.eq.s32.totalorder %s23, 7
      %p332 = por %p330, %p331
      %p333 = scmp.ne.s32.totalorder %s325, %s328
      %p334 = scmp.eq.s32.totalorder %s23, 0
      %p335 = por %p333, %p334
      %p336 = scmp.ne.s32.totalorder %s325, %s328
      %p337 = scmp.eq.s32.totalorder %s28, 7
      %p338 = por %p336, %p337
      %p339 = scmp.ne.s32.totalorder %s328, %s329
      %p340 = scmp.eq.s32.totalorder %s28, 0
      %p341 = por %p339, %p340
      %p342 = scmp.ne.s32.totalorder %s328, %s329
      %p343 = scmp.eq.s32.totalorder %s29, 7
      %p344 = por %p342, %p343
      %p346 = scmp.ne.s32.totalorder %s329, %s345
      %p347 = scmp.eq.s32.totalorder %s29, 0
      %p348 = por %p346, %p347
      %p349 = scmp.le.s32.totalorder 1, %s23
      %p350 = scmp.lt.s32.totalorder %s23, 9
      %p351 = pnand %p349, %p350
      %p352 = pneg %p351
      // Predicated region
      $region9: #{stn3d_forward.1} parent=5 // pred_check
        _
      $region10: #{stn3d_forward.1} parent=5 // pred_check_branch
        %354 = sbr.rel (%p351) target = $region12
      $region11: #{stn3d_forward.1} parent=5 // pred_region
        %s355 = ssub.s32 %s23, 1
        // Predicated region
        $region13: #{stn3d_forward.1} parent=11 // pred_check
          %p356 = pneg %p84
        $region14: #{stn3d_forward.1} parent=11 // pred_check_branch
          %358 = sbr.rel (%p356) target = $region16
        $region15: #{stn3d_forward.1} parent=11 // pred_region
          %s360 = ssub.s32 32, 32
          %361 = vsyncadd [#allocation4], %s360
          %s363 = sshll.u32 [#allocation3], 4
          %s364 = int_to_ptr.vmem [resolvable:$true] %s363
          %366 = dma.hbm_to_vmem [thread:$0]  %s1, 32, %s364, [#allocation4]
        $region16: #{stn3d_forward.1} parent=11 // pred_fallthru
          _
        // Predicated region
        $region17: #{stn3d_forward.1} parent=11 // pred_check
          %p367 = pneg %p105
        $region18: #{stn3d_forward.1} parent=11 // pred_check_branch
          %369 = sbr.rel (%p367) target = $region20
        $region19: #{stn3d_forward.1} parent=11 // pred_region
          _
        $region20: #{stn3d_forward.1} parent=11 // pred_fallthru
          _
        // Predicated region
        $region21: #{stn3d_forward.1} parent=11 // pred_check
          %p370 = pneg %p126
        $region22: #{stn3d_forward.1} parent=11 // pred_check_branch
          %372 = sbr.rel (%p370) target = $region24
        $region23: #{stn3d_forward.1} parent=11 // pred_region
          %s374 = ssub.s32 512, 512
          %375 = vsyncadd [#allocation6], %s374
          %s376 = sshll.u32 [#allocation5], 4
          %s377 = int_to_ptr.vmem [resolvable:$true] %s376
          %382 = dma.hbm_to_vmem [thread:$0]  %s3, 512, %s377, [#allocation6], 64, 64, 4
        $region24: #{stn3d_forward.1} parent=11 // pred_fallthru
          _
        // Predicated region
        $region25: #{stn3d_forward.1} parent=11 // pred_check
          %p383 = pneg %p147
        $region26: #{stn3d_forward.1} parent=11 // pred_check_branch
          %385 = sbr.rel (%p383) target = $region28
        $region27: #{stn3d_forward.1} parent=11 // pred_region
          %s387 = ssub.s32 16, 16
          %388 = vsyncadd [#allocation6], %s387
          %s390 = sshll.u32 [#allocation7], 4
          %s391 = int_to_ptr.vmem [resolvable:$true] %s390
          %393 = dma.hbm_to_vmem [thread:$0]  %s4, 16, %s391, [#allocation6]
        $region28: #{stn3d_forward.1} parent=11 // pred_fallthru
          _
        // Predicated region
        $region29: #{stn3d_forward.1} parent=11 // pred_check
          %p394 = pneg %p168
        $region30: #{stn3d_forward.1} parent=11 // pred_check_branch
          %396 = sbr.rel (%p394) target = $region32
        $region31: #{stn3d_forward.1} parent=11 // pred_region
          _
        $region32: #{stn3d_forward.1} parent=11 // pred_fallthru
          _
        // Predicated region
        $region33: #{stn3d_forward.1} parent=11 // pred_check
          %p397 = pneg %p189
        $region34: #{stn3d_forward.1} parent=11 // pred_check_branch
          %399 = sbr.rel (%p397) target = $region36
        $region35: #{stn3d_forward.1} parent=11 // pred_region
          _
        $region36: #{stn3d_forward.1} parent=11 // pred_fallthru
          _
        // Predicated region
        $region37: #{stn3d_forward.1} parent=11 // pred_check
          %p400 = pneg %p210
        $region38: #{stn3d_forward.1} parent=11 // pred_check_branch
          %402 = sbr.rel (%p400) target = $region40
        $region39: #{stn3d_forward.1} parent=11 // pred_region
          %s404 = ssub.s32 32768, 32768
          %405 = vsyncadd [#allocation9], %s404
          %s406 = sshll.u32 [#allocation8], 4
          %s407 = int_to_ptr.vmem [resolvable:$true] %s406
          %412 = dma.hbm_to_vmem [thread:$0]  %s7, 32768, %s407, [#allocation9], 256, 256, 16
        $region40: #{stn3d_forward.1} parent=11 // pred_fallthru
          _
        // Predicated region
        $region41: #{stn3d_forward.1} parent=11 // pred_check
          %p413 = pneg %p231
        $region42: #{stn3d_forward.1} parent=11 // pred_check_branch
          %415 = sbr.rel (%p413) target = $region44
        $region43: #{stn3d_forward.1} parent=11 // pred_region
          %s417 = ssub.s32 64, 64
          %418 = vsyncadd [#allocation9], %s417
          %s420 = sshll.u32 [#allocation10], 4
          %s421 = int_to_ptr.vmem [resolvable:$true] %s420
          %423 = dma.hbm_to_vmem [thread:$0]  %s8, 64, %s421, [#allocation9]
        $region44: #{stn3d_forward.1} parent=11 // pred_fallthru
          _
        // Predicated region
        $region45: #{stn3d_forward.1} parent=11 // pred_check
          %p424 = pneg %p252
        $region46: #{stn3d_forward.1} parent=11 // pred_check_branch
          %426 = sbr.rel (%p424) target = $region48
        $region47: #{stn3d_forward.1} parent=11 // pred_region
          _
        $region48: #{stn3d_forward.1} parent=11 // pred_fallthru
          _
        // Predicated region
        $region49: #{stn3d_forward.1} parent=11 // pred_check
          %p427 = pneg %p273
        $region50: #{stn3d_forward.1} parent=11 // pred_check_branch
          %429 = sbr.rel (%p427) target = $region52
        $region51: #{stn3d_forward.1} parent=11 // pred_region
          %s431 = ssub.s32 32, 32
          %432 = vsyncadd [#allocation12], %s431
          %s434 = sshll.u32 [#allocation11], 4
          %s435 = int_to_ptr.vmem [resolvable:$true] %s434
          %437 = dma.hbm_to_vmem [thread:$0]  %s10, 32, %s435, [#allocation12]
        $region52: #{stn3d_forward.1} parent=11 // pred_fallthru
          _
        // Predicated region
        $region53: #{stn3d_forward.1} parent=11 // pred_check
          %p438 = pneg %p294
        $region54: #{stn3d_forward.1} parent=11 // pred_check_branch
          %440 = sbr.rel (%p438) target = $region56
        $region55: #{stn3d_forward.1} parent=11 // pred_region
          _
        $region56: #{stn3d_forward.1} parent=11 // pred_fallthru
          _
        // Predicated region
        $region57: #{stn3d_forward.1} parent=11 // pred_check
          %p441 = pneg %p315
        $region58: #{stn3d_forward.1} parent=11 // pred_check_branch
          %443 = sbr.rel (%p441) target = $region60
        $region59: #{stn3d_forward.1} parent=11 // pred_region
          _
        $region60: #{stn3d_forward.1} parent=11 // pred_fallthru
          _
      $region12: #{stn3d_forward.1} parent=5 // pred_fallthru
        _
      %p444 = scmp.lt.s32.totalorder %s23, 8
      // Predicated region
      $region61: #{stn3d_forward.1} parent=5 // pred_check
        %p445 = pneg %p444
      $region62: #{stn3d_forward.1} parent=5 // pred_check_branch
        %447 = sbr.rel (%p445) target = $region64
      $region63: #{stn3d_forward.1} parent=5 // pred_region
        // Predicated region
        $region65: #{stn3d_forward.1} parent=63 // pred_check
          %p448 = pneg %p57
        $region66: #{stn3d_forward.1} parent=63 // pred_check_branch
          %450 = sbr.rel (%p448) target = $region68
        $region67: #{stn3d_forward.1} parent=63 // pred_region
          %s451 = smul.u32 16, %s31
          %p452 = scmp.lt.s32.totalorder %s30, 1
          %s453 = scalar_select %p452, %s30, 1
          %p454 = scmp.lt.s32.totalorder %s451, 63
          %s455 = scalar_select %p454, %s451, 63
          %s456 = smul.addr %s453, 64
          %s457 = sadd.s32 %s455, %s456
          %s458 = smul.addr %s457, 8
          %s459 = scalar_lea.vmem %s0, %s458
          %s460 = smul.u32 16, %s31
        $region68: #{stn3d_forward.1} parent=63 // pred_fallthru
          _
      $region64: #{stn3d_forward.1} parent=5 // pred_fallthru
        _
      %p461 = scmp.le.s32.totalorder 1, %s23
      %p462 = scmp.lt.s32.totalorder %s23, 9
      %p463 = pnand %p461, %p462
      %p464 = pneg %p463
      // Predicated region
      $region69: #{stn3d_forward.1} parent=5 // pred_check
        _
      $region70: #{stn3d_forward.1} parent=5 // pred_check_branch
        %466 = sbr.rel (%p463) target = $region72
      $region71: #{stn3d_forward.1} parent=5 // pred_region
        %s467 = ssub.s32 %s23, 1
        // Predicated region
        $region73: #{stn3d_forward.1} parent=71 // pred_check
          %p468 = pneg %p84
        $region74: #{stn3d_forward.1} parent=71 // pred_check_branch
          %470 = sbr.rel (%p468) target = $region76
        $region75: #{stn3d_forward.1} parent=71 // pred_region
          %471 = dma.done [#allocation4], 32
        $region76: #{stn3d_forward.1} parent=71 // pred_fallthru
          _
        // Predicated region
        $region77: #{stn3d_forward.1} parent=71 // pred_check
          %p472 = pneg %p126
        $region78: #{stn3d_forward.1} parent=71 // pred_check_branch
          %474 = sbr.rel (%p472) target = $region80
        $region79: #{stn3d_forward.1} parent=71 // pred_region
          %475 = dma.done [#allocation6], 512
        $region80: #{stn3d_forward.1} parent=71 // pred_fallthru
          _
        // Predicated region
        $region81: #{stn3d_forward.1} parent=71 // pred_check
          %p476 = pneg %p147
        $region82: #{stn3d_forward.1} parent=71 // pred_check_branch
          %478 = sbr.rel (%p476) target = $region84
        $region83: #{stn3d_forward.1} parent=71 // pred_region
          %479 = dma.done [#allocation6], 16
        $region84: #{stn3d_forward.1} parent=71 // pred_fallthru
          _
        // Predicated region
        $region85: #{stn3d_forward.1} parent=71 // pred_check
          %p480 = pneg %p210
        $region86: #{stn3d_forward.1} parent=71 // pred_check_branch
          %482 = sbr.rel (%p480) target = $region88
        $region87: #{stn3d_forward.1} parent=71 // pred_region
          %483 = dma.done [#allocation9], 32768
        $region88: #{stn3d_forward.1} parent=71 // pred_fallthru
          _
        // Predicated region
        $region89: #{stn3d_forward.1} parent=71 // pred_check
          %p484 = pneg %p231
        $region90: #{stn3d_forward.1} parent=71 // pred_check_branch
          %486 = sbr.rel (%p484) target = $region92
        $region91: #{stn3d_forward.1} parent=71 // pred_region
          %487 = dma.done [#allocation9], 64
        $region92: #{stn3d_forward.1} parent=71 // pred_fallthru
          _
        // Predicated region
        $region93: #{stn3d_forward.1} parent=71 // pred_check
          %p488 = pneg %p273
        $region94: #{stn3d_forward.1} parent=71 // pred_check_branch
          %490 = sbr.rel (%p488) target = $region96
        $region95: #{stn3d_forward.1} parent=71 // pred_region
          %491 = dma.done [#allocation12], 32
        $region96: #{stn3d_forward.1} parent=71 // pred_fallthru
          _
        %s492 = smul.u32 16, %s33
        %p493 = scmp.lt.s32.totalorder %s32, 1
        %s494 = scalar_select %p493, %s32, 1
        %p495 = scmp.lt.s32.totalorder %s492, 63
        %s496 = scalar_select %p495, %s492, 63
        %s497 = smul.addr %s494, 64
        %s498 = sadd.s32 %s496, %s497
        %s499 = smul.addr %s498, 8
        %s500 = scalar_lea.vmem %s0, %s499
        %p501 = pneg %p63
        %p502 = pneg %p60
        %p503 = pneg %p84
        %p504 = pneg %p81
        %p505 = pneg %p105
        %p506 = pneg %p102
        %p507 = pneg %p126
        %p508 = pneg %p123
        %p509 = pneg %p147
        %p510 = pneg %p144
        %p511 = pneg %p168
        %p512 = pneg %p165
        %p513 = pneg %p189
        %p514 = pneg %p186
        %p515 = pneg %p210
        %p516 = pneg %p207
        %p517 = pneg %p231
        %p518 = pneg %p228
        %p519 = pneg %p252
        %p520 = pneg %p249
        %p521 = pneg %p273
        %p522 = pneg %p270
        %p523 = pneg %p294
        %p524 = pneg %p291
        %p525 = pneg %p315
        %p526 = pneg %p312
        %p527 = pneg %p341
        %p528 = pneg %p338
        %p529 = scmp.lt.s32.totalorder %s32, 1
        %s530 = scalar_select %p529, %s32, 1
        %s531 = scalar_lea.vmem %s13, %s530
        %s532 = smul.u32 16, %s33
        %p533 = scmp.lt.s32.totalorder %s32, 1
        %s534 = scalar_select %p533, %s32, 1
        %p535 = scmp.lt.s32.totalorder %s532, 63
        %s536 = scalar_select %p535, %s532, 63
        %s537 = smul.addr %s534, 64
        %s538 = sadd.s32 %s536, %s537
        %s539 = smul.addr %s538, 8
        %s540 = scalar_lea.vmem %s0, %s539
        %s541 = smul.u32 16, %s33
        %p542 = scmp.lt.s32.totalorder %s32, 1
        %s543 = scalar_select %p542, %s32, 1
        %s544 = scalar_lea.vmem %s13, %s543
        %p546 = scmp.eq.s32.totalorder %s33, 0
        // Predicated region
        $region97: #{stn3d_forward.1} parent=71 // pred_check
          %p547 = pneg %p546
        $region98: #{stn3d_forward.1} parent=71 // pred_check_branch
          %549 = sbr.rel (%p547) target = $region100
        $region99: #{stn3d_forward.1} parent=71 // pred_region
          %550 = vst [vmem:[#allocation2] sm:$0xff] -inf
        $region100: #{stn3d_forward.1} parent=71 // pred_fallthru
          _
        %v551 = vld [vmem:[%s540] sm:$0xff]
        %v552 = vld [vmem:[%s540 + $0x8] sm:$0xff]
        %v553 = vld [vmem:[%s540 + $0x10] sm:$0xff]
        %v554 = vld [vmem:[%s540 + $0x18] sm:$0xff]
        %v555 = vld [vmem:[%s540 + $0x20] sm:$0xff]
        %v556 = vld [vmem:[%s540 + $0x28] sm:$0xff]
        %v557 = vld [vmem:[%s540 + $0x30] sm:$0xff]
        %v558 = vld [vmem:[%s540 + $0x38] sm:$0xff]
        %v559 = vld [vmem:[%s540 + $0x40] sm:$0xff]
        %v560 = vld [vmem:[%s540 + $0x48] sm:$0xff]
        %v561 = vld [vmem:[%s540 + $0x50] sm:$0xff]
        %v562 = vld [vmem:[%s540 + $0x58] sm:$0xff]
        %v563 = vld [vmem:[%s540 + $0x60] sm:$0xff]
        %v564 = vld [vmem:[%s540 + $0x68] sm:$0xff]
        %v565 = vld [vmem:[%s540 + $0x70] sm:$0xff]
        %v566 = vld [vmem:[%s540 + $0x78] sm:$0xff]
        %v567 = vpack.c.bf16 %v552, %v551
        %v568 = vpack.c.bf16 %v554, %v553
        %v569 = vpack.c.bf16 %v556, %v555
        %v570 = vpack.c.bf16 %v558, %v557
        %v571 = vpack.c.bf16 %v560, %v559
        %v572 = vpack.c.bf16 %v562, %v561
        %v573 = vpack.c.bf16 %v564, %v563
        %v574 = vpack.c.bf16 %v566, %v565
        %v575 = vld [vmem:[#allocation3] sm:$0x3]
        %v576 = vld [vmem:[%s2] sm:$0x1]
        %v578 = vlaneseq
        %v579 = vshrl.u32 %v578, 7
        %v580 = vsub.s32 0, %v579
        %v581 = vrot.slane %v576, %v580
        %vm583 = vcmask 23552
        %v585 = vsel %vm583, %v567, 0
        %v588 = vsel %vm583, %v568, 0
        %v591 = vsel %vm583, %v569, 0
        %v594 = vsel %vm583, %v570, 0
        %v597 = vsel %vm583, %v571, 0
        %v600 = vsel %vm583, %v572, 0
        %v603 = vsel %vm583, %v573, 0
        %v606 = vsel %vm583, %v574, 0
        %vm608 = vcmask 1040384
        %vm609 = vcmask 1041408
        %v610 = vsel %vm608, 4294967295, 65535
        %v611 = vsel %vm609, %v610, 0
        %v613 = vand.u32 %v575, %v611
        %615 = vmatprep.subr.bf16.mxu0 0
        %616 = vmatpush1.bf16.msra.mxu0 0
        %617 = vmatprep.subr.bf16.mxu0 0
        %618 = vmatpush1.bf16.msra.mxu0 0
        %619 = vmatprep.subr.bf16.mxu0 0
        %620 = vmatpush1.bf16.msra.mxu0 0
        %621 = vmatprep.subr.bf16.mxu0 0
        %622 = vmatpush1.bf16.msra.mxu0 0
        %623 = vmatprep.subr.bf16.mxu0 0
        %624 = vmatpush1.bf16.msra.mxu0 0
        %625 = vmatprep.subr.bf16.mxu0 0
        %626 = vmatpush1.bf16.msra.mxu0 0
        %627 = vmatprep.subr.bf16.mxu0 0
        %628 = vmatpush1.bf16.msra.mxu0 0
        %629 = vmatprep.subr.bf16.mxu0 0
        %630 = vmatpush1.bf16.msra.mxu0 %v613
        %631 = vmatprep.subr.bf16.mxu0 0
        %632 = vmatpush2.bf16.msra.mxu0 0
        %633 = vmatprep.subr.bf16.mxu0 0
        %634 = vmatpush2.bf16.msra.mxu0 0
        %635 = vmatprep.subr.bf16.mxu0 0
        %636 = vmatpush2.bf16.msra.mxu0 0
        %637 = vmatprep.subr.bf16.mxu0 0
        %638 = vmatpush2.bf16.msra.mxu0 0
        %639 = vmatprep.subr.bf16.mxu0 0
        %640 = vmatpush2.bf16.msra.mxu0 0
        %641 = vmatprep.subr.bf16.mxu0 0
        %642 = vmatpush2.bf16.msra.mxu0 0
        %643 = vmatprep.subr.bf16.mxu0 0
        %644 = vmatpush2.bf16.msra.mxu0 0
        %645 = vmatprep.subr.bf16.mxu0 0
        %646 = vmatpush2.bf16.msra.mxu0 0
        %647 = vmatprep.mubr.bf16.mxu0 0
        %648 = vmatmul.mubr.bf16.gmra.mxu0 %v585
        %v649 = vpop.f32.mrf.mxu0
        %v650 = vadd.f32 %v581, %v649
        %v651 = vpop.f32.mrf.mxu0
        %v652 = vpop.f32.mrf.mxu0
        %v653 = vadd.f32 %v581, %v652
        %v654 = vpop.f32.mrf.mxu0
        %655 = vmatprep.mubr.bf16.mxu0 0
        %656 = vmatmul.mubr.bf16.gmra.mxu0 %v588
        %v657 = vpop.f32.mrf.mxu0
        %v658 = vadd.f32 %v581, %v657
        %v659 = vpop.f32.mrf.mxu0
        %v660 = vpop.f32.mrf.mxu0
        %v661 = vadd.f32 %v581, %v660
        %v662 = vpop.f32.mrf.mxu0
        %663 = vmatprep.mubr.bf16.mxu0 0
        %664 = vmatmul.mubr.bf16.gmra.mxu0 %v591
        %v665 = vpop.f32.mrf.mxu0
        %v666 = vadd.f32 %v581, %v665
        %v667 = vpop.f32.mrf.mxu0
        %v668 = vpop.f32.mrf.mxu0
        %v669 = vadd.f32 %v581, %v668
        %v670 = vpop.f32.mrf.mxu0
        %671 = vmatprep.mubr.bf16.mxu0 0
        %672 = vmatmul.mubr.bf16.gmra.mxu0 %v594
        %v673 = vpop.f32.mrf.mxu0
        %v674 = vadd.f32 %v581, %v673
        %v675 = vpop.f32.mrf.mxu0
        %v676 = vpop.f32.mrf.mxu0
        %v677 = vadd.f32 %v581, %v676
        %v678 = vpop.f32.mrf.mxu0
        %679 = vmatprep.mubr.bf16.mxu0 0
        %680 = vmatmul.mubr.bf16.gmra.mxu0 %v597
        %v681 = vpop.f32.mrf.mxu0
        %v682 = vadd.f32 %v581, %v681
        %v683 = vpop.f32.mrf.mxu0
        %v684 = vpop.f32.mrf.mxu0
        %v685 = vadd.f32 %v581, %v684
        %v686 = vpop.f32.mrf.mxu0
        %687 = vmatprep.mubr.bf16.mxu0 0
        %688 = vmatmul.mubr.bf16.gmra.mxu0 %v600
        %v689 = vpop.f32.mrf.mxu0
        %v690 = vadd.f32 %v581, %v689
        %v691 = vpop.f32.mrf.mxu0
        %v692 = vpop.f32.mrf.mxu0
        %v693 = vadd.f32 %v581, %v692
        %v694 = vpop.f32.mrf.mxu0
        %695 = vmatprep.mubr.bf16.mxu0 0
        %696 = vmatmul.mubr.bf16.gmra.mxu0 %v603
        %v697 = vpop.f32.mrf.mxu0
        %v698 = vadd.f32 %v581, %v697
        %v699 = vpop.f32.mrf.mxu0
        %v700 = vpop.f32.mrf.mxu0
        %v701 = vadd.f32 %v581, %v700
        %v702 = vpop.f32.mrf.mxu0
        %703 = vmatprep.mubr.bf16.mxu0 0
        %704 = vmatmul.mubr.bf16.gmra.mxu0 %v606
        %v705 = vpop.f32.mrf.mxu0
        %v706 = vadd.f32 %v581, %v705
        %v707 = vpop.f32.mrf.mxu0
        %v708 = vpop.f32.mrf.mxu0
        %v709 = vadd.f32 %v581, %v708
        %v710 = vpop.f32.mrf.mxu0
        %711 = vdwg.mxu0
        %v712 = vmax.f32 %v650, 0.0
        %v713 = vmax.f32 %v653, 0.0
        %v714 = vmax.f32 %v658, 0.0
        %v715 = vmax.f32 %v661, 0.0
        %v716 = vmax.f32 %v666, 0.0
        %v717 = vmax.f32 %v669, 0.0
        %v718 = vmax.f32 %v674, 0.0
        %v719 = vmax.f32 %v677, 0.0
        %v720 = vmax.f32 %v682, 0.0
        %v721 = vmax.f32 %v685, 0.0
        %v722 = vmax.f32 %v690, 0.0
        %v723 = vmax.f32 %v693, 0.0
        %v724 = vmax.f32 %v698, 0.0
        %v725 = vmax.f32 %v701, 0.0
        %v726 = vmax.f32 %v706, 0.0
        %v727 = vmax.f32 %v709, 0.0
        %v728 = vpack.c.bf16 %v713, %v712
        %v729 = vpack.c.bf16 %v715, %v714
        %v730 = vpack.c.bf16 %v717, %v716
        %v731 = vpack.c.bf16 %v719, %v718
        %v732 = vpack.c.bf16 %v721, %v720
        %v733 = vpack.c.bf16 %v723, %v722
        %v734 = vpack.c.bf16 %v725, %v724
        %v735 = vpack.c.bf16 %v727, %v726
        %v736 = vld [vmem:[#allocation5] sm:$0xf]
        %v737 = vld [vmem:[#allocation5 + $0x4] sm:$0xf]
        %v738 = vld [vmem:[#allocation5 + $0x8] sm:$0xf]
        %v739 = vld [vmem:[#allocation5 + $0xc] sm:$0xf]
        %v740 = vld [vmem:[#allocation5 + $0x10] sm:$0xf]
        %v741 = vld [vmem:[#allocation5 + $0x14] sm:$0xf]
        %v742 = vld [vmem:[#allocation5 + $0x18] sm:$0xf]
        %v743 = vld [vmem:[#allocation5 + $0x1c] sm:$0xf]
        %v744 = vld [vmem:[#allocation7] sm:$0x1]
        %v746 = vlaneseq
        %v747 = vshrl.u32 %v746, 7
        %v748 = vsub.s32 0, %v747
        %v749 = vrot.slane %v744, %v748
        %v759 = vunpack.c.l.b16 %v736
        %v760 = vunpack.c.l.b16 %v737
        %v761 = vunpack.c.l.b16 %v738
        %v762 = vunpack.c.l.b16 %v739
        %v763 = vunpack.c.l.b16 %v740
        %v764 = vunpack.c.l.b16 %v741
        %v765 = vunpack.c.l.b16 %v742
        %v766 = vunpack.c.l.b16 %v743
        %v767 = vpack.c.b16 %v760, %v759
        %v768 = vpack.c.b16 %v762, %v761
        %v769 = vpack.c.b16 %v764, %v763
        %v770 = vpack.c.b16 %v766, %v765
        %vm775 = vcmask 523264
        %v777 = vsel %vm775, %v728, 0
        %v780 = vsel %vm775, %v729, 0
        %v783 = vsel %vm775, %v730, 0
        %v786 = vsel %vm775, %v731, 0
        %v789 = vsel %vm775, %v732, 0
        %v792 = vsel %vm775, %v733, 0
        %v795 = vsel %vm775, %v734, 0
        %v798 = vsel %vm775, %v735, 0
        %800 = vmatprep.subr.bf16.mxu0 0
        %801 = vmatpush1.bf16.msra.mxu0 0
        %802 = vmatprep.subr.bf16.mxu0 0
        %803 = vmatpush1.bf16.msra.mxu0 0
        %804 = vmatprep.subr.bf16.mxu0 0
        %805 = vmatpush1.bf16.msra.mxu0 0
        %806 = vmatprep.subr.bf16.mxu0 0
        %807 = vmatpush1.bf16.msra.mxu0 0
        %808 = vmatprep.subr.bf16.mxu0 0
        %809 = vmatpush1.bf16.msra.mxu0 %v770
        %810 = vmatprep.subr.bf16.mxu0 0
        %811 = vmatpush1.bf16.msra.mxu0 %v769
        %812 = vmatprep.subr.bf16.mxu0 0
        %813 = vmatpush1.bf16.msra.mxu0 %v768
        %814 = vmatprep.subr.bf16.mxu0 0
        %815 = vmatpush1.bf16.msra.mxu0 %v767
        %816 = vmatprep.subr.bf16.mxu0 0
        %817 = vmatpush2.bf16.msra.mxu0 0
        %818 = vmatprep.subr.bf16.mxu0 0
        %819 = vmatpush2.bf16.msra.mxu0 0
        %820 = vmatprep.subr.bf16.mxu0 0
        %821 = vmatpush2.bf16.msra.mxu0 0
        %822 = vmatprep.subr.bf16.mxu0 0
        %823 = vmatpush2.bf16.msra.mxu0 0
        %824 = vmatprep.subr.bf16.mxu0 0
        %825 = vmatpush2.bf16.msra.mxu0 0
        %826 = vmatprep.subr.bf16.mxu0 0
        %827 = vmatpush2.bf16.msra.mxu0 0
        %828 = vmatprep.subr.bf16.mxu0 0
        %829 = vmatpush2.bf16.msra.mxu0 0
        %830 = vmatprep.subr.bf16.mxu0 0
        %831 = vmatpush2.bf16.msra.mxu0 0
        %832 = vmatprep.mubr.bf16.mxu0 0
        %833 = vmatmul.mubr.bf16.gmra.mxu0 %v777
        %v834 = vpop.f32.mrf.mxu0
        %v835 = vadd.f32 %v749, %v834
        %v836 = vpop.f32.mrf.mxu0
        %v837 = vpop.f32.mrf.mxu0
        %v838 = vadd.f32 %v749, %v837
        %v839 = vpop.f32.mrf.mxu0
        %840 = vmatprep.mubr.bf16.mxu0 0
        %841 = vmatmul.mubr.bf16.gmra.mxu0 %v780
        %v842 = vpop.f32.mrf.mxu0
        %v843 = vadd.f32 %v749, %v842
        %v844 = vpop.f32.mrf.mxu0
        %v845 = vpop.f32.mrf.mxu0
        %v846 = vadd.f32 %v749, %v845
        %v847 = vpop.f32.mrf.mxu0
        %848 = vmatprep.mubr.bf16.mxu0 0
        %849 = vmatmul.mubr.bf16.gmra.mxu0 %v783
        %v850 = vpop.f32.mrf.mxu0
        %v851 = vadd.f32 %v749, %v850
        %v852 = vpop.f32.mrf.mxu0
        %v853 = vpop.f32.mrf.mxu0
        %v854 = vadd.f32 %v749, %v853
        %v855 = vpop.f32.mrf.mxu0
        %856 = vmatprep.mubr.bf16.mxu0 0
        %857 = vmatmul.mubr.bf16.gmra.mxu0 %v786
        %v858 = vpop.f32.mrf.mxu0
        %v859 = vadd.f32 %v749, %v858
        %v860 = vpop.f32.mrf.mxu0
        %v861 = vpop.f32.mrf.mxu0
        %v862 = vadd.f32 %v749, %v861
        %v863 = vpop.f32.mrf.mxu0
        %864 = vmatprep.mubr.bf16.mxu0 0
        %865 = vmatmul.mubr.bf16.gmra.mxu0 %v789
        %v866 = vpop.f32.mrf.mxu0
        %v867 = vadd.f32 %v749, %v866
        %v868 = vpop.f32.mrf.mxu0
        %v869 = vpop.f32.mrf.mxu0
        %v870 = vadd.f32 %v749, %v869
        %v871 = vpop.f32.mrf.mxu0
        %872 = vmatprep.mubr.bf16.mxu0 0
        %873 = vmatmul.mubr.bf16.gmra.mxu0 %v792
        %v874 = vpop.f32.mrf.mxu0
        %v875 = vadd.f32 %v749, %v874
        %v876 = vpop.f32.mrf.mxu0
        %v877 = vpop.f32.mrf.mxu0
        %v878 = vadd.f32 %v749, %v877
        %v879 = vpop.f32.mrf.mxu0
        %880 = vmatprep.mubr.bf16.mxu0 0
        %881 = vmatmul.mubr.bf16.gmra.mxu0 %v795
        %v882 = vpop.f32.mrf.mxu0
        %v883 = vadd.f32 %v749, %v882
        %v884 = vpop.f32.mrf.mxu0
        %v885 = vpop.f32.mrf.mxu0
        %v886 = vadd.f32 %v749, %v885
        %v887 = vpop.f32.mrf.mxu0
        %888 = vmatprep.mubr.bf16.mxu0 0
        %889 = vmatmul.mubr.bf16.gmra.mxu0 %v798
        %v890 = vpop.f32.mrf.mxu0
        %v891 = vadd.f32 %v749, %v890
        %v892 = vpop.f32.mrf.mxu0
        %v893 = vpop.f32.mrf.mxu0
        %v894 = vadd.f32 %v749, %v893
        %v895 = vpop.f32.mrf.mxu0
        %896 = vdwg.mxu0
        %v897 = vmax.f32 %v835, 0.0
        %v898 = vmax.f32 %v838, 0.0
        %v899 = vmax.f32 %v843, 0.0
        %v900 = vmax.f32 %v846, 0.0
        %v901 = vmax.f32 %v851, 0.0
        %v902 = vmax.f32 %v854, 0.0
        %v903 = vmax.f32 %v859, 0.0
        %v904 = vmax.f32 %v862, 0.0
        %v905 = vmax.f32 %v867, 0.0
        %v906 = vmax.f32 %v870, 0.0
        %v907 = vmax.f32 %v875, 0.0
        %v908 = vmax.f32 %v878, 0.0
        %v909 = vmax.f32 %v883, 0.0
        %v910 = vmax.f32 %v886, 0.0
        %v911 = vmax.f32 %v891, 0.0
        %v912 = vmax.f32 %v894, 0.0
        %v913 = vpack.c.bf16 %v898, %v897
        %v914 = vpack.c.bf16 %v900, %v899
        %v915 = vpack.c.bf16 %v902, %v901
        %v916 = vpack.c.bf16 %v904, %v903
        %v917 = vpack.c.bf16 %v906, %v905
        %v918 = vpack.c.bf16 %v908, %v907
        %v919 = vpack.c.bf16 %v910, %v909
        %v920 = vpack.c.bf16 %v912, %v911
        %v921 = vld [vmem:[%s5] sm:$0xff]
        %v922 = vld [vmem:[%s5 + $0x20] sm:$0xff]
        %v923 = vld [vmem:[%s5 + $0x40] sm:$0xff]
        %v924 = vld [vmem:[%s5 + $0x60] sm:$0xff]
        %v925 = vld [vmem:[%s5 + $0x80] sm:$0xff]
        %v926 = vld [vmem:[%s5 + $0xa0] sm:$0xff]
        %v927 = vld [vmem:[%s5 + $0xc0] sm:$0xff]
        %v928 = vld [vmem:[%s5 + $0xe0] sm:$0xff]
        %v929 = vld [vmem:[%s5 + $0x100] sm:$0xff]
        %v930 = vld [vmem:[%s5 + $0x120] sm:$0xff]
        %v931 = vld [vmem:[%s5 + $0x140] sm:$0xff]
        %v932 = vld [vmem:[%s5 + $0x160] sm:$0xff]
        %v933 = vld [vmem:[%s5 + $0x180] sm:$0xff]
        %v934 = vld [vmem:[%s5 + $0x1a0] sm:$0xff]
        %v935 = vld [vmem:[%s5 + $0x1c0] sm:$0xff]
        %v936 = vld [vmem:[%s5 + $0x1e0] sm:$0xff]
        %v953 = vunpack.c.l.b16 %v921
        %v954 = vunpack.c.h.b16 %v921
        %v955 = vunpack.c.l.b16 %v922
        %v956 = vunpack.c.h.b16 %v922
        %v957 = vunpack.c.l.b16 %v923
        %v958 = vunpack.c.h.b16 %v923
        %v959 = vunpack.c.l.b16 %v924
        %v960 = vunpack.c.h.b16 %v924
        %v961 = vunpack.c.l.b16 %v925
        %v962 = vunpack.c.h.b16 %v925
        %v963 = vunpack.c.l.b16 %v926
        %v964 = vunpack.c.h.b16 %v926
        %v965 = vunpack.c.l.b16 %v927
        %v966 = vunpack.c.h.b16 %v927
        %v967 = vunpack.c.l.b16 %v928
        %v968 = vunpack.c.h.b16 %v928
        %v969 = vunpack.c.l.b16 %v929
        %v970 = vunpack.c.h.b16 %v929
        %v971 = vunpack.c.l.b16 %v930
        %v972 = vunpack.c.h.b16 %v930
        %v973 = vunpack.c.l.b16 %v931
        %v974 = vunpack.c.h.b16 %v931
        %v975 = vunpack.c.l.b16 %v932
        %v976 = vunpack.c.h.b16 %v932
        %v977 = vunpack.c.l.b16 %v933
        %v978 = vunpack.c.h.b16 %v933
        %v979 = vunpack.c.l.b16 %v934
        %v980 = vunpack.c.h.b16 %v934
        %v981 = vunpack.c.l.b16 %v935
        %v982 = vunpack.c.h.b16 %v935
        %v983 = vunpack.c.l.b16 %v936
        %v984 = vunpack.c.h.b16 %v936
        %v985 = vpack.c.b16 %v955, %v953
        %v986 = vpack.c.b16 %v956, %v954
        %v987 = vpack.c.b16 %v959, %v957
        %v988 = vpack.c.b16 %v960, %v958
        %v989 = vpack.c.b16 %v963, %v961
        %v990 = vpack.c.b16 %v964, %v962
        %v991 = vpack.c.b16 %v967, %v965
        %v992 = vpack.c.b16 %v968, %v966
        %v993 = vpack.c.b16 %v971, %v969
        %v994 = vpack.c.b16 %v972, %v970
        %v995 = vpack.c.b16 %v975, %v973
        %v996 = vpack.c.b16 %v976, %v974
        %v997 = vpack.c.b16 %v979, %v977
        %v998 = vpack.c.b16 %v980, %v978
        %v999 = vpack.c.b16 %v983, %v981
        %v1000 = vpack.c.b16 %v984, %v982
        %1017 = vmatprep.subr.bf16.mxu0 %v1000
        %1018 = vmatpush1.bf16.msra.mxu0 %v999
        %1019 = vmatprep.subr.bf16.mxu0 %v998
        %1020 = vmatpush1.bf16.msra.mxu0 %v997
        %1021 = vmatprep.subr.bf16.mxu0 %v996
        %1022 = vmatpush1.bf16.msra.mxu0 %v995
        %1023 = vmatprep.subr.bf16.mxu0 %v994
        %1024 = vmatpush1.bf16.msra.mxu0 %v993
        %1025 = vmatprep.subr.bf16.mxu0 %v992
        %1026 = vmatpush1.bf16.msra.mxu0 %v991
        %1027 = vmatprep.subr.bf16.mxu0 %v990
        %1028 = vmatpush1.bf16.msra.mxu0 %v989
        %1029 = vmatprep.subr.bf16.mxu0 %v988
        %1030 = vmatpush1.bf16.msra.mxu0 %v987
        %1031 = vmatprep.subr.bf16.mxu0 %v986
        %1032 = vmatpush1.bf16.msra.mxu0 %v985
        %1033 = vmatprep.subr.bf16.mxu0 0
        %1034 = vmatpush2.bf16.msra.mxu0 0
        %1035 = vmatprep.subr.bf16.mxu0 0
        %1036 = vmatpush2.bf16.msra.mxu0 0
        %1037 = vmatprep.subr.bf16.mxu0 0
        %1038 = vmatpush2.bf16.msra.mxu0 0
        %1039 = vmatprep.subr.bf16.mxu0 0
        %1040 = vmatpush2.bf16.msra.mxu0 0
        %1041 = vmatprep.subr.bf16.mxu0 0
        %1042 = vmatpush2.bf16.msra.mxu0 0
        %1043 = vmatprep.subr.bf16.mxu0 0
        %1044 = vmatpush2.bf16.msra.mxu0 0
        %1045 = vmatprep.subr.bf16.mxu0 0
        %1046 = vmatpush2.bf16.msra.mxu0 0
        %1047 = vmatprep.subr.bf16.mxu0 0
        %1048 = vmatpush2.bf16.msra.mxu0 0
        %1049 = vmatprep.mubr.bf16.mxu0 0
        %1050 = vmatmul.mubr.bf16.gmra.mxu0 %v913
        %v1051 = vpop.f32.mrf.mxu0
        %v1052 = vadd.f32 0.0, %v1051
        %v1053 = vpop.f32.mrf.mxu0
        %v1054 = vadd.f32 0.0, %v1053
        %v1055 = vpop.f32.mrf.mxu0
        %v1056 = vadd.f32 0.0, %v1055
        %v1057 = vpop.f32.mrf.mxu0
        %v1058 = vadd.f32 0.0, %v1057
        %1059 = vmatprep.mubr.bf16.mxu0 0
        %1060 = vmatmul.mubr.bf16.gmra.mxu0 %v914
        %v1061 = vpop.f32.mrf.mxu0
        %v1062 = vadd.f32 0.0, %v1061
        %v1063 = vpop.f32.mrf.mxu0
        %v1064 = vadd.f32 0.0, %v1063
        %v1065 = vpop.f32.mrf.mxu0
        %v1066 = vadd.f32 0.0, %v1065
        %v1067 = vpop.f32.mrf.mxu0
        %v1068 = vadd.f32 0.0, %v1067
        %1069 = vmatprep.mubr.bf16.mxu0 0
        %1070 = vmatmul.mubr.bf16.gmra.mxu0 %v915
        %v1071 = vpop.f32.mrf.mxu0
        %v1072 = vadd.f32 0.0, %v1071
        %v1073 = vpop.f32.mrf.mxu0
        %v1074 = vadd.f32 0.0, %v1073
        %v1075 = vpop.f32.mrf.mxu0
        %v1076 = vadd.f32 0.0, %v1075
        %v1077 = vpop.f32.mrf.mxu0
        %v1078 = vadd.f32 0.0, %v1077
        %1079 = vmatprep.mubr.bf16.mxu0 0
        %1080 = vmatmul.mubr.bf16.gmra.mxu0 %v916
        %v1081 = vpop.f32.mrf.mxu0
        %v1082 = vadd.f32 0.0, %v1081
        %v1083 = vpop.f32.mrf.mxu0
        %v1084 = vadd.f32 0.0, %v1083
        %v1085 = vpop.f32.mrf.mxu0
        %v1086 = vadd.f32 0.0, %v1085
        %v1087 = vpop.f32.mrf.mxu0
        %v1088 = vadd.f32 0.0, %v1087
        %1089 = vmatprep.mubr.bf16.mxu0 0
        %1090 = vmatmul.mubr.bf16.gmra.mxu0 %v917
        %v1091 = vpop.f32.mrf.mxu0
        %v1092 = vadd.f32 0.0, %v1091
        %v1093 = vpop.f32.mrf.mxu0
        %v1094 = vadd.f32 0.0, %v1093
        %v1095 = vpop.f32.mrf.mxu0
        %v1096 = vadd.f32 0.0, %v1095
        %v1097 = vpop.f32.mrf.mxu0
        %v1098 = vadd.f32 0.0, %v1097
        %1099 = vmatprep.mubr.bf16.mxu0 0
        %1100 = vmatmul.mubr.bf16.gmra.mxu0 %v918
        %v1101 = vpop.f32.mrf.mxu0
        %v1102 = vadd.f32 0.0, %v1101
        %v1103 = vpop.f32.mrf.mxu0
        %v1104 = vadd.f32 0.0, %v1103
        %v1105 = vpop.f32.mrf.mxu0
        %v1106 = vadd.f32 0.0, %v1105
        %v1107 = vpop.f32.mrf.mxu0
        %v1108 = vadd.f32 0.0, %v1107
        %1109 = vmatprep.mubr.bf16.mxu0 0
        %1110 = vmatmul.mubr.bf16.gmra.mxu0 %v919
        %v1111 = vpop.f32.mrf.mxu0
        %v1112 = vadd.f32 0.0, %v1111
        %v1113 = vpop.f32.mrf.mxu0
        %v1114 = vadd.f32 0.0, %v1113
        %v1115 = vpop.f32.mrf.mxu0
        %v1116 = vadd.f32 0.0, %v1115
        %v1117 = vpop.f32.mrf.mxu0
        %v1118 = vadd.f32 0.0, %v1117
        %1119 = vmatprep.mubr.bf16.mxu0 0
        %1120 = vmatmul.mubr.bf16.gmra.mxu0 %v920
        %v1121 = vpop.f32.mrf.mxu0
        %v1122 = vadd.f32 0.0, %v1121
        %v1123 = vpop.f32.mrf.mxu0
        %v1124 = vadd.f32 0.0, %v1123
        %v1125 = vpop.f32.mrf.mxu0
        %v1126 = vadd.f32 0.0, %v1125
        %v1127 = vpop.f32.mrf.mxu0
        %v1128 = vadd.f32 0.0, %v1127
        %1129 = vdwg.mxu0
        %v1130 = vld [vmem:[#allocation2] sm:$0x3]
        %v1131 = vmax.f32 %v1052, %v1062
        %v1132 = vmax.f32 %v1056, %v1066
        %v1133 = vmax.f32 %v1131, %v1072
        %v1134 = vmax.f32 %v1132, %v1076
        %v1135 = vmax.f32 %v1133, %v1082
        %v1136 = vmax.f32 %v1134, %v1086
        %v1137 = vmax.f32 %v1135, %v1092
        %v1138 = vmax.f32 %v1136, %v1096
        %v1139 = vmax.f32 %v1137, %v1102
        %v1140 = vmax.f32 %v1138, %v1106
        %v1141 = vmax.f32 %v1139, %v1112
        %v1142 = vmax.f32 %v1140, %v1116
        %v1143 = vmax.f32 %v1141, %v1122
        %v1144 = vmax.f32 %v1142, %v1126
        %v1145 = vmax.f32 %v1143, %v1144
        %v1146 = vrot.slane %v1145, 4
        %v1147 = vmax.f32 %v1145, %v1146
        %v1148 = vrot.slane %v1147, 2
        %v1149 = vmax.f32 %v1147, %v1148
        %v1150 = vrot.slane %v1149, 1
        %v1151 = vmax.f32 %v1149, %v1150
        %v1152 = vmax.f32 %v1054, %v1064
        %v1153 = vmax.f32 %v1058, %v1068
        %v1154 = vmax.f32 %v1152, %v1074
        %v1155 = vmax.f32 %v1153, %v1078
        %v1156 = vmax.f32 %v1154, %v1084
        %v1157 = vmax.f32 %v1155, %v1088
        %v1158 = vmax.f32 %v1156, %v1094
        %v1159 = vmax.f32 %v1157, %v1098
        %v1160 = vmax.f32 %v1158, %v1104
        %v1161 = vmax.f32 %v1159, %v1108
        %v1162 = vmax.f32 %v1160, %v1114
        %v1163 = vmax.f32 %v1161, %v1118
        %v1164 = vmax.f32 %v1162, %v1124
        %v1165 = vmax.f32 %v1163, %v1128
        %v1166 = vmax.f32 %v1164, %v1165
        %v1167 = vrot.slane %v1166, 4
        %v1168 = vmax.f32 %v1166, %v1167
        %v1169 = vrot.slane %v1168, 2
        %v1170 = vmax.f32 %v1168, %v1169
        %v1171 = vrot.slane %v1170, 1
        %v1172 = vmax.f32 %v1170, %v1171
        %v1175 = vcombine.low %v1151, %v1172
        %v1177 = vunpack.c.l.s4 1966171168
        %v1178 = vunpack.c.0.s8 %v1177
        %v1179 = vlaneseq
        %v1180 = vshrl.u32 %v1179, 7
        %v1181 = vsub.s32 %v1178, %v1180
        %v1182 = vrot.slane %v1175, %v1181
        %v1184 = vunpack.c.l.s4 1966171168
        %v1185 = vunpack.c.0.s8 %v1184
        %v1186 = vlaneseq
        %v1187 = vshrl.u32 %v1186, 7
        %v1188 = vsub.s32 %v1185, %v1187
        %v1189 = vrot.slane %v1182, %v1188
        %v1191 = vmax.f32 %v1130, %v1189
        %v1192 = vlaneseq
        %vm1193 = vcmp.ge.s32.totalorder %v1192, 0
        %vm1194 = vcmp.lt.s32.totalorder %v1192, 256
        %vm1195 = vmand %vm1193, %vm1194
        %1196 = vst.msk [vmem:[#allocation2] sm:$0x3] %vm1195, %v1191
        %v1197 = vld [vmem:[%s5 + $0x8] sm:$0xff]
        %v1198 = vld [vmem:[%s5 + $0x28] sm:$0xff]
        %v1199 = vld [vmem:[%s5 + $0x48] sm:$0xff]
        %v1200 = vld [vmem:[%s5 + $0x68] sm:$0xff]
        %v1201 = vld [vmem:[%s5 + $0x88] sm:$0xff]
        %v1202 = vld [vmem:[%s5 + $0xa8] sm:$0xff]
        %v1203 = vld [vmem:[%s5 + $0xc8] sm:$0xff]
        %v1204 = vld [vmem:[%s5 + $0xe8] sm:$0xff]
        %v1205 = vld [vmem:[%s5 + $0x108] sm:$0xff]
        %v1206 = vld [vmem:[%s5 + $0x128] sm:$0xff]
        %v1207 = vld [vmem:[%s5 + $0x148] sm:$0xff]
        %v1208 = vld [vmem:[%s5 + $0x168] sm:$0xff]
        %v1209 = vld [vmem:[%s5 + $0x188] sm:$0xff]
        %v1210 = vld [vmem:[%s5 + $0x1a8] sm:$0xff]
        %v1211 = vld [vmem:[%s5 + $0x1c8] sm:$0xff]
        %v1212 = vld [vmem:[%s5 + $0x1e8] sm:$0xff]
        %v1229 = vunpack.c.l.b16 %v1197
        %v1230 = vunpack.c.h.b16 %v1197
        %v1231 = vunpack.c.l.b16 %v1198
        %v1232 = vunpack.c.h.b16 %v1198
        %v1233 = vunpack.c.l.b16 %v1199
        %v1234 = vunpack.c.h.b16 %v1199
        %v1235 = vunpack.c.l.b16 %v1200
        %v1236 = vunpack.c.h.b16 %v1200
        %v1237 = vunpack.c.l.b16 %v1201
        %v1238 = vunpack.c.h.b16 %v1201
        %v1239 = vunpack.c.l.b16 %v1202
        %v1240 = vunpack.c.h.b16 %v1202
        %v1241 = vunpack.c.l.b16 %v1203
        %v1242 = vunpack.c.h.b16 %v1203
        %v1243 = vunpack.c.l.b16 %v1204
        %v1244 = vunpack.c.h.b16 %v1204
        %v1245 = vunpack.c.l.b16 %v1205
        %v1246 = vunpack.c.h.b16 %v1205
        %v1247 = vunpack.c.l.b16 %v1206
        %v1248 = vunpack.c.h.b16 %v1206
        %v1249 = vunpack.c.l.b16 %v1207
        %v1250 = vunpack.c.h.b16 %v1207
        %v1251 = vunpack.c.l.b16 %v1208
        %v1252 = vunpack.c.h.b16 %v1208
        %v1253 = vunpack.c.l.b16 %v1209
        %v1254 = vunpack.c.h.b16 %v1209
        %v1255 = vunpack.c.l.b16 %v1210
        %v1256 = vunpack.c.h.b16 %v1210
        %v1257 = vunpack.c.l.b16 %v1211
        %v1258 = vunpack.c.h.b16 %v1211
        %v1259 = vunpack.c.l.b16 %v1212
        %v1260 = vunpack.c.h.b16 %v1212
        %v1261 = vpack.c.b16 %v1231, %v1229
        %v1262 = vpack.c.b16 %v1232, %v1230
        %v1263 = vpack.c.b16 %v1235, %v1233
        %v1264 = vpack.c.b16 %v1236, %v1234
        %v1265 = vpack.c.b16 %v1239, %v1237
        %v1266 = vpack.c.b16 %v1240, %v1238
        %v1267 = vpack.c.b16 %v1243, %v1241
        %v1268 = vpack.c.b16 %v1244, %v1242
        %v1269 = vpack.c.b16 %v1247, %v1245
        %v1270 = vpack.c.b16 %v1248, %v1246
        %v1271 = vpack.c.b16 %v1251, %v1249
        %v1272 = vpack.c.b16 %v1252, %v1250
        %v1273 = vpack.c.b16 %v1255, %v1253
        %v1274 = vpack.c.b16 %v1256, %v1254
        %v1275 = vpack.c.b16 %v1259, %v1257
        %v1276 = vpack.c.b16 %v1260, %v1258
        %1293 = vmatprep.subr.bf16.mxu0 %v1276
        %1294 = vmatpush1.bf16.msra.mxu0 %v1275
        %1295 = vmatprep.subr.bf16.mxu0 %v1274
        %1296 = vmatpush1.bf16.msra.mxu0 %v1273
        %1297 = vmatprep.subr.bf16.mxu0 %v1272
        %1298 = vmatpush1.bf16.msra.mxu0 %v1271
        %1299 = vmatprep.subr.bf16.mxu0 %v1270
        %1300 = vmatpush1.bf16.msra.mxu0 %v1269
        %1301 = vmatprep.subr.bf16.mxu0 %v1268
        %1302 = vmatpush1.bf16.msra.mxu0 %v1267
        %1303 = vmatprep.subr.bf16.mxu0 %v1266
        %1304 = vmatpush1.bf16.msra.mxu0 %v1265
        %1305 = vmatprep.subr.bf16.mxu0 %v1264
        %1306 = vmatpush1.bf16.msra.mxu0 %v1263
        %1307 = vmatprep.subr.bf16.mxu0 %v1262
        %1308 = vmatpush1.bf16.msra.mxu0 %v1261
        %1309 = vmatprep.subr.bf16.mxu0 0
        %1310 = vmatpush2.bf16.msra.mxu0 0
        %1311 = vmatprep.subr.bf16.mxu0 0
        %1312 = vmatpush2.bf16.msra.mxu0 0
        %1313 = vmatprep.subr.bf16.mxu0 0
        %1314 = vmatpush2.bf16.msra.mxu0 0
        %1315 = vmatprep.subr.bf16.mxu0 0
        %1316 = vmatpush2.bf16.msra.mxu0 0
        %1317 = vmatprep.subr.bf16.mxu0 0
        %1318 = vmatpush2.bf16.msra.mxu0 0
        %1319 = vmatprep.subr.bf16.mxu0 0
        %1320 = vmatpush2.bf16.msra.mxu0 0
        %1321 = vmatprep.subr.bf16.mxu0 0
        %1322 = vmatpush2.bf16.msra.mxu0 0
        %1323 = vmatprep.subr.bf16.mxu0 0
        %1324 = vmatpush2.bf16.msra.mxu0 0
        %1325 = vmatprep.mubr.bf16.mxu0 0
        %1326 = vmatmul.mubr.bf16.gmra.mxu0 %v913
        %v1327 = vpop.f32.mrf.mxu0
        %v1328 = vadd.f32 0.0, %v1327
        %v1329 = vpop.f32.mrf.mxu0
        %v1330 = vadd.f32 0.0, %v1329
        %v1331 = vpop.f32.mrf.mxu0
        %v1332 = vadd.f32 0.0, %v1331
        %v1333 = vpop.f32.mrf.mxu0
        %v1334 = vadd.f32 0.0, %v1333
        %1335 = vmatprep.mubr.bf16.mxu0 0
        %1336 = vmatmul.mubr.bf16.gmra.mxu0 %v914
        %v1337 = vpop.f32.mrf.mxu0
        %v1338 = vadd.f32 0.0, %v1337
        %v1339 = vpop.f32.mrf.mxu0
        %v1340 = vadd.f32 0.0, %v1339
        %v1341 = vpop.f32.mrf.mxu0
        %v1342 = vadd.f32 0.0, %v1341
        %v1343 = vpop.f32.mrf.mxu0
        %v1344 = vadd.f32 0.0, %v1343
        %1345 = vmatprep.mubr.bf16.mxu0 0
        %1346 = vmatmul.mubr.bf16.gmra.mxu0 %v915
        %v1347 = vpop.f32.mrf.mxu0
        %v1348 = vadd.f32 0.0, %v1347
        %v1349 = vpop.f32.mrf.mxu0
        %v1350 = vadd.f32 0.0, %v1349
        %v1351 = vpop.f32.mrf.mxu0
        %v1352 = vadd.f32 0.0, %v1351
        %v1353 = vpop.f32.mrf.mxu0
        %v1354 = vadd.f32 0.0, %v1353
        %1355 = vmatprep.mubr.bf16.mxu0 0
        %1356 = vmatmul.mubr.bf16.gmra.mxu0 %v916
        %v1357 = vpop.f32.mrf.mxu0
        %v1358 = vadd.f32 0.0, %v1357
        %v1359 = vpop.f32.mrf.mxu0
        %v1360 = vadd.f32 0.0, %v1359
        %v1361 = vpop.f32.mrf.mxu0
        %v1362 = vadd.f32 0.0, %v1361
        %v1363 = vpop.f32.mrf.mxu0
        %v1364 = vadd.f32 0.0, %v1363
        %1365 = vmatprep.mubr.bf16.mxu0 0
        %1366 = vmatmul.mubr.bf16.gmra.mxu0 %v917
        %v1367 = vpop.f32.mrf.mxu0
        %v1368 = vadd.f32 0.0, %v1367
        %v1369 = vpop.f32.mrf.mxu0
        %v1370 = vadd.f32 0.0, %v1369
        %v1371 = vpop.f32.mrf.mxu0
        %v1372 = vadd.f32 0.0, %v1371
        %v1373 = vpop.f32.mrf.mxu0
        %v1374 = vadd.f32 0.0, %v1373
        %1375 = vmatprep.mubr.bf16.mxu0 0
        %1376 = vmatmul.mubr.bf16.gmra.mxu0 %v918
        %v1377 = vpop.f32.mrf.mxu0
        %v1378 = vadd.f32 0.0, %v1377
        %v1379 = vpop.f32.mrf.mxu0
        %v1380 = vadd.f32 0.0, %v1379
        %v1381 = vpop.f32.mrf.mxu0
        %v1382 = vadd.f32 0.0, %v1381
        %v1383 = vpop.f32.mrf.mxu0
        %v1384 = vadd.f32 0.0, %v1383
        %1385 = vmatprep.mubr.bf16.mxu0 0
        %1386 = vmatmul.mubr.bf16.gmra.mxu0 %v919
        %v1387 = vpop.f32.mrf.mxu0
        %v1388 = vadd.f32 0.0, %v1387
        %v1389 = vpop.f32.mrf.mxu0
        %v1390 = vadd.f32 0.0, %v1389
        %v1391 = vpop.f32.mrf.mxu0
        %v1392 = vadd.f32 0.0, %v1391
        %v1393 = vpop.f32.mrf.mxu0
        %v1394 = vadd.f32 0.0, %v1393
        %1395 = vmatprep.mubr.bf16.mxu0 0
        %1396 = vmatmul.mubr.bf16.gmra.mxu0 %v920
        %v1397 = vpop.f32.mrf.mxu0
        %v1398 = vadd.f32 0.0, %v1397
        %v1399 = vpop.f32.mrf.mxu0
        %v1400 = vadd.f32 0.0, %v1399
        %v1401 = vpop.f32.mrf.mxu0
        %v1402 = vadd.f32 0.0, %v1401
        %v1403 = vpop.f32.mrf.mxu0
        %v1404 = vadd.f32 0.0, %v1403
        %1405 = vdwg.mxu0
        %v1406 = vld [vmem:[#allocation2 + $0x2] sm:$0x3]
        %v1407 = vmax.f32 %v1328, %v1338
        %v1408 = vmax.f32 %v1332, %v1342
        %v1409 = vmax.f32 %v1407, %v1348
        %v1410 = vmax.f32 %v1408, %v1352
        %v1411 = vmax.f32 %v1409, %v1358
        %v1412 = vmax.f32 %v1410, %v1362
        %v1413 = vmax.f32 %v1411, %v1368
        %v1414 = vmax.f32 %v1412, %v1372
        %v1415 = vmax.f32 %v1413, %v1378
        %v1416 = vmax.f32 %v1414, %v1382
        %v1417 = vmax.f32 %v1415, %v1388
        %v1418 = vmax.f32 %v1416, %v1392
        %v1419 = vmax.f32 %v1417, %v1398
        %v1420 = vmax.f32 %v1418, %v1402
        %v1421 = vmax.f32 %v1419, %v1420
        %v1422 = vrot.slane %v1421, 4
        %v1423 = vmax.f32 %v1421, %v1422
        %v1424 = vrot.slane %v1423, 2
        %v1425 = vmax.f32 %v1423, %v1424
        %v1426 = vrot.slane %v1425, 1
        %v1427 = vmax.f32 %v1425, %v1426
        %v1428 = vmax.f32 %v1330, %v1340
        %v1429 = vmax.f32 %v1334, %v1344
        %v1430 = vmax.f32 %v1428, %v1350
        %v1431 = vmax.f32 %v1429, %v1354
        %v1432 = vmax.f32 %v1430, %v1360
        %v1433 = vmax.f32 %v1431, %v1364
        %v1434 = vmax.f32 %v1432, %v1370
        %v1435 = vmax.f32 %v1433, %v1374
        %v1436 = vmax.f32 %v1434, %v1380
        %v1437 = vmax.f32 %v1435, %v1384
        %v1438 = vmax.f32 %v1436, %v1390
        %v1439 = vmax.f32 %v1437, %v1394
        %v1440 = vmax.f32 %v1438, %v1400
        %v1441 = vmax.f32 %v1439, %v1404
        %v1442 = vmax.f32 %v1440, %v1441
        %v1443 = vrot.slane %v1442, 4
        %v1444 = vmax.f32 %v1442, %v1443
        %v1445 = vrot.slane %v1444, 2
        %v1446 = vmax.f32 %v1444, %v1445
        %v1447 = vrot.slane %v1446, 1
        %v1448 = vmax.f32 %v1446, %v1447
        %v1451 = vcombine.low %v1427, %v1448
        %v1453 = vunpack.c.l.s4 1966171168
        %v1454 = vunpack.c.0.s8 %v1453
        %v1455 = vlaneseq
        %v1456 = vshrl.u32 %v1455, 7
        %v1457 = vsub.s32 %v1454, %v1456
        %v1458 = vrot.slane %v1451, %v1457
        %v1460 = vunpack.c.l.s4 1966171168
        %v1461 = vunpack.c.0.s8 %v1460
        %v1462 = vlaneseq
        %v1463 = vshrl.u32 %v1462, 7
        %v1464 = vsub.s32 %v1461, %v1463
        %v1465 = vrot.slane %v1458, %v1464
        %v1467 = vmax.f32 %v1406, %v1465
        %1468 = vst.msk [vmem:[#allocation2 + $0x2] sm:$0x3] %vm1195, %v1467
        %v1469 = vld [vmem:[%s5 + $0x10] sm:$0xff]
        %v1470 = vld [vmem:[%s5 + $0x30] sm:$0xff]
        %v1471 = vld [vmem:[%s5 + $0x50] sm:$0xff]
        %v1472 = vld [vmem:[%s5 + $0x70] sm:$0xff]
        %v1473 = vld [vmem:[%s5 + $0x90] sm:$0xff]
        %v1474 = vld [vmem:[%s5 + $0xb0] sm:$0xff]
        %v1475 = vld [vmem:[%s5 + $0xd0] sm:$0xff]
        %v1476 = vld [vmem:[%s5 + $0xf0] sm:$0xff]
        %v1477 = vld [vmem:[%s5 + $0x110] sm:$0xff]
        %v1478 = vld [vmem:[%s5 + $0x130] sm:$0xff]
        %v1479 = vld [vmem:[%s5 + $0x150] sm:$0xff]
        %v1480 = vld [vmem:[%s5 + $0x170] sm:$0xff]
        %v1481 = vld [vmem:[%s5 + $0x190] sm:$0xff]
        %v1482 = vld [vmem:[%s5 + $0x1b0] sm:$0xff]
        %v1483 = vld [vmem:[%s5 + $0x1d0] sm:$0xff]
        %v1484 = vld [vmem:[%s5 + $0x1f0] sm:$0xff]
        %v1501 = vunpack.c.l.b16 %v1469
        %v1502 = vunpack.c.h.b16 %v1469
        %v1503 = vunpack.c.l.b16 %v1470
        %v1504 = vunpack.c.h.b16 %v1470
        %v1505 = vunpack.c.l.b16 %v1471
        %v1506 = vunpack.c.h.b16 %v1471
        %v1507 = vunpack.c.l.b16 %v1472
        %v1508 = vunpack.c.h.b16 %v1472
        %v1509 = vunpack.c.l.b16 %v1473
        %v1510 = vunpack.c.h.b16 %v1473
        %v1511 = vunpack.c.l.b16 %v1474
        %v1512 = vunpack.c.h.b16 %v1474
        %v1513 = vunpack.c.l.b16 %v1475
        %v1514 = vunpack.c.h.b16 %v1475
        %v1515 = vunpack.c.l.b16 %v1476
        %v1516 = vunpack.c.h.b16 %v1476
        %v1517 = vunpack.c.l.b16 %v1477
        %v1518 = vunpack.c.h.b16 %v1477
        %v1519 = vunpack.c.l.b16 %v1478
        %v1520 = vunpack.c.h.b16 %v1478
        %v1521 = vunpack.c.l.b16 %v1479
        %v1522 = vunpack.c.h.b16 %v1479
        %v1523 = vunpack.c.l.b16 %v1480
        %v1524 = vunpack.c.h.b16 %v1480
        %v1525 = vunpack.c.l.b16 %v1481
        %v1526 = vunpack.c.h.b16 %v1481
        %v1527 = vunpack.c.l.b16 %v1482
        %v1528 = vunpack.c.h.b16 %v1482
        %v1529 = vunpack.c.l.b16 %v1483
        %v1530 = vunpack.c.h.b16 %v1483
        %v1531 = vunpack.c.l.b16 %v1484
        %v1532 = vunpack.c.h.b16 %v1484
        %v1533 = vpack.c.b16 %v1503, %v1501
        %v1534 = vpack.c.b16 %v1504, %v1502
        %v1535 = vpack.c.b16 %v1507, %v1505
        %v1536 = vpack.c.b16 %v1508, %v1506
        %v1537 = vpack.c.b16 %v1511, %v1509
        %v1538 = vpack.c.b16 %v1512, %v1510
        %v1539 = vpack.c.b16 %v1515, %v1513
        %v1540 = vpack.c.b16 %v1516, %v1514
        %v1541 = vpack.c.b16 %v1519, %v1517
        %v1542 = vpack.c.b16 %v1520, %v1518
        %v1543 = vpack.c.b16 %v1523, %v1521
        %v1544 = vpack.c.b16 %v1524, %v1522
        %v1545 = vpack.c.b16 %v1527, %v1525
        %v1546 = vpack.c.b16 %v1528, %v1526
        %v1547 = vpack.c.b16 %v1531, %v1529
        %v1548 = vpack.c.b16 %v1532, %v1530
        %1565 = vmatprep.subr.bf16.mxu0 %v1548
        %1566 = vmatpush1.bf16.msra.mxu0 %v1547
        %1567 = vmatprep.subr.bf16.mxu0 %v1546
        %1568 = vmatpush1.bf16.msra.mxu0 %v1545
        %1569 = vmatprep.subr.bf16.mxu0 %v1544
        %1570 = vmatpush1.bf16.msra.mxu0 %v1543
        %1571 = vmatprep.subr.bf16.mxu0 %v1542
        %1572 = vmatpush1.bf16.msra.mxu0 %v1541
        %1573 = vmatprep.subr.bf16.mxu0 %v1540
        %1574 = vmatpush1.bf16.msra.mxu0 %v1539
        %1575 = vmatprep.subr.bf16.mxu0 %v1538
        %1576 = vmatpush1.bf16.msra.mxu0 %v1537
        %1577 = vmatprep.subr.bf16.mxu0 %v1536
        %1578 = vmatpush1.bf16.msra.mxu0 %v1535
        %1579 = vmatprep.subr.bf16.mxu0 %v1534
        %1580 = vmatpush1.bf16.msra.mxu0 %v1533
        %1581 = vmatprep.subr.bf16.mxu0 0
        %1582 = vmatpush2.bf16.msra.mxu0 0
        %1583 = vmatprep.subr.bf16.mxu0 0
        %1584 = vmatpush2.bf16.msra.mxu0 0
        %1585 = vmatprep.subr.bf16.mxu0 0
        %1586 = vmatpush2.bf16.msra.mxu0 0
        %1587 = vmatprep.subr.bf16.mxu0 0
        %1588 = vmatpush2.bf16.msra.mxu0 0
        %1589 = vmatprep.subr.bf16.mxu0 0
        %1590 = vmatpush2.bf16.msra.mxu0 0
        %1591 = vmatprep.subr.bf16.mxu0 0
        %1592 = vmatpush2.bf16.msra.mxu0 0
        %1593 = vmatprep.subr.bf16.mxu0 0
        %1594 = vmatpush2.bf16.msra.mxu0 0
        %1595 = vmatprep.subr.bf16.mxu0 0
        %1596 = vmatpush2.bf16.msra.mxu0 0
        %1597 = vmatprep.mubr.bf16.mxu0 0
        %1598 = vmatmul.mubr.bf16.gmra.mxu0 %v913
        %v1599 = vpop.f32.mrf.mxu0
        %v1600 = vadd.f32 0.0, %v1599
        %v1601 = vpop.f32.mrf.mxu0
        %v1602 = vadd.f32 0.0, %v1601
        %v1603 = vpop.f32.mrf.mxu0
        %v1604 = vadd.f32 0.0, %v1603
        %v1605 = vpop.f32.mrf.mxu0
        %v1606 = vadd.f32 0.0, %v1605
        %1607 = vmatprep.mubr.bf16.mxu0 0
        %1608 = vmatmul.mubr.bf16.gmra.mxu0 %v914
        %v1609 = vpop.f32.mrf.mxu0
        %v1610 = vadd.f32 0.0, %v1609
        %v1611 = vpop.f32.mrf.mxu0
        %v1612 = vadd.f32 0.0, %v1611
        %v1613 = vpop.f32.mrf.mxu0
        %v1614 = vadd.f32 0.0, %v1613
        %v1615 = vpop.f32.mrf.mxu0
        %v1616 = vadd.f32 0.0, %v1615
        %1617 = vmatprep.mubr.bf16.mxu0 0
        %1618 = vmatmul.mubr.bf16.gmra.mxu0 %v915
        %v1619 = vpop.f32.mrf.mxu0
        %v1620 = vadd.f32 0.0, %v1619
        %v1621 = vpop.f32.mrf.mxu0
        %v1622 = vadd.f32 0.0, %v1621
        %v1623 = vpop.f32.mrf.mxu0
        %v1624 = vadd.f32 0.0, %v1623
        %v1625 = vpop.f32.mrf.mxu0
        %v1626 = vadd.f32 0.0, %v1625
        %1627 = vmatprep.mubr.bf16.mxu0 0
        %1628 = vmatmul.mubr.bf16.gmra.mxu0 %v916
        %v1629 = vpop.f32.mrf.mxu0
        %v1630 = vadd.f32 0.0, %v1629
        %v1631 = vpop.f32.mrf.mxu0
        %v1632 = vadd.f32 0.0, %v1631
        %v1633 = vpop.f32.mrf.mxu0
        %v1634 = vadd.f32 0.0, %v1633
        %v1635 = vpop.f32.mrf.mxu0
        %v1636 = vadd.f32 0.0, %v1635
        %1637 = vmatprep.mubr.bf16.mxu0 0
        %1638 = vmatmul.mubr.bf16.gmra.mxu0 %v917
        %v1639 = vpop.f32.mrf.mxu0
        %v1640 = vadd.f32 0.0, %v1639
        %v1641 = vpop.f32.mrf.mxu0
        %v1642 = vadd.f32 0.0, %v1641
        %v1643 = vpop.f32.mrf.mxu0
        %v1644 = vadd.f32 0.0, %v1643
        %v1645 = vpop.f32.mrf.mxu0
        %v1646 = vadd.f32 0.0, %v1645
        %1647 = vmatprep.mubr.bf16.mxu0 0
        %1648 = vmatmul.mubr.bf16.gmra.mxu0 %v918
        %v1649 = vpop.f32.mrf.mxu0
        %v1650 = vadd.f32 0.0, %v1649
        %v1651 = vpop.f32.mrf.mxu0
        %v1652 = vadd.f32 0.0, %v1651
        %v1653 = vpop.f32.mrf.mxu0
        %v1654 = vadd.f32 0.0, %v1653
        %v1655 = vpop.f32.mrf.mxu0
        %v1656 = vadd.f32 0.0, %v1655
        %1657 = vmatprep.mubr.bf16.mxu0 0
        %1658 = vmatmul.mubr.bf16.gmra.mxu0 %v919
        %v1659 = vpop.f32.mrf.mxu0
        %v1660 = vadd.f32 0.0, %v1659
        %v1661 = vpop.f32.mrf.mxu0
        %v1662 = vadd.f32 0.0, %v1661
        %v1663 = vpop.f32.mrf.mxu0
        %v1664 = vadd.f32 0.0, %v1663
        %v1665 = vpop.f32.mrf.mxu0
        %v1666 = vadd.f32 0.0, %v1665
        %1667 = vmatprep.mubr.bf16.mxu0 0
        %1668 = vmatmul.mubr.bf16.gmra.mxu0 %v920
        %v1669 = vpop.f32.mrf.mxu0
        %v1670 = vadd.f32 0.0, %v1669
        %v1671 = vpop.f32.mrf.mxu0
        %v1672 = vadd.f32 0.0, %v1671
        %v1673 = vpop.f32.mrf.mxu0
        %v1674 = vadd.f32 0.0, %v1673
        %v1675 = vpop.f32.mrf.mxu0
        %v1676 = vadd.f32 0.0, %v1675
        %1677 = vdwg.mxu0
        %v1678 = vld [vmem:[#allocation2 + $0x4] sm:$0x3]
        %v1679 = vmax.f32 %v1600, %v1610
        %v1680 = vmax.f32 %v1604, %v1614
        %v1681 = vmax.f32 %v1679, %v1620
        %v1682 = vmax.f32 %v1680, %v1624
        %v1683 = vmax.f32 %v1681, %v1630
        %v1684 = vmax.f32 %v1682, %v1634
        %v1685 = vmax.f32 %v1683, %v1640
        %v1686 = vmax.f32 %v1684, %v1644
        %v1687 = vmax.f32 %v1685, %v1650
        %v1688 = vmax.f32 %v1686, %v1654
        %v1689 = vmax.f32 %v1687, %v1660
        %v1690 = vmax.f32 %v1688, %v1664
        %v1691 = vmax.f32 %v1689, %v1670
        %v1692 = vmax.f32 %v1690, %v1674
        %v1693 = vmax.f32 %v1691, %v1692
        %v1694 = vrot.slane %v1693, 4
        %v1695 = vmax.f32 %v1693, %v1694
        %v1696 = vrot.slane %v1695, 2
        %v1697 = vmax.f32 %v1695, %v1696
        %v1698 = vrot.slane %v1697, 1
        %v1699 = vmax.f32 %v1697, %v1698
        %v1700 = vmax.f32 %v1602, %v1612
        %v1701 = vmax.f32 %v1606, %v1616
        %v1702 = vmax.f32 %v1700, %v1622
        %v1703 = vmax.f32 %v1701, %v1626
        %v1704 = vmax.f32 %v1702, %v1632
        %v1705 = vmax.f32 %v1703, %v1636
        %v1706 = vmax.f32 %v1704, %v1642
        %v1707 = vmax.f32 %v1705, %v1646
        %v1708 = vmax.f32 %v1706, %v1652
        %v1709 = vmax.f32 %v1707, %v1656
        %v1710 = vmax.f32 %v1708, %v1662
        %v1711 = vmax.f32 %v1709, %v1666
        %v1712 = vmax.f32 %v1710, %v1672
        %v1713 = vmax.f32 %v1711, %v1676
        %v1714 = vmax.f32 %v1712, %v1713
        %v1715 = vrot.slane %v1714, 4
        %v1716 = vmax.f32 %v1714, %v1715
        %v1717 = vrot.slane %v1716, 2
        %v1718 = vmax.f32 %v1716, %v1717
        %v1719 = vrot.slane %v1718, 1
        %v1720 = vmax.f32 %v1718, %v1719
        %v1723 = vcombine.low %v1699, %v1720
        %v1725 = vunpack.c.l.s4 1966171168
        %v1726 = vunpack.c.0.s8 %v1725
        %v1727 = vlaneseq
        %v1728 = vshrl.u32 %v1727, 7
        %v1729 = vsub.s32 %v1726, %v1728
        %v1730 = vrot.slane %v1723, %v1729
        %v1732 = vunpack.c.l.s4 1966171168
        %v1733 = vunpack.c.0.s8 %v1732
        %v1734 = vlaneseq
        %v1735 = vshrl.u32 %v1734, 7
        %v1736 = vsub.s32 %v1733, %v1735
        %v1737 = vrot.slane %v1730, %v1736
        %v1739 = vmax.f32 %v1678, %v1737
        %1740 = vst.msk [vmem:[#allocation2 + $0x4] sm:$0x3] %vm1195, %v1739
        %v1741 = vld [vmem:[%s5 + $0x18] sm:$0xff]
        %v1742 = vld [vmem:[%s5 + $0x38] sm:$0xff]
        %v1743 = vld [vmem:[%s5 + $0x58] sm:$0xff]
        %v1744 = vld [vmem:[%s5 + $0x78] sm:$0xff]
        %v1745 = vld [vmem:[%s5 + $0x98] sm:$0xff]
        %v1746 = vld [vmem:[%s5 + $0xb8] sm:$0xff]
        %v1747 = vld [vmem:[%s5 + $0xd8] sm:$0xff]
        %v1748 = vld [vmem:[%s5 + $0xf8] sm:$0xff]
        %v1749 = vld [vmem:[%s5 + $0x118] sm:$0xff]
        %v1750 = vld [vmem:[%s5 + $0x138] sm:$0xff]
        %v1751 = vld [vmem:[%s5 + $0x158] sm:$0xff]
        %v1752 = vld [vmem:[%s5 + $0x178] sm:$0xff]
        %v1753 = vld [vmem:[%s5 + $0x198] sm:$0xff]
        %v1754 = vld [vmem:[%s5 + $0x1b8] sm:$0xff]
        %v1755 = vld [vmem:[%s5 + $0x1d8] sm:$0xff]
        %v1756 = vld [vmem:[%s5 + $0x1f8] sm:$0xff]
        %v1773 = vunpack.c.l.b16 %v1741
        %v1774 = vunpack.c.h.b16 %v1741
        %v1775 = vunpack.c.l.b16 %v1742
        %v1776 = vunpack.c.h.b16 %v1742
        %v1777 = vunpack.c.l.b16 %v1743
        %v1778 = vunpack.c.h.b16 %v1743
        %v1779 = vunpack.c.l.b16 %v1744
        %v1780 = vunpack.c.h.b16 %v1744
        %v1781 = vunpack.c.l.b16 %v1745
        %v1782 = vunpack.c.h.b16 %v1745
        %v1783 = vunpack.c.l.b16 %v1746
        %v1784 = vunpack.c.h.b16 %v1746
        %v1785 = vunpack.c.l.b16 %v1747
        %v1786 = vunpack.c.h.b16 %v1747
        %v1787 = vunpack.c.l.b16 %v1748
        %v1788 = vunpack.c.h.b16 %v1748
        %v1789 = vunpack.c.l.b16 %v1749
        %v1790 = vunpack.c.h.b16 %v1749
        %v1791 = vunpack.c.l.b16 %v1750
        %v1792 = vunpack.c.h.b16 %v1750
        %v1793 = vunpack.c.l.b16 %v1751
        %v1794 = vunpack.c.h.b16 %v1751
        %v1795 = vunpack.c.l.b16 %v1752
        %v1796 = vunpack.c.h.b16 %v1752
        %v1797 = vunpack.c.l.b16 %v1753
        %v1798 = vunpack.c.h.b16 %v1753
        %v1799 = vunpack.c.l.b16 %v1754
        %v1800 = vunpack.c.h.b16 %v1754
        %v1801 = vunpack.c.l.b16 %v1755
        %v1802 = vunpack.c.h.b16 %v1755
        %v1803 = vunpack.c.l.b16 %v1756
        %v1804 = vunpack.c.h.b16 %v1756
        %v1805 = vpack.c.b16 %v1775, %v1773
        %v1806 = vpack.c.b16 %v1776, %v1774
        %v1807 = vpack.c.b16 %v1779, %v1777
        %v1808 = vpack.c.b16 %v1780, %v1778
        %v1809 = vpack.c.b16 %v1783, %v1781
        %v1810 = vpack.c.b16 %v1784, %v1782
        %v1811 = vpack.c.b16 %v1787, %v1785
        %v1812 = vpack.c.b16 %v1788, %v1786
        %v1813 = vpack.c.b16 %v1791, %v1789
        %v1814 = vpack.c.b16 %v1792, %v1790
        %v1815 = vpack.c.b16 %v1795, %v1793
        %v1816 = vpack.c.b16 %v1796, %v1794
        %v1817 = vpack.c.b16 %v1799, %v1797
        %v1818 = vpack.c.b16 %v1800, %v1798
        %v1819 = vpack.c.b16 %v1803, %v1801
        %v1820 = vpack.c.b16 %v1804, %v1802
        %1837 = vmatprep.subr.bf16.mxu0 %v1820
        %1838 = vmatpush1.bf16.msra.mxu0 %v1819
        %1839 = vmatprep.subr.bf16.mxu0 %v1818
        %1840 = vmatpush1.bf16.msra.mxu0 %v1817
        %1841 = vmatprep.subr.bf16.mxu0 %v1816
        %1842 = vmatpush1.bf16.msra.mxu0 %v1815
        %1843 = vmatprep.subr.bf16.mxu0 %v1814
        %1844 = vmatpush1.bf16.msra.mxu0 %v1813
        %1845 = vmatprep.subr.bf16.mxu0 %v1812
        %1846 = vmatpush1.bf16.msra.mxu0 %v1811
        %1847 = vmatprep.subr.bf16.mxu0 %v1810
        %1848 = vmatpush1.bf16.msra.mxu0 %v1809
        %1849 = vmatprep.subr.bf16.mxu0 %v1808
        %1850 = vmatpush1.bf16.msra.mxu0 %v1807
        %1851 = vmatprep.subr.bf16.mxu0 %v1806
        %1852 = vmatpush1.bf16.msra.mxu0 %v1805
        %1853 = vmatprep.subr.bf16.mxu0 0
        %1854 = vmatpush2.bf16.msra.mxu0 0
        %1855 = vmatprep.subr.bf16.mxu0 0
        %1856 = vmatpush2.bf16.msra.mxu0 0
        %1857 = vmatprep.subr.bf16.mxu0 0
        %1858 = vmatpush2.bf16.msra.mxu0 0
        %1859 = vmatprep.subr.bf16.mxu0 0
        %1860 = vmatpush2.bf16.msra.mxu0 0
        %1861 = vmatprep.subr.bf16.mxu0 0
        %1862 = vmatpush2.bf16.msra.mxu0 0
        %1863 = vmatprep.subr.bf16.mxu0 0
        %1864 = vmatpush2.bf16.msra.mxu0 0
        %1865 = vmatprep.subr.bf16.mxu0 0
        %1866 = vmatpush2.bf16.msra.mxu0 0
        %1867 = vmatprep.subr.bf16.mxu0 0
        %1868 = vmatpush2.bf16.msra.mxu0 0
        %1869 = vmatprep.mubr.bf16.mxu0 0
        %1870 = vmatmul.mubr.bf16.gmra.mxu0 %v913
        %v1871 = vpop.f32.mrf.mxu0
        %v1872 = vadd.f32 0.0, %v1871
        %v1873 = vpop.f32.mrf.mxu0
        %v1874 = vadd.f32 0.0, %v1873
        %v1875 = vpop.f32.mrf.mxu0
        %v1876 = vadd.f32 0.0, %v1875
        %v1877 = vpop.f32.mrf.mxu0
        %v1878 = vadd.f32 0.0, %v1877
        %1879 = vmatprep.mubr.bf16.mxu0 0
        %1880 = vmatmul.mubr.bf16.gmra.mxu0 %v914
        %v1881 = vpop.f32.mrf.mxu0
        %v1882 = vadd.f32 0.0, %v1881
        %v1883 = vpop.f32.mrf.mxu0
        %v1884 = vadd.f32 0.0, %v1883
        %v1885 = vpop.f32.mrf.mxu0
        %v1886 = vadd.f32 0.0, %v1885
        %v1887 = vpop.f32.mrf.mxu0
        %v1888 = vadd.f32 0.0, %v1887
        %1889 = vmatprep.mubr.bf16.mxu0 0
        %1890 = vmatmul.mubr.bf16.gmra.mxu0 %v915
        %v1891 = vpop.f32.mrf.mxu0
        %v1892 = vadd.f32 0.0, %v1891
        %v1893 = vpop.f32.mrf.mxu0
        %v1894 = vadd.f32 0.0, %v1893
        %v1895 = vpop.f32.mrf.mxu0
        %v1896 = vadd.f32 0.0, %v1895
        %v1897 = vpop.f32.mrf.mxu0
        %v1898 = vadd.f32 0.0, %v1897
        %1899 = vmatprep.mubr.bf16.mxu0 0
        %1900 = vmatmul.mubr.bf16.gmra.mxu0 %v916
        %v1901 = vpop.f32.mrf.mxu0
        %v1902 = vadd.f32 0.0, %v1901
        %v1903 = vpop.f32.mrf.mxu0
        %v1904 = vadd.f32 0.0, %v1903
        %v1905 = vpop.f32.mrf.mxu0
        %v1906 = vadd.f32 0.0, %v1905
        %v1907 = vpop.f32.mrf.mxu0
        %v1908 = vadd.f32 0.0, %v1907
        %1909 = vmatprep.mubr.bf16.mxu0 0
        %1910 = vmatmul.mubr.bf16.gmra.mxu0 %v917
        %v1911 = vpop.f32.mrf.mxu0
        %v1912 = vadd.f32 0.0, %v1911
        %v1913 = vpop.f32.mrf.mxu0
        %v1914 = vadd.f32 0.0, %v1913
        %v1915 = vpop.f32.mrf.mxu0
        %v1916 = vadd.f32 0.0, %v1915
        %v1917 = vpop.f32.mrf.mxu0
        %v1918 = vadd.f32 0.0, %v1917
        %1919 = vmatprep.mubr.bf16.mxu0 0
        %1920 = vmatmul.mubr.bf16.gmra.mxu0 %v918
        %v1921 = vpop.f32.mrf.mxu0
        %v1922 = vadd.f32 0.0, %v1921
        %v1923 = vpop.f32.mrf.mxu0
        %v1924 = vadd.f32 0.0, %v1923
        %v1925 = vpop.f32.mrf.mxu0
        %v1926 = vadd.f32 0.0, %v1925
        %v1927 = vpop.f32.mrf.mxu0
        %v1928 = vadd.f32 0.0, %v1927
        %1929 = vmatprep.mubr.bf16.mxu0 0
        %1930 = vmatmul.mubr.bf16.gmra.mxu0 %v919
        %v1931 = vpop.f32.mrf.mxu0
        %v1932 = vadd.f32 0.0, %v1931
        %v1933 = vpop.f32.mrf.mxu0
        %v1934 = vadd.f32 0.0, %v1933
        %v1935 = vpop.f32.mrf.mxu0
        %v1936 = vadd.f32 0.0, %v1935
        %v1937 = vpop.f32.mrf.mxu0
        %v1938 = vadd.f32 0.0, %v1937
        %1939 = vmatprep.mubr.bf16.mxu0 0
        %1940 = vmatmul.mubr.bf16.gmra.mxu0 %v920
        %v1941 = vpop.f32.mrf.mxu0
        %v1942 = vadd.f32 0.0, %v1941
        %v1943 = vpop.f32.mrf.mxu0
        %v1944 = vadd.f32 0.0, %v1943
        %v1945 = vpop.f32.mrf.mxu0
        %v1946 = vadd.f32 0.0, %v1945
        %v1947 = vpop.f32.mrf.mxu0
        %v1948 = vadd.f32 0.0, %v1947
        %1949 = vdwg.mxu0
        %v1950 = vld [vmem:[#allocation2 + $0x6] sm:$0x3]
        %v1951 = vmax.f32 %v1872, %v1882
        %v1952 = vmax.f32 %v1876, %v1886
        %v1953 = vmax.f32 %v1951, %v1892
        %v1954 = vmax.f32 %v1952, %v1896
        %v1955 = vmax.f32 %v1953, %v1902
        %v1956 = vmax.f32 %v1954, %v1906
        %v1957 = vmax.f32 %v1955, %v1912
        %v1958 = vmax.f32 %v1956, %v1916
        %v1959 = vmax.f32 %v1957, %v1922
        %v1960 = vmax.f32 %v1958, %v1926
        %v1961 = vmax.f32 %v1959, %v1932
        %v1962 = vmax.f32 %v1960, %v1936
        %v1963 = vmax.f32 %v1961, %v1942
        %v1964 = vmax.f32 %v1962, %v1946
        %v1965 = vmax.f32 %v1963, %v1964
        %v1966 = vrot.slane %v1965, 4
        %v1967 = vmax.f32 %v1965, %v1966
        %v1968 = vrot.slane %v1967, 2
        %v1969 = vmax.f32 %v1967, %v1968
        %v1970 = vrot.slane %v1969, 1
        %v1971 = vmax.f32 %v1969, %v1970
        %v1972 = vmax.f32 %v1874, %v1884
        %v1973 = vmax.f32 %v1878, %v1888
        %v1974 = vmax.f32 %v1972, %v1894
        %v1975 = vmax.f32 %v1973, %v1898
        %v1976 = vmax.f32 %v1974, %v1904
        %v1977 = vmax.f32 %v1975, %v1908
        %v1978 = vmax.f32 %v1976, %v1914
        %v1979 = vmax.f32 %v1977, %v1918
        %v1980 = vmax.f32 %v1978, %v1924
        %v1981 = vmax.f32 %v1979, %v1928
        %v1982 = vmax.f32 %v1980, %v1934
        %v1983 = vmax.f32 %v1981, %v1938
        %v1984 = vmax.f32 %v1982, %v1944
        %v1985 = vmax.f32 %v1983, %v1948
        %v1986 = vmax.f32 %v1984, %v1985
        %v1987 = vrot.slane %v1986, 4
        %v1988 = vmax.f32 %v1986, %v1987
        %v1989 = vrot.slane %v1988, 2
        %v1990 = vmax.f32 %v1988, %v1989
        %v1991 = vrot.slane %v1990, 1
        %v1992 = vmax.f32 %v1990, %v1991
        %v1995 = vcombine.low %v1971, %v1992
        %v1997 = vunpack.c.l.s4 1966171168
        %v1998 = vunpack.c.0.s8 %v1997
        %v1999 = vlaneseq
        %v2000 = vshrl.u32 %v1999, 7
        %v2001 = vsub.s32 %v1998, %v2000
        %v2002 = vrot.slane %v1995, %v2001
        %v2004 = vunpack.c.l.s4 1966171168
        %v2005 = vunpack.c.0.s8 %v2004
        %v2006 = vlaneseq
        %v2007 = vshrl.u32 %v2006, 7
        %v2008 = vsub.s32 %v2005, %v2007
        %v2009 = vrot.slane %v2002, %v2008
        %v2011 = vmax.f32 %v1950, %v2009
        %2012 = vst.msk [vmem:[#allocation2 + $0x6] sm:$0x3] %vm1195, %v2011
        %p2013 = scmp.eq.s32.totalorder %s33, 3
        // Predicated region
        $region101: #{stn3d_forward.1} parent=71 // pred_check
          %p2014 = pneg %p2013
        $region102: #{stn3d_forward.1} parent=71 // pred_check_branch
          %2016 = sbr.rel (%p2014) target = $region104
        $region103: #{stn3d_forward.1} parent=71 // pred_region
          %v2017 = vld [vmem:[#allocation2] sm:$0xff]
          %v2018 = vld [vmem:[%s6] sm:$0xff]
          %v2019 = vadd.f32 %v2017, %v2018
          %v2020 = vmax.f32 %v2019, 0.0
          %v2022 = vlaneseq
          %v2023 = vshrl.u32 %v2022, 7
          %v2024 = vsub.s32 0, %v2023
          %v2025 = vrot.slane %v2020, %v2024
          %v2026 = vlaneseq
          %v2027 = vshrl.u32 %v2026, 7
          %v2028 = vsub.s32 1, %v2027
          %v2029 = vrot.slane %v2020, %v2028
          %v2030 = vlaneseq
          %v2031 = vshrl.u32 %v2030, 7
          %v2032 = vsub.s32 2, %v2031
          %v2033 = vrot.slane %v2020, %v2032
          %v2034 = vlaneseq
          %v2035 = vshrl.u32 %v2034, 7
          %v2036 = vsub.s32 3, %v2035
          %v2037 = vrot.slane %v2020, %v2036
          %v2038 = vlaneseq
          %v2039 = vshrl.u32 %v2038, 7
          %v2040 = vsub.s32 4, %v2039
          %v2041 = vrot.slane %v2020, %v2040
          %v2042 = vlaneseq
          %v2043 = vshrl.u32 %v2042, 7
          %v2044 = vsub.s32 5, %v2043
          %v2045 = vrot.slane %v2020, %v2044
          %v2046 = vlaneseq
          %v2047 = vshrl.u32 %v2046, 7
          %v2048 = vsub.s32 6, %v2047
          %v2049 = vrot.slane %v2020, %v2048
          %v2050 = vlaneseq
          %v2051 = vshrl.u32 %v2050, 7
          %v2052 = vsub.s32 7, %v2051
          %v2053 = vrot.slane %v2020, %v2052
          %v2062 = vpack.c.bf16 %v2025, %v2025
          %v2063 = vpack.c.bf16 %v2029, %v2029
          %v2064 = vpack.c.bf16 %v2033, %v2033
          %v2065 = vpack.c.bf16 %v2037, %v2037
          %v2066 = vpack.c.bf16 %v2041, %v2041
          %v2067 = vpack.c.bf16 %v2045, %v2045
          %v2068 = vpack.c.bf16 %v2049, %v2049
          %v2069 = vpack.c.bf16 %v2053, %v2053
          %v2070 = vld [vmem:[#allocation8] sm:$0xff]
          %v2071 = vld [vmem:[#allocation8 + $0x8] sm:$0xff]
          %v2072 = vld [vmem:[#allocation8 + $0x10] sm:$0xff]
          %v2073 = vld [vmem:[#allocation8 + $0x18] sm:$0xff]
          %v2074 = vld [vmem:[#allocation8 + $0x20] sm:$0xff]
          %v2075 = vld [vmem:[#allocation8 + $0x28] sm:$0xff]
          %v2076 = vld [vmem:[#allocation8 + $0x30] sm:$0xff]
          %v2077 = vld [vmem:[#allocation8 + $0x38] sm:$0xff]
          %v2078 = vld [vmem:[#allocation8 + $0x40] sm:$0xff]
          %v2079 = vld [vmem:[#allocation8 + $0x48] sm:$0xff]
          %v2080 = vld [vmem:[#allocation8 + $0x50] sm:$0xff]
          %v2081 = vld [vmem:[#allocation8 + $0x58] sm:$0xff]
          %v2082 = vld [vmem:[#allocation8 + $0x60] sm:$0xff]
          %v2083 = vld [vmem:[#allocation8 + $0x68] sm:$0xff]
          %v2084 = vld [vmem:[#allocation8 + $0x70] sm:$0xff]
          %v2085 = vld [vmem:[#allocation8 + $0x78] sm:$0xff]
          %v2086 = vld [vmem:[#allocation8 + $0x80] sm:$0xff]
          %v2087 = vld [vmem:[#allocation8 + $0x88] sm:$0xff]
          %v2088 = vld [vmem:[#allocation8 + $0x90] sm:$0xff]
          %v2089 = vld [vmem:[#allocation8 + $0x98] sm:$0xff]
          %v2090 = vld [vmem:[#allocation8 + $0xa0] sm:$0xff]
          %v2091 = vld [vmem:[#allocation8 + $0xa8] sm:$0xff]
          %v2092 = vld [vmem:[#allocation8 + $0xb0] sm:$0xff]
          %v2093 = vld [vmem:[#allocation8 + $0xb8] sm:$0xff]
          %v2094 = vld [vmem:[#allocation8 + $0xc0] sm:$0xff]
          %v2095 = vld [vmem:[#allocation8 + $0xc8] sm:$0xff]
          %v2096 = vld [vmem:[#allocation8 + $0xd0] sm:$0xff]
          %v2097 = vld [vmem:[#allocation8 + $0xd8] sm:$0xff]
          %v2098 = vld [vmem:[#allocation8 + $0xe0] sm:$0xff]
          %v2099 = vld [vmem:[#allocation8 + $0xe8] sm:$0xff]
          %v2100 = vld [vmem:[#allocation8 + $0xf0] sm:$0xff]
          %v2101 = vld [vmem:[#allocation8 + $0xf8] sm:$0xff]
          %v2102 = vld [vmem:[#allocation8 + $0x100] sm:$0xff]
          %v2103 = vld [vmem:[#allocation8 + $0x108] sm:$0xff]
          %v2104 = vld [vmem:[#allocation8 + $0x110] sm:$0xff]
          %v2105 = vld [vmem:[#allocation8 + $0x118] sm:$0xff]
          %v2106 = vld [vmem:[#allocation8 + $0x120] sm:$0xff]
          %v2107 = vld [vmem:[#allocation8 + $0x128] sm:$0xff]
          %v2108 = vld [vmem:[#allocation8 + $0x130] sm:$0xff]
          %v2109 = vld [vmem:[#allocation8 + $0x138] sm:$0xff]
          %v2110 = vld [vmem:[#allocation8 + $0x140] sm:$0xff]
          %v2111 = vld [vmem:[#allocation8 + $0x148] sm:$0xff]
          %v2112 = vld [vmem:[#allocation8 + $0x150] sm:$0xff]
          %v2113 = vld [vmem:[#allocation8 + $0x158] sm:$0xff]
          %v2114 = vld [vmem:[#allocation8 + $0x160] sm:$0xff]
          %v2115 = vld [vmem:[#allocation8 + $0x168] sm:$0xff]
          %v2116 = vld [vmem:[#allocation8 + $0x170] sm:$0xff]
          %v2117 = vld [vmem:[#allocation8 + $0x178] sm:$0xff]
          %v2118 = vld [vmem:[#allocation8 + $0x180] sm:$0xff]
          %v2119 = vld [vmem:[#allocation8 + $0x188] sm:$0xff]
          %v2120 = vld [vmem:[#allocation8 + $0x190] sm:$0xff]
          %v2121 = vld [vmem:[#allocation8 + $0x198] sm:$0xff]
          %v2122 = vld [vmem:[#allocation8 + $0x1a0] sm:$0xff]
          %v2123 = vld [vmem:[#allocation8 + $0x1a8] sm:$0xff]
          %v2124 = vld [vmem:[#allocation8 + $0x1b0] sm:$0xff]
          %v2125 = vld [vmem:[#allocation8 + $0x1b8] sm:$0xff]
          %v2126 = vld [vmem:[#allocation8 + $0x1c0] sm:$0xff]
          %v2127 = vld [vmem:[#allocation8 + $0x1c8] sm:$0xff]
          %v2128 = vld [vmem:[#allocation8 + $0x1d0] sm:$0xff]
          %v2129 = vld [vmem:[#allocation8 + $0x1d8] sm:$0xff]
          %v2130 = vld [vmem:[#allocation8 + $0x1e0] sm:$0xff]
          %v2131 = vld [vmem:[#allocation8 + $0x1e8] sm:$0xff]
          %v2132 = vld [vmem:[#allocation8 + $0x1f0] sm:$0xff]
          %v2133 = vld [vmem:[#allocation8 + $0x1f8] sm:$0xff]
          %v2134 = vld [vmem:[#allocation8 + $0x200] sm:$0xff]
          %v2135 = vld [vmem:[#allocation8 + $0x208] sm:$0xff]
          %v2136 = vld [vmem:[#allocation8 + $0x210] sm:$0xff]
          %v2137 = vld [vmem:[#allocation8 + $0x218] sm:$0xff]
          %v2138 = vld [vmem:[#allocation8 + $0x220] sm:$0xff]
          %v2139 = vld [vmem:[#allocation8 + $0x228] sm:$0xff]
          %v2140 = vld [vmem:[#allocation8 + $0x230] sm:$0xff]
          %v2141 = vld [vmem:[#allocation8 + $0x238] sm:$0xff]
          %v2142 = vld [vmem:[#allocation8 + $0x240] sm:$0xff]
          %v2143 = vld [vmem:[#allocation8 + $0x248] sm:$0xff]
          %v2144 = vld [vmem:[#allocation8 + $0x250] sm:$0xff]
          %v2145 = vld [vmem:[#allocation8 + $0x258] sm:$0xff]
          %v2146 = vld [vmem:[#allocation8 + $0x260] sm:$0xff]
          %v2147 = vld [vmem:[#allocation8 + $0x268] sm:$0xff]
          %v2148 = vld [vmem:[#allocation8 + $0x270] sm:$0xff]
          %v2149 = vld [vmem:[#allocation8 + $0x278] sm:$0xff]
          %v2150 = vld [vmem:[#allocation8 + $0x280] sm:$0xff]
          %v2151 = vld [vmem:[#allocation8 + $0x288] sm:$0xff]
          %v2152 = vld [vmem:[#allocation8 + $0x290] sm:$0xff]
          %v2153 = vld [vmem:[#allocation8 + $0x298] sm:$0xff]
          %v2154 = vld [vmem:[#allocation8 + $0x2a0] sm:$0xff]
          %v2155 = vld [vmem:[#allocation8 + $0x2a8] sm:$0xff]
          %v2156 = vld [vmem:[#allocation8 + $0x2b0] sm:$0xff]
          %v2157 = vld [vmem:[#allocation8 + $0x2b8] sm:$0xff]
          %v2158 = vld [vmem:[#allocation8 + $0x2c0] sm:$0xff]
          %v2159 = vld [vmem:[#allocation8 + $0x2c8] sm:$0xff]
          %v2160 = vld [vmem:[#allocation8 + $0x2d0] sm:$0xff]
          %v2161 = vld [vmem:[#allocation8 + $0x2d8] sm:$0xff]
          %v2162 = vld [vmem:[#allocation8 + $0x2e0] sm:$0xff]
          %v2163 = vld [vmem:[#allocation8 + $0x2e8] sm:$0xff]
          %v2164 = vld [vmem:[#allocation8 + $0x2f0] sm:$0xff]
          %v2165 = vld [vmem:[#allocation8 + $0x2f8] sm:$0xff]
          %v2166 = vld [vmem:[#allocation8 + $0x300] sm:$0xff]
          %v2167 = vld [vmem:[#allocation8 + $0x308] sm:$0xff]
          %v2168 = vld [vmem:[#allocation8 + $0x310] sm:$0xff]
          %v2169 = vld [vmem:[#allocation8 + $0x318] sm:$0xff]
          %v2170 = vld [vmem:[#allocation8 + $0x320] sm:$0xff]
          %v2171 = vld [vmem:[#allocation8 + $0x328] sm:$0xff]
          %v2172 = vld [vmem:[#allocation8 + $0x330] sm:$0xff]
          %v2173 = vld [vmem:[#allocation8 + $0x338] sm:$0xff]
          %v2174 = vld [vmem:[#allocation8 + $0x340] sm:$0xff]
          %v2175 = vld [vmem:[#allocation8 + $0x348] sm:$0xff]
          %v2176 = vld [vmem:[#allocation8 + $0x350] sm:$0xff]
          %v2177 = vld [vmem:[#allocation8 + $0x358] sm:$0xff]
          %v2178 = vld [vmem:[#allocation8 + $0x360] sm:$0xff]
          %v2179 = vld [vmem:[#allocation8 + $0x368] sm:$0xff]
          %v2180 = vld [vmem:[#allocation8 + $0x370] sm:$0xff]
          %v2181 = vld [vmem:[#allocation8 + $0x378] sm:$0xff]
          %v2182 = vld [vmem:[#allocation8 + $0x380] sm:$0xff]
          %v2183 = vld [vmem:[#allocation8 + $0x388] sm:$0xff]
          %v2184 = vld [vmem:[#allocation8 + $0x390] sm:$0xff]
          %v2185 = vld [vmem:[#allocation8 + $0x398] sm:$0xff]
          %v2186 = vld [vmem:[#allocation8 + $0x3a0] sm:$0xff]
          %v2187 = vld [vmem:[#allocation8 + $0x3a8] sm:$0xff]
          %v2188 = vld [vmem:[#allocation8 + $0x3b0] sm:$0xff]
          %v2189 = vld [vmem:[#allocation8 + $0x3b8] sm:$0xff]
          %v2190 = vld [vmem:[#allocation8 + $0x3c0] sm:$0xff]
          %v2191 = vld [vmem:[#allocation8 + $0x3c8] sm:$0xff]
          %v2192 = vld [vmem:[#allocation8 + $0x3d0] sm:$0xff]
          %v2193 = vld [vmem:[#allocation8 + $0x3d8] sm:$0xff]
          %v2194 = vld [vmem:[#allocation8 + $0x3e0] sm:$0xff]
          %v2195 = vld [vmem:[#allocation8 + $0x3e8] sm:$0xff]
          %v2196 = vld [vmem:[#allocation8 + $0x3f0] sm:$0xff]
          %v2197 = vld [vmem:[#allocation8 + $0x3f8] sm:$0xff]
          %v2198 = vld [vmem:[#allocation8 + $0x400] sm:$0xff]
          %v2199 = vld [vmem:[#allocation8 + $0x408] sm:$0xff]
          %v2200 = vld [vmem:[#allocation8 + $0x410] sm:$0xff]
          %v2201 = vld [vmem:[#allocation8 + $0x418] sm:$0xff]
          %v2202 = vld [vmem:[#allocation8 + $0x420] sm:$0xff]
          %v2203 = vld [vmem:[#allocation8 + $0x428] sm:$0xff]
          %v2204 = vld [vmem:[#allocation8 + $0x430] sm:$0xff]
          %v2205 = vld [vmem:[#allocation8 + $0x438] sm:$0xff]
          %v2206 = vld [vmem:[#allocation8 + $0x440] sm:$0xff]
          %v2207 = vld [vmem:[#allocation8 + $0x448] sm:$0xff]
          %v2208 = vld [vmem:[#allocation8 + $0x450] sm:$0xff]
          %v2209 = vld [vmem:[#allocation8 + $0x458] sm:$0xff]
          %v2210 = vld [vmem:[#allocation8 + $0x460] sm:$0xff]
          %v2211 = vld [vmem:[#allocation8 + $0x468] sm:$0xff]
          %v2212 = vld [vmem:[#allocation8 + $0x470] sm:$0xff]
          %v2213 = vld [vmem:[#allocation8 + $0x478] sm:$0xff]
          %v2214 = vld [vmem:[#allocation8 + $0x480] sm:$0xff]
          %v2215 = vld [vmem:[#allocation8 + $0x488] sm:$0xff]
          %v2216 = vld [vmem:[#allocation8 + $0x490] sm:$0xff]
          %v2217 = vld [vmem:[#allocation8 + $0x498] sm:$0xff]
          %v2218 = vld [vmem:[#allocation8 + $0x4a0] sm:$0xff]
          %v2219 = vld [vmem:[#allocation8 + $0x4a8] sm:$0xff]
          %v2220 = vld [vmem:[#allocation8 + $0x4b0] sm:$0xff]
          %v2221 = vld [vmem:[#allocation8 + $0x4b8] sm:$0xff]
          %v2222 = vld [vmem:[#allocation8 + $0x4c0] sm:$0xff]
          %v2223 = vld [vmem:[#allocation8 + $0x4c8] sm:$0xff]
          %v2224 = vld [vmem:[#allocation8 + $0x4d0] sm:$0xff]
          %v2225 = vld [vmem:[#allocation8 + $0x4d8] sm:$0xff]
          %v2226 = vld [vmem:[#allocation8 + $0x4e0] sm:$0xff]
          %v2227 = vld [vmem:[#allocation8 + $0x4e8] sm:$0xff]
          %v2228 = vld [vmem:[#allocation8 + $0x4f0] sm:$0xff]
          %v2229 = vld [vmem:[#allocation8 + $0x4f8] sm:$0xff]
          %v2230 = vld [vmem:[#allocation8 + $0x500] sm:$0xff]
          %v2231 = vld [vmem:[#allocation8 + $0x508] sm:$0xff]
          %v2232 = vld [vmem:[#allocation8 + $0x510] sm:$0xff]
          %v2233 = vld [vmem:[#allocation8 + $0x518] sm:$0xff]
          %v2234 = vld [vmem:[#allocation8 + $0x520] sm:$0xff]
          %v2235 = vld [vmem:[#allocation8 + $0x528] sm:$0xff]
          %v2236 = vld [vmem:[#allocation8 + $0x530] sm:$0xff]
          %v2237 = vld [vmem:[#allocation8 + $0x538] sm:$0xff]
          %v2238 = vld [vmem:[#allocation8 + $0x540] sm:$0xff]
          %v2239 = vld [vmem:[#allocation8 + $0x548] sm:$0xff]
          %v2240 = vld [vmem:[#allocation8 + $0x550] sm:$0xff]
          %v2241 = vld [vmem:[#allocation8 + $0x558] sm:$0xff]
          %v2242 = vld [vmem:[#allocation8 + $0x560] sm:$0xff]
          %v2243 = vld [vmem:[#allocation8 + $0x568] sm:$0xff]
          %v2244 = vld [vmem:[#allocation8 + $0x570] sm:$0xff]
          %v2245 = vld [vmem:[#allocation8 + $0x578] sm:$0xff]
          %v2246 = vld [vmem:[#allocation8 + $0x580] sm:$0xff]
          %v2247 = vld [vmem:[#allocation8 + $0x588] sm:$0xff]
          %v2248 = vld [vmem:[#allocation8 + $0x590] sm:$0xff]
          %v2249 = vld [vmem:[#allocation8 + $0x598] sm:$0xff]
          %v2250 = vld [vmem:[#allocation8 + $0x5a0] sm:$0xff]
          %v2251 = vld [vmem:[#allocation8 + $0x5a8] sm:$0xff]
          %v2252 = vld [vmem:[#allocation8 + $0x5b0] sm:$0xff]
          %v2253 = vld [vmem:[#allocation8 + $0x5b8] sm:$0xff]
          %v2254 = vld [vmem:[#allocation8 + $0x5c0] sm:$0xff]
          %v2255 = vld [vmem:[#allocation8 + $0x5c8] sm:$0xff]
          %v2256 = vld [vmem:[#allocation8 + $0x5d0] sm:$0xff]
          %v2257 = vld [vmem:[#allocation8 + $0x5d8] sm:$0xff]
          %v2258 = vld [vmem:[#allocation8 + $0x5e0] sm:$0xff]
          %v2259 = vld [vmem:[#allocation8 + $0x5e8] sm:$0xff]
          %v2260 = vld [vmem:[#allocation8 + $0x5f0] sm:$0xff]
          %v2261 = vld [vmem:[#allocation8 + $0x5f8] sm:$0xff]
          %v2262 = vld [vmem:[#allocation8 + $0x600] sm:$0xff]
          %v2263 = vld [vmem:[#allocation8 + $0x608] sm:$0xff]
          %v2264 = vld [vmem:[#allocation8 + $0x610] sm:$0xff]
          %v2265 = vld [vmem:[#allocation8 + $0x618] sm:$0xff]
          %v2266 = vld [vmem:[#allocation8 + $0x620] sm:$0xff]
          %v2267 = vld [vmem:[#allocation8 + $0x628] sm:$0xff]
          %v2268 = vld [vmem:[#allocation8 + $0x630] sm:$0xff]
          %v2269 = vld [vmem:[#allocation8 + $0x638] sm:$0xff]
          %v2270 = vld [vmem:[#allocation8 + $0x640] sm:$0xff]
          %v2271 = vld [vmem:[#allocation8 + $0x648] sm:$0xff]
          %v2272 = vld [vmem:[#allocation8 + $0x650] sm:$0xff]
          %v2273 = vld [vmem:[#allocation8 + $0x658] sm:$0xff]
          %v2274 = vld [vmem:[#allocation8 + $0x660] sm:$0xff]
          %v2275 = vld [vmem:[#allocation8 + $0x668] sm:$0xff]
          %v2276 = vld [vmem:[#allocation8 + $0x670] sm:$0xff]
          %v2277 = vld [vmem:[#allocation8 + $0x678] sm:$0xff]
          %v2278 = vld [vmem:[#allocation8 + $0x680] sm:$0xff]
          %v2279 = vld [vmem:[#allocation8 + $0x688] sm:$0xff]
          %v2280 = vld [vmem:[#allocation8 + $0x690] sm:$0xff]
          %v2281 = vld [vmem:[#allocation8 + $0x698] sm:$0xff]
          %v2282 = vld [vmem:[#allocation8 + $0x6a0] sm:$0xff]
          %v2283 = vld [vmem:[#allocation8 + $0x6a8] sm:$0xff]
          %v2284 = vld [vmem:[#allocation8 + $0x6b0] sm:$0xff]
          %v2285 = vld [vmem:[#allocation8 + $0x6b8] sm:$0xff]
          %v2286 = vld [vmem:[#allocation8 + $0x6c0] sm:$0xff]
          %v2287 = vld [vmem:[#allocation8 + $0x6c8] sm:$0xff]
          %v2288 = vld [vmem:[#allocation8 + $0x6d0] sm:$0xff]
          %v2289 = vld [vmem:[#allocation8 + $0x6d8] sm:$0xff]
          %v2290 = vld [vmem:[#allocation8 + $0x6e0] sm:$0xff]
          %v2291 = vld [vmem:[#allocation8 + $0x6e8] sm:$0xff]
          %v2292 = vld [vmem:[#allocation8 + $0x6f0] sm:$0xff]
          %v2293 = vld [vmem:[#allocation8 + $0x6f8] sm:$0xff]
          %v2294 = vld [vmem:[#allocation8 + $0x700] sm:$0xff]
          %v2295 = vld [vmem:[#allocation8 + $0x708] sm:$0xff]
          %v2296 = vld [vmem:[#allocation8 + $0x710] sm:$0xff]
          %v2297 = vld [vmem:[#allocation8 + $0x718] sm:$0xff]
          %v2298 = vld [vmem:[#allocation8 + $0x720] sm:$0xff]
          %v2299 = vld [vmem:[#allocation8 + $0x728] sm:$0xff]
          %v2300 = vld [vmem:[#allocation8 + $0x730] sm:$0xff]
          %v2301 = vld [vmem:[#allocation8 + $0x738] sm:$0xff]
          %v2302 = vld [vmem:[#allocation8 + $0x740] sm:$0xff]
          %v2303 = vld [vmem:[#allocation8 + $0x748] sm:$0xff]
          %v2304 = vld [vmem:[#allocation8 + $0x750] sm:$0xff]
          %v2305 = vld [vmem:[#allocation8 + $0x758] sm:$0xff]
          %v2306 = vld [vmem:[#allocation8 + $0x760] sm:$0xff]
          %v2307 = vld [vmem:[#allocation8 + $0x768] sm:$0xff]
          %v2308 = vld [vmem:[#allocation8 + $0x770] sm:$0xff]
          %v2309 = vld [vmem:[#allocation8 + $0x778] sm:$0xff]
          %v2310 = vld [vmem:[#allocation8 + $0x780] sm:$0xff]
          %v2311 = vld [vmem:[#allocation8 + $0x788] sm:$0xff]
          %v2312 = vld [vmem:[#allocation8 + $0x790] sm:$0xff]
          %v2313 = vld [vmem:[#allocation8 + $0x798] sm:$0xff]
          %v2314 = vld [vmem:[#allocation8 + $0x7a0] sm:$0xff]
          %v2315 = vld [vmem:[#allocation8 + $0x7a8] sm:$0xff]
          %v2316 = vld [vmem:[#allocation8 + $0x7b0] sm:$0xff]
          %v2317 = vld [vmem:[#allocation8 + $0x7b8] sm:$0xff]
          %v2318 = vld [vmem:[#allocation8 + $0x7c0] sm:$0xff]
          %v2319 = vld [vmem:[#allocation8 + $0x7c8] sm:$0xff]
          %v2320 = vld [vmem:[#allocation8 + $0x7d0] sm:$0xff]
          %v2321 = vld [vmem:[#allocation8 + $0x7d8] sm:$0xff]
          %v2322 = vld [vmem:[#allocation8 + $0x7e0] sm:$0xff]
          %v2323 = vld [vmem:[#allocation8 + $0x7e8] sm:$0xff]
          %v2324 = vld [vmem:[#allocation8 + $0x7f0] sm:$0xff]
          %v2325 = vld [vmem:[#allocation8 + $0x7f8] sm:$0xff]
          %v2326 = vld [vmem:[#allocation10] sm:$0xf]
          %v2583 = vunpack.c.l.b16 %v2070
          %v2584 = vunpack.c.h.b16 %v2070
          %v2585 = vunpack.c.l.b16 %v2071
          %v2586 = vunpack.c.h.b16 %v2071
          %v2587 = vunpack.c.l.b16 %v2072
          %v2588 = vunpack.c.h.b16 %v2072
          %v2589 = vunpack.c.l.b16 %v2073
          %v2590 = vunpack.c.h.b16 %v2073
          %v2591 = vunpack.c.l.b16 %v2074
          %v2592 = vunpack.c.h.b16 %v2074
          %v2593 = vunpack.c.l.b16 %v2075
          %v2594 = vunpack.c.h.b16 %v2075
          %v2595 = vunpack.c.l.b16 %v2076
          %v2596 = vunpack.c.h.b16 %v2076
          %v2597 = vunpack.c.l.b16 %v2077
          %v2598 = vunpack.c.h.b16 %v2077
          %v2599 = vunpack.c.l.b16 %v2078
          %v2600 = vunpack.c.h.b16 %v2078
          %v2601 = vunpack.c.l.b16 %v2079
          %v2602 = vunpack.c.h.b16 %v2079
          %v2603 = vunpack.c.l.b16 %v2080
          %v2604 = vunpack.c.h.b16 %v2080
          %v2605 = vunpack.c.l.b16 %v2081
          %v2606 = vunpack.c.h.b16 %v2081
          %v2607 = vunpack.c.l.b16 %v2082
          %v2608 = vunpack.c.h.b16 %v2082
          %v2609 = vunpack.c.l.b16 %v2083
          %v2610 = vunpack.c.h.b16 %v2083
          %v2611 = vunpack.c.l.b16 %v2084
          %v2612 = vunpack.c.h.b16 %v2084
          %v2613 = vunpack.c.l.b16 %v2085
          %v2614 = vunpack.c.h.b16 %v2085
          %v2615 = vunpack.c.l.b16 %v2086
          %v2616 = vunpack.c.h.b16 %v2086
          %v2617 = vunpack.c.l.b16 %v2087
          %v2618 = vunpack.c.h.b16 %v2087
          %v2619 = vunpack.c.l.b16 %v2088
          %v2620 = vunpack.c.h.b16 %v2088
          %v2621 = vunpack.c.l.b16 %v2089
          %v2622 = vunpack.c.h.b16 %v2089
          %v2623 = vunpack.c.l.b16 %v2090
          %v2624 = vunpack.c.h.b16 %v2090
          %v2625 = vunpack.c.l.b16 %v2091
          %v2626 = vunpack.c.h.b16 %v2091
          %v2627 = vunpack.c.l.b16 %v2092
          %v2628 = vunpack.c.h.b16 %v2092
          %v2629 = vunpack.c.l.b16 %v2093
          %v2630 = vunpack.c.h.b16 %v2093
          %v2631 = vunpack.c.l.b16 %v2094
          %v2632 = vunpack.c.h.b16 %v2094
          %v2633 = vunpack.c.l.b16 %v2095
          %v2634 = vunpack.c.h.b16 %v2095
          %v2635 = vunpack.c.l.b16 %v2096
          %v2636 = vunpack.c.h.b16 %v2096
          %v2637 = vunpack.c.l.b16 %v2097
          %v2638 = vunpack.c.h.b16 %v2097
          %v2639 = vunpack.c.l.b16 %v2098
          %v2640 = vunpack.c.h.b16 %v2098
          %v2641 = vunpack.c.l.b16 %v2099
          %v2642 = vunpack.c.h.b16 %v2099
          %v2643 = vunpack.c.l.b16 %v2100
          %v2644 = vunpack.c.h.b16 %v2100
          %v2645 = vunpack.c.l.b16 %v2101
          %v2646 = vunpack.c.h.b16 %v2101
          %v2647 = vunpack.c.l.b16 %v2102
          %v2648 = vunpack.c.h.b16 %v2102
          %v2649 = vunpack.c.l.b16 %v2103
          %v2650 = vunpack.c.h.b16 %v2103
          %v2651 = vunpack.c.l.b16 %v2104
          %v2652 = vunpack.c.h.b16 %v2104
          %v2653 = vunpack.c.l.b16 %v2105
          %v2654 = vunpack.c.h.b16 %v2105
          %v2655 = vunpack.c.l.b16 %v2106
          %v2656 = vunpack.c.h.b16 %v2106
          %v2657 = vunpack.c.l.b16 %v2107
          %v2658 = vunpack.c.h.b16 %v2107
          %v2659 = vunpack.c.l.b16 %v2108
          %v2660 = vunpack.c.h.b16 %v2108
          %v2661 = vunpack.c.l.b16 %v2109
          %v2662 = vunpack.c.h.b16 %v2109
          %v2663 = vunpack.c.l.b16 %v2110
          %v2664 = vunpack.c.h.b16 %v2110
          %v2665 = vunpack.c.l.b16 %v2111
          %v2666 = vunpack.c.h.b16 %v2111
          %v2667 = vunpack.c.l.b16 %v2112
          %v2668 = vunpack.c.h.b16 %v2112
          %v2669 = vunpack.c.l.b16 %v2113
          %v2670 = vunpack.c.h.b16 %v2113
          %v2671 = vunpack.c.l.b16 %v2114
          %v2672 = vunpack.c.h.b16 %v2114
          %v2673 = vunpack.c.l.b16 %v2115
          %v2674 = vunpack.c.h.b16 %v2115
          %v2675 = vunpack.c.l.b16 %v2116
          %v2676 = vunpack.c.h.b16 %v2116
          %v2677 = vunpack.c.l.b16 %v2117
          %v2678 = vunpack.c.h.b16 %v2117
          %v2679 = vunpack.c.l.b16 %v2118
          %v2680 = vunpack.c.h.b16 %v2118
          %v2681 = vunpack.c.l.b16 %v2119
          %v2682 = vunpack.c.h.b16 %v2119
          %v2683 = vunpack.c.l.b16 %v2120
          %v2684 = vunpack.c.h.b16 %v2120
          %v2685 = vunpack.c.l.b16 %v2121
          %v2686 = vunpack.c.h.b16 %v2121
          %v2687 = vunpack.c.l.b16 %v2122
          %v2688 = vunpack.c.h.b16 %v2122
          %v2689 = vunpack.c.l.b16 %v2123
          %v2690 = vunpack.c.h.b16 %v2123
          %v2691 = vunpack.c.l.b16 %v2124
          %v2692 = vunpack.c.h.b16 %v2124
          %v2693 = vunpack.c.l.b16 %v2125
          %v2694 = vunpack.c.h.b16 %v2125
          %v2695 = vunpack.c.l.b16 %v2126
          %v2696 = vunpack.c.h.b16 %v2126
          %v2697 = vunpack.c.l.b16 %v2127
          %v2698 = vunpack.c.h.b16 %v2127
          %v2699 = vunpack.c.l.b16 %v2128
          %v2700 = vunpack.c.h.b16 %v2128
          %v2701 = vunpack.c.l.b16 %v2129
          %v2702 = vunpack.c.h.b16 %v2129
          %v2703 = vunpack.c.l.b16 %v2130
          %v2704 = vunpack.c.h.b16 %v2130
          %v2705 = vunpack.c.l.b16 %v2131
          %v2706 = vunpack.c.h.b16 %v2131
          %v2707 = vunpack.c.l.b16 %v2132
          %v2708 = vunpack.c.h.b16 %v2132
          %v2709 = vunpack.c.l.b16 %v2133
          %v2710 = vunpack.c.h.b16 %v2133
          %v2711 = vunpack.c.l.b16 %v2134
          %v2712 = vunpack.c.h.b16 %v2134
          %v2713 = vunpack.c.l.b16 %v2135
          %v2714 = vunpack.c.h.b16 %v2135
          %v2715 = vunpack.c.l.b16 %v2136
          %v2716 = vunpack.c.h.b16 %v2136
          %v2717 = vunpack.c.l.b16 %v2137
          %v2718 = vunpack.c.h.b16 %v2137
          %v2719 = vunpack.c.l.b16 %v2138
          %v2720 = vunpack.c.h.b16 %v2138
          %v2721 = vunpack.c.l.b16 %v2139
          %v2722 = vunpack.c.h.b16 %v2139
          %v2723 = vunpack.c.l.b16 %v2140
          %v2724 = vunpack.c.h.b16 %v2140
          %v2725 = vunpack.c.l.b16 %v2141
          %v2726 = vunpack.c.h.b16 %v2141
          %v2727 = vunpack.c.l.b16 %v2142
          %v2728 = vunpack.c.h.b16 %v2142
          %v2729 = vunpack.c.l.b16 %v2143
          %v2730 = vunpack.c.h.b16 %v2143
          %v2731 = vunpack.c.l.b16 %v2144
          %v2732 = vunpack.c.h.b16 %v2144
          %v2733 = vunpack.c.l.b16 %v2145
          %v2734 = vunpack.c.h.b16 %v2145
          %v2735 = vunpack.c.l.b16 %v2146
          %v2736 = vunpack.c.h.b16 %v2146
          %v2737 = vunpack.c.l.b16 %v2147
          %v2738 = vunpack.c.h.b16 %v2147
          %v2739 = vunpack.c.l.b16 %v2148
          %v2740 = vunpack.c.h.b16 %v2148
          %v2741 = vunpack.c.l.b16 %v2149
          %v2742 = vunpack.c.h.b16 %v2149
          %v2743 = vunpack.c.l.b16 %v2150
          %v2744 = vunpack.c.h.b16 %v2150
          %v2745 = vunpack.c.l.b16 %v2151
          %v2746 = vunpack.c.h.b16 %v2151
          %v2747 = vunpack.c.l.b16 %v2152
          %v2748 = vunpack.c.h.b16 %v2152
          %v2749 = vunpack.c.l.b16 %v2153
          %v2750 = vunpack.c.h.b16 %v2153
          %v2751 = vunpack.c.l.b16 %v2154
          %v2752 = vunpack.c.h.b16 %v2154
          %v2753 = vunpack.c.l.b16 %v2155
          %v2754 = vunpack.c.h.b16 %v2155
          %v2755 = vunpack.c.l.b16 %v2156
          %v2756 = vunpack.c.h.b16 %v2156
          %v2757 = vunpack.c.l.b16 %v2157
          %v2758 = vunpack.c.h.b16 %v2157
          %v2759 = vunpack.c.l.b16 %v2158
          %v2760 = vunpack.c.h.b16 %v2158
          %v2761 = vunpack.c.l.b16 %v2159
          %v2762 = vunpack.c.h.b16 %v2159
          %v2763 = vunpack.c.l.b16 %v2160
          %v2764 = vunpack.c.h.b16 %v2160
          %v2765 = vunpack.c.l.b16 %v2161
          %v2766 = vunpack.c.h.b16 %v2161
          %v2767 = vunpack.c.l.b16 %v2162
          %v2768 = vunpack.c.h.b16 %v2162
          %v2769 = vunpack.c.l.b16 %v2163
          %v2770 = vunpack.c.h.b16 %v2163
          %v2771 = vunpack.c.l.b16 %v2164
          %v2772 = vunpack.c.h.b16 %v2164
          %v2773 = vunpack.c.l.b16 %v2165
          %v2774 = vunpack.c.h.b16 %v2165
          %v2775 = vunpack.c.l.b16 %v2166
          %v2776 = vunpack.c.h.b16 %v2166
          %v2777 = vunpack.c.l.b16 %v2167
          %v2778 = vunpack.c.h.b16 %v2167
          %v2779 = vunpack.c.l.b16 %v2168
          %v2780 = vunpack.c.h.b16 %v2168
          %v2781 = vunpack.c.l.b16 %v2169
          %v2782 = vunpack.c.h.b16 %v2169
          %v2783 = vunpack.c.l.b16 %v2170
          %v2784 = vunpack.c.h.b16 %v2170
          %v2785 = vunpack.c.l.b16 %v2171
          %v2786 = vunpack.c.h.b16 %v2171
          %v2787 = vunpack.c.l.b16 %v2172
          %v2788 = vunpack.c.h.b16 %v2172
          %v2789 = vunpack.c.l.b16 %v2173
          %v2790 = vunpack.c.h.b16 %v2173
          %v2791 = vunpack.c.l.b16 %v2174
          %v2792 = vunpack.c.h.b16 %v2174
          %v2793 = vunpack.c.l.b16 %v2175
          %v2794 = vunpack.c.h.b16 %v2175
          %v2795 = vunpack.c.l.b16 %v2176
          %v2796 = vunpack.c.h.b16 %v2176
          %v2797 = vunpack.c.l.b16 %v2177
          %v2798 = vunpack.c.h.b16 %v2177
          %v2799 = vunpack.c.l.b16 %v2178
          %v2800 = vunpack.c.h.b16 %v2178
          %v2801 = vunpack.c.l.b16 %v2179
          %v2802 = vunpack.c.h.b16 %v2179
          %v2803 = vunpack.c.l.b16 %v2180
          %v2804 = vunpack.c.h.b16 %v2180
          %v2805 = vunpack.c.l.b16 %v2181
          %v2806 = vunpack.c.h.b16 %v2181
          %v2807 = vunpack.c.l.b16 %v2182
          %v2808 = vunpack.c.h.b16 %v2182
          %v2809 = vunpack.c.l.b16 %v2183
          %v2810 = vunpack.c.h.b16 %v2183
          %v2811 = vunpack.c.l.b16 %v2184
          %v2812 = vunpack.c.h.b16 %v2184
          %v2813 = vunpack.c.l.b16 %v2185
          %v2814 = vunpack.c.h.b16 %v2185
          %v2815 = vunpack.c.l.b16 %v2186
          %v2816 = vunpack.c.h.b16 %v2186
          %v2817 = vunpack.c.l.b16 %v2187
          %v2818 = vunpack.c.h.b16 %v2187
          %v2819 = vunpack.c.l.b16 %v2188
          %v2820 = vunpack.c.h.b16 %v2188
          %v2821 = vunpack.c.l.b16 %v2189
          %v2822 = vunpack.c.h.b16 %v2189
          %v2823 = vunpack.c.l.b16 %v2190
          %v2824 = vunpack.c.h.b16 %v2190
          %v2825 = vunpack.c.l.b16 %v2191
          %v2826 = vunpack.c.h.b16 %v2191
          %v2827 = vunpack.c.l.b16 %v2192
          %v2828 = vunpack.c.h.b16 %v2192
          %v2829 = vunpack.c.l.b16 %v2193
          %v2830 = vunpack.c.h.b16 %v2193
          %v2831 = vunpack.c.l.b16 %v2194
          %v2832 = vunpack.c.h.b16 %v2194
          %v2833 = vunpack.c.l.b16 %v2195
          %v2834 = vunpack.c.h.b16 %v2195
          %v2835 = vunpack.c.l.b16 %v2196
          %v2836 = vunpack.c.h.b16 %v2196
          %v2837 = vunpack.c.l.b16 %v2197
          %v2838 = vunpack.c.h.b16 %v2197
          %v2839 = vunpack.c.l.b16 %v2198
          %v2840 = vunpack.c.h.b16 %v2198
          %v2841 = vunpack.c.l.b16 %v2199
          %v2842 = vunpack.c.h.b16 %v2199
          %v2843 = vunpack.c.l.b16 %v2200
          %v2844 = vunpack.c.h.b16 %v2200
          %v2845 = vunpack.c.l.b16 %v2201
          %v2846 = vunpack.c.h.b16 %v2201
          %v2847 = vunpack.c.l.b16 %v2202
          %v2848 = vunpack.c.h.b16 %v2202
          %v2849 = vunpack.c.l.b16 %v2203
          %v2850 = vunpack.c.h.b16 %v2203
          %v2851 = vunpack.c.l.b16 %v2204
          %v2852 = vunpack.c.h.b16 %v2204
          %v2853 = vunpack.c.l.b16 %v2205
          %v2854 = vunpack.c.h.b16 %v2205
          %v2855 = vunpack.c.l.b16 %v2206
          %v2856 = vunpack.c.h.b16 %v2206
          %v2857 = vunpack.c.l.b16 %v2207
          %v2858 = vunpack.c.h.b16 %v2207
          %v2859 = vunpack.c.l.b16 %v2208
          %v2860 = vunpack.c.h.b16 %v2208
          %v2861 = vunpack.c.l.b16 %v2209
          %v2862 = vunpack.c.h.b16 %v2209
          %v2863 = vunpack.c.l.b16 %v2210
          %v2864 = vunpack.c.h.b16 %v2210
          %v2865 = vunpack.c.l.b16 %v2211
          %v2866 = vunpack.c.h.b16 %v2211
          %v2867 = vunpack.c.l.b16 %v2212
          %v2868 = vunpack.c.h.b16 %v2212
          %v2869 = vunpack.c.l.b16 %v2213
          %v2870 = vunpack.c.h.b16 %v2213
          %v2871 = vunpack.c.l.b16 %v2214
          %v2872 = vunpack.c.h.b16 %v2214
          %v2873 = vunpack.c.l.b16 %v2215
          %v2874 = vunpack.c.h.b16 %v2215
          %v2875 = vunpack.c.l.b16 %v2216
          %v2876 = vunpack.c.h.b16 %v2216
          %v2877 = vunpack.c.l.b16 %v2217
          %v2878 = vunpack.c.h.b16 %v2217
          %v2879 = vunpack.c.l.b16 %v2218
          %v2880 = vunpack.c.h.b16 %v2218
          %v2881 = vunpack.c.l.b16 %v2219
          %v2882 = vunpack.c.h.b16 %v2219
          %v2883 = vunpack.c.l.b16 %v2220
          %v2884 = vunpack.c.h.b16 %v2220
          %v2885 = vunpack.c.l.b16 %v2221
          %v2886 = vunpack.c.h.b16 %v2221
          %v2887 = vunpack.c.l.b16 %v2222
          %v2888 = vunpack.c.h.b16 %v2222
          %v2889 = vunpack.c.l.b16 %v2223
          %v2890 = vunpack.c.h.b16 %v2223
          %v2891 = vunpack.c.l.b16 %v2224
          %v2892 = vunpack.c.h.b16 %v2224
          %v2893 = vunpack.c.l.b16 %v2225
          %v2894 = vunpack.c.h.b16 %v2225
          %v2895 = vunpack.c.l.b16 %v2226
          %v2896 = vunpack.c.h.b16 %v2226
          %v2897 = vunpack.c.l.b16 %v2227
          %v2898 = vunpack.c.h.b16 %v2227
          %v2899 = vunpack.c.l.b16 %v2228
          %v2900 = vunpack.c.h.b16 %v2228
          %v2901 = vunpack.c.l.b16 %v2229
          %v2902 = vunpack.c.h.b16 %v2229
          %v2903 = vunpack.c.l.b16 %v2230
          %v2904 = vunpack.c.h.b16 %v2230
          %v2905 = vunpack.c.l.b16 %v2231
          %v2906 = vunpack.c.h.b16 %v2231
          %v2907 = vunpack.c.l.b16 %v2232
          %v2908 = vunpack.c.h.b16 %v2232
          %v2909 = vunpack.c.l.b16 %v2233
          %v2910 = vunpack.c.h.b16 %v2233
          %v2911 = vunpack.c.l.b16 %v2234
          %v2912 = vunpack.c.h.b16 %v2234
          %v2913 = vunpack.c.l.b16 %v2235
          %v2914 = vunpack.c.h.b16 %v2235
          %v2915 = vunpack.c.l.b16 %v2236
          %v2916 = vunpack.c.h.b16 %v2236
          %v2917 = vunpack.c.l.b16 %v2237
          %v2918 = vunpack.c.h.b16 %v2237
          %v2919 = vunpack.c.l.b16 %v2238
          %v2920 = vunpack.c.h.b16 %v2238
          %v2921 = vunpack.c.l.b16 %v2239
          %v2922 = vunpack.c.h.b16 %v2239
          %v2923 = vunpack.c.l.b16 %v2240
          %v2924 = vunpack.c.h.b16 %v2240
          %v2925 = vunpack.c.l.b16 %v2241
          %v2926 = vunpack.c.h.b16 %v2241
          %v2927 = vunpack.c.l.b16 %v2242
          %v2928 = vunpack.c.h.b16 %v2242
          %v2929 = vunpack.c.l.b16 %v2243
          %v2930 = vunpack.c.h.b16 %v2243
          %v2931 = vunpack.c.l.b16 %v2244
          %v2932 = vunpack.c.h.b16 %v2244
          %v2933 = vunpack.c.l.b16 %v2245
          %v2934 = vunpack.c.h.b16 %v2245
          %v2935 = vunpack.c.l.b16 %v2246
          %v2936 = vunpack.c.h.b16 %v2246
          %v2937 = vunpack.c.l.b16 %v2247
          %v2938 = vunpack.c.h.b16 %v2247
          %v2939 = vunpack.c.l.b16 %v2248
          %v2940 = vunpack.c.h.b16 %v2248
          %v2941 = vunpack.c.l.b16 %v2249
          %v2942 = vunpack.c.h.b16 %v2249
          %v2943 = vunpack.c.l.b16 %v2250
          %v2944 = vunpack.c.h.b16 %v2250
          %v2945 = vunpack.c.l.b16 %v2251
          %v2946 = vunpack.c.h.b16 %v2251
          %v2947 = vunpack.c.l.b16 %v2252
          %v2948 = vunpack.c.h.b16 %v2252
          %v2949 = vunpack.c.l.b16 %v2253
          %v2950 = vunpack.c.h.b16 %v2253
          %v2951 = vunpack.c.l.b16 %v2254
          %v2952 = vunpack.c.h.b16 %v2254
          %v2953 = vunpack.c.l.b16 %v2255
          %v2954 = vunpack.c.h.b16 %v2255
          %v2955 = vunpack.c.l.b16 %v2256
          %v2956 = vunpack.c.h.b16 %v2256
          %v2957 = vunpack.c.l.b16 %v2257
          %v2958 = vunpack.c.h.b16 %v2257
          %v2959 = vunpack.c.l.b16 %v2258
          %v2960 = vunpack.c.h.b16 %v2258
          %v2961 = vunpack.c.l.b16 %v2259
          %v2962 = vunpack.c.h.b16 %v2259
          %v2963 = vunpack.c.l.b16 %v2260
          %v2964 = vunpack.c.h.b16 %v2260
          %v2965 = vunpack.c.l.b16 %v2261
          %v2966 = vunpack.c.h.b16 %v2261
          %v2967 = vunpack.c.l.b16 %v2262
          %v2968 = vunpack.c.h.b16 %v2262
          %v2969 = vunpack.c.l.b16 %v2263
          %v2970 = vunpack.c.h.b16 %v2263
          %v2971 = vunpack.c.l.b16 %v2264
          %v2972 = vunpack.c.h.b16 %v2264
          %v2973 = vunpack.c.l.b16 %v2265
          %v2974 = vunpack.c.h.b16 %v2265
          %v2975 = vunpack.c.l.b16 %v2266
          %v2976 = vunpack.c.h.b16 %v2266
          %v2977 = vunpack.c.l.b16 %v2267
          %v2978 = vunpack.c.h.b16 %v2267
          %v2979 = vunpack.c.l.b16 %v2268
          %v2980 = vunpack.c.h.b16 %v2268
          %v2981 = vunpack.c.l.b16 %v2269
          %v2982 = vunpack.c.h.b16 %v2269
          %v2983 = vunpack.c.l.b16 %v2270
          %v2984 = vunpack.c.h.b16 %v2270
          %v2985 = vunpack.c.l.b16 %v2271
          %v2986 = vunpack.c.h.b16 %v2271
          %v2987 = vunpack.c.l.b16 %v2272
          %v2988 = vunpack.c.h.b16 %v2272
          %v2989 = vunpack.c.l.b16 %v2273
          %v2990 = vunpack.c.h.b16 %v2273
          %v2991 = vunpack.c.l.b16 %v2274
          %v2992 = vunpack.c.h.b16 %v2274
          %v2993 = vunpack.c.l.b16 %v2275
          %v2994 = vunpack.c.h.b16 %v2275
          %v2995 = vunpack.c.l.b16 %v2276
          %v2996 = vunpack.c.h.b16 %v2276
          %v2997 = vunpack.c.l.b16 %v2277
          %v2998 = vunpack.c.h.b16 %v2277
          %v2999 = vunpack.c.l.b16 %v2278
          %v3000 = vunpack.c.h.b16 %v2278
          %v3001 = vunpack.c.l.b16 %v2279
          %v3002 = vunpack.c.h.b16 %v2279
          %v3003 = vunpack.c.l.b16 %v2280
          %v3004 = vunpack.c.h.b16 %v2280
          %v3005 = vunpack.c.l.b16 %v2281
          %v3006 = vunpack.c.h.b16 %v2281
          %v3007 = vunpack.c.l.b16 %v2282
          %v3008 = vunpack.c.h.b16 %v2282
          %v3009 = vunpack.c.l.b16 %v2283
          %v3010 = vunpack.c.h.b16 %v2283
          %v3011 = vunpack.c.l.b16 %v2284
          %v3012 = vunpack.c.h.b16 %v2284
          %v3013 = vunpack.c.l.b16 %v2285
          %v3014 = vunpack.c.h.b16 %v2285
          %v3015 = vunpack.c.l.b16 %v2286
          %v3016 = vunpack.c.h.b16 %v2286
          %v3017 = vunpack.c.l.b16 %v2287
          %v3018 = vunpack.c.h.b16 %v2287
          %v3019 = vunpack.c.l.b16 %v2288
          %v3020 = vunpack.c.h.b16 %v2288
          %v3021 = vunpack.c.l.b16 %v2289
          %v3022 = vunpack.c.h.b16 %v2289
          %v3023 = vunpack.c.l.b16 %v2290
          %v3024 = vunpack.c.h.b16 %v2290
          %v3025 = vunpack.c.l.b16 %v2291
          %v3026 = vunpack.c.h.b16 %v2291
          %v3027 = vunpack.c.l.b16 %v2292
          %v3028 = vunpack.c.h.b16 %v2292
          %v3029 = vunpack.c.l.b16 %v2293
          %v3030 = vunpack.c.h.b16 %v2293
          %v3031 = vunpack.c.l.b16 %v2294
          %v3032 = vunpack.c.h.b16 %v2294
          %v3033 = vunpack.c.l.b16 %v2295
          %v3034 = vunpack.c.h.b16 %v2295
          %v3035 = vunpack.c.l.b16 %v2296
          %v3036 = vunpack.c.h.b16 %v2296
          %v3037 = vunpack.c.l.b16 %v2297
          %v3038 = vunpack.c.h.b16 %v2297
          %v3039 = vunpack.c.l.b16 %v2298
          %v3040 = vunpack.c.h.b16 %v2298
          %v3041 = vunpack.c.l.b16 %v2299
          %v3042 = vunpack.c.h.b16 %v2299
          %v3043 = vunpack.c.l.b16 %v2300
          %v3044 = vunpack.c.h.b16 %v2300
          %v3045 = vunpack.c.l.b16 %v2301
          %v3046 = vunpack.c.h.b16 %v2301
          %v3047 = vunpack.c.l.b16 %v2302
          %v3048 = vunpack.c.h.b16 %v2302
          %v3049 = vunpack.c.l.b16 %v2303
          %v3050 = vunpack.c.h.b16 %v2303
          %v3051 = vunpack.c.l.b16 %v2304
          %v3052 = vunpack.c.h.b16 %v2304
          %v3053 = vunpack.c.l.b16 %v2305
          %v3054 = vunpack.c.h.b16 %v2305
          %v3055 = vunpack.c.l.b16 %v2306
          %v3056 = vunpack.c.h.b16 %v2306
          %v3057 = vunpack.c.l.b16 %v2307
          %v3058 = vunpack.c.h.b16 %v2307
          %v3059 = vunpack.c.l.b16 %v2308
          %v3060 = vunpack.c.h.b16 %v2308
          %v3061 = vunpack.c.l.b16 %v2309
          %v3062 = vunpack.c.h.b16 %v2309
          %v3063 = vunpack.c.l.b16 %v2310
          %v3064 = vunpack.c.h.b16 %v2310
          %v3065 = vunpack.c.l.b16 %v2311
          %v3066 = vunpack.c.h.b16 %v2311
          %v3067 = vunpack.c.l.b16 %v2312
          %v3068 = vunpack.c.h.b16 %v2312
          %v3069 = vunpack.c.l.b16 %v2313
          %v3070 = vunpack.c.h.b16 %v2313
          %v3071 = vunpack.c.l.b16 %v2314
          %v3072 = vunpack.c.h.b16 %v2314
          %v3073 = vunpack.c.l.b16 %v2315
          %v3074 = vunpack.c.h.b16 %v2315
          %v3075 = vunpack.c.l.b16 %v2316
          %v3076 = vunpack.c.h.b16 %v2316
          %v3077 = vunpack.c.l.b16 %v2317
          %v3078 = vunpack.c.h.b16 %v2317
          %v3079 = vunpack.c.l.b16 %v2318
          %v3080 = vunpack.c.h.b16 %v2318
          %v3081 = vunpack.c.l.b16 %v2319
          %v3082 = vunpack.c.h.b16 %v2319
          %v3083 = vunpack.c.l.b16 %v2320
          %v3084 = vunpack.c.h.b16 %v2320
          %v3085 = vunpack.c.l.b16 %v2321
          %v3086 = vunpack.c.h.b16 %v2321
          %v3087 = vunpack.c.l.b16 %v2322
          %v3088 = vunpack.c.h.b16 %v2322
          %v3089 = vunpack.c.l.b16 %v2323
          %v3090 = vunpack.c.h.b16 %v2323
          %v3091 = vunpack.c.l.b16 %v2324
          %v3092 = vunpack.c.h.b16 %v2324
          %v3093 = vunpack.c.l.b16 %v2325
          %v3094 = vunpack.c.h.b16 %v2325
          %v3095 = vpack.c.b16 %v2587, %v2583
          %v3096 = vpack.c.b16 %v2588, %v2584
          %v3097 = vpack.c.b16 %v2589, %v2585
          %v3098 = vpack.c.b16 %v2590, %v2586
          %v3099 = vpack.c.b16 %v2595, %v2591
          %v3100 = vpack.c.b16 %v2596, %v2592
          %v3101 = vpack.c.b16 %v2597, %v2593
          %v3102 = vpack.c.b16 %v2598, %v2594
          %v3103 = vpack.c.b16 %v2603, %v2599
          %v3104 = vpack.c.b16 %v2604, %v2600
          %v3105 = vpack.c.b16 %v2605, %v2601
          %v3106 = vpack.c.b16 %v2606, %v2602
          %v3107 = vpack.c.b16 %v2611, %v2607
          %v3108 = vpack.c.b16 %v2612, %v2608
          %v3109 = vpack.c.b16 %v2613, %v2609
          %v3110 = vpack.c.b16 %v2614, %v2610
          %v3111 = vpack.c.b16 %v2619, %v2615
          %v3112 = vpack.c.b16 %v2620, %v2616
          %v3113 = vpack.c.b16 %v2621, %v2617
          %v3114 = vpack.c.b16 %v2622, %v2618
          %v3115 = vpack.c.b16 %v2627, %v2623
          %v3116 = vpack.c.b16 %v2628, %v2624
          %v3117 = vpack.c.b16 %v2629, %v2625
          %v3118 = vpack.c.b16 %v2630, %v2626
          %v3119 = vpack.c.b16 %v2635, %v2631
          %v3120 = vpack.c.b16 %v2636, %v2632
          %v3121 = vpack.c.b16 %v2637, %v2633
          %v3122 = vpack.c.b16 %v2638, %v2634
          %v3123 = vpack.c.b16 %v2643, %v2639
          %v3124 = vpack.c.b16 %v2644, %v2640
          %v3125 = vpack.c.b16 %v2645, %v2641
          %v3126 = vpack.c.b16 %v2646, %v2642
          %v3127 = vpack.c.b16 %v2651, %v2647
          %v3128 = vpack.c.b16 %v2652, %v2648
          %v3129 = vpack.c.b16 %v2653, %v2649
          %v3130 = vpack.c.b16 %v2654, %v2650
          %v3131 = vpack.c.b16 %v2659, %v2655
          %v3132 = vpack.c.b16 %v2660, %v2656
          %v3133 = vpack.c.b16 %v2661, %v2657
          %v3134 = vpack.c.b16 %v2662, %v2658
          %v3135 = vpack.c.b16 %v2667, %v2663
          %v3136 = vpack.c.b16 %v2668, %v2664
          %v3137 = vpack.c.b16 %v2669, %v2665
          %v3138 = vpack.c.b16 %v2670, %v2666
          %v3139 = vpack.c.b16 %v2675, %v2671
          %v3140 = vpack.c.b16 %v2676, %v2672
          %v3141 = vpack.c.b16 %v2677, %v2673
          %v3142 = vpack.c.b16 %v2678, %v2674
          %v3143 = vpack.c.b16 %v2683, %v2679
          %v3144 = vpack.c.b16 %v2684, %v2680
          %v3145 = vpack.c.b16 %v2685, %v2681
          %v3146 = vpack.c.b16 %v2686, %v2682
          %v3147 = vpack.c.b16 %v2691, %v2687
          %v3148 = vpack.c.b16 %v2692, %v2688
          %v3149 = vpack.c.b16 %v2693, %v2689
          %v3150 = vpack.c.b16 %v2694, %v2690
          %v3151 = vpack.c.b16 %v2699, %v2695
          %v3152 = vpack.c.b16 %v2700, %v2696
          %v3153 = vpack.c.b16 %v2701, %v2697
          %v3154 = vpack.c.b16 %v2702, %v2698
          %v3155 = vpack.c.b16 %v2707, %v2703
          %v3156 = vpack.c.b16 %v2708, %v2704
          %v3157 = vpack.c.b16 %v2709, %v2705
          %v3158 = vpack.c.b16 %v2710, %v2706
          %v3159 = vpack.c.b16 %v2715, %v2711
          %v3160 = vpack.c.b16 %v2716, %v2712
          %v3161 = vpack.c.b16 %v2717, %v2713
          %v3162 = vpack.c.b16 %v2718, %v2714
          %v3163 = vpack.c.b16 %v2723, %v2719
          %v3164 = vpack.c.b16 %v2724, %v2720
          %v3165 = vpack.c.b16 %v2725, %v2721
          %v3166 = vpack.c.b16 %v2726, %v2722
          %v3167 = vpack.c.b16 %v2731, %v2727
          %v3168 = vpack.c.b16 %v2732, %v2728
          %v3169 = vpack.c.b16 %v2733, %v2729
          %v3170 = vpack.c.b16 %v2734, %v2730
          %v3171 = vpack.c.b16 %v2739, %v2735
          %v3172 = vpack.c.b16 %v2740, %v2736
          %v3173 = vpack.c.b16 %v2741, %v2737
          %v3174 = vpack.c.b16 %v2742, %v2738
          %v3175 = vpack.c.b16 %v2747, %v2743
          %v3176 = vpack.c.b16 %v2748, %v2744
          %v3177 = vpack.c.b16 %v2749, %v2745
          %v3178 = vpack.c.b16 %v2750, %v2746
          %v3179 = vpack.c.b16 %v2755, %v2751
          %v3180 = vpack.c.b16 %v2756, %v2752
          %v3181 = vpack.c.b16 %v2757, %v2753
          %v3182 = vpack.c.b16 %v2758, %v2754
          %v3183 = vpack.c.b16 %v2763, %v2759
          %v3184 = vpack.c.b16 %v2764, %v2760
          %v3185 = vpack.c.b16 %v2765, %v2761
          %v3186 = vpack.c.b16 %v2766, %v2762
          %v3187 = vpack.c.b16 %v2771, %v2767
          %v3188 = vpack.c.b16 %v2772, %v2768
          %v3189 = vpack.c.b16 %v2773, %v2769
          %v3190 = vpack.c.b16 %v2774, %v2770
          %v3191 = vpack.c.b16 %v2779, %v2775
          %v3192 = vpack.c.b16 %v2780, %v2776
          %v3193 = vpack.c.b16 %v2781, %v2777
          %v3194 = vpack.c.b16 %v2782, %v2778
          %v3195 = vpack.c.b16 %v2787, %v2783
          %v3196 = vpack.c.b16 %v2788, %v2784
          %v3197 = vpack.c.b16 %v2789, %v2785
          %v3198 = vpack.c.b16 %v2790, %v2786
          %v3199 = vpack.c.b16 %v2795, %v2791
          %v3200 = vpack.c.b16 %v2796, %v2792
          %v3201 = vpack.c.b16 %v2797, %v2793
          %v3202 = vpack.c.b16 %v2798, %v2794
          %v3203 = vpack.c.b16 %v2803, %v2799
          %v3204 = vpack.c.b16 %v2804, %v2800
          %v3205 = vpack.c.b16 %v2805, %v2801
          %v3206 = vpack.c.b16 %v2806, %v2802
          %v3207 = vpack.c.b16 %v2811, %v2807
          %v3208 = vpack.c.b16 %v2812, %v2808
          %v3209 = vpack.c.b16 %v2813, %v2809
          %v3210 = vpack.c.b16 %v2814, %v2810
          %v3211 = vpack.c.b16 %v2819, %v2815
          %v3212 = vpack.c.b16 %v2820, %v2816
          %v3213 = vpack.c.b16 %v2821, %v2817
          %v3214 = vpack.c.b16 %v2822, %v2818
          %v3215 = vpack.c.b16 %v2827, %v2823
          %v3216 = vpack.c.b16 %v2828, %v2824
          %v3217 = vpack.c.b16 %v2829, %v2825
          %v3218 = vpack.c.b16 %v2830, %v2826
          %v3219 = vpack.c.b16 %v2835, %v2831
          %v3220 = vpack.c.b16 %v2836, %v2832
          %v3221 = vpack.c.b16 %v2837, %v2833
          %v3222 = vpack.c.b16 %v2838, %v2834
          %v3223 = vpack.c.b16 %v2843, %v2839
          %v3224 = vpack.c.b16 %v2844, %v2840
          %v3225 = vpack.c.b16 %v2845, %v2841
          %v3226 = vpack.c.b16 %v2846, %v2842
          %v3227 = vpack.c.b16 %v2851, %v2847
          %v3228 = vpack.c.b16 %v2852, %v2848
          %v3229 = vpack.c.b16 %v2853, %v2849
          %v3230 = vpack.c.b16 %v2854, %v2850
          %v3231 = vpack.c.b16 %v2859, %v2855
          %v3232 = vpack.c.b16 %v2860, %v2856
          %v3233 = vpack.c.b16 %v2861, %v2857
          %v3234 = vpack.c.b16 %v2862, %v2858
          %v3235 = vpack.c.b16 %v2867, %v2863
          %v3236 = vpack.c.b16 %v2868, %v2864
          %v3237 = vpack.c.b16 %v2869, %v2865
          %v3238 = vpack.c.b16 %v2870, %v2866
          %v3239 = vpack.c.b16 %v2875, %v2871
          %v3240 = vpack.c.b16 %v2876, %v2872
          %v3241 = vpack.c.b16 %v2877, %v2873
          %v3242 = vpack.c.b16 %v2878, %v2874
          %v3243 = vpack.c.b16 %v2883, %v2879
          %v3244 = vpack.c.b16 %v2884, %v2880
          %v3245 = vpack.c.b16 %v2885, %v2881
          %v3246 = vpack.c.b16 %v2886, %v2882
          %v3247 = vpack.c.b16 %v2891, %v2887
          %v3248 = vpack.c.b16 %v2892, %v2888
          %v3249 = vpack.c.b16 %v2893, %v2889
          %v3250 = vpack.c.b16 %v2894, %v2890
          %v3251 = vpack.c.b16 %v2899, %v2895
          %v3252 = vpack.c.b16 %v2900, %v2896
          %v3253 = vpack.c.b16 %v2901, %v2897
          %v3254 = vpack.c.b16 %v2902, %v2898
          %v3255 = vpack.c.b16 %v2907, %v2903
          %v3256 = vpack.c.b16 %v2908, %v2904
          %v3257 = vpack.c.b16 %v2909, %v2905
          %v3258 = vpack.c.b16 %v2910, %v2906
          %v3259 = vpack.c.b16 %v2915, %v2911
          %v3260 = vpack.c.b16 %v2916, %v2912
          %v3261 = vpack.c.b16 %v2917, %v2913
          %v3262 = vpack.c.b16 %v2918, %v2914
          %v3263 = vpack.c.b16 %v2923, %v2919
          %v3264 = vpack.c.b16 %v2924, %v2920
          %v3265 = vpack.c.b16 %v2925, %v2921
          %v3266 = vpack.c.b16 %v2926, %v2922
          %v3267 = vpack.c.b16 %v2931, %v2927
          %v3268 = vpack.c.b16 %v2932, %v2928
          %v3269 = vpack.c.b16 %v2933, %v2929
          %v3270 = vpack.c.b16 %v2934, %v2930
          %v3271 = vpack.c.b16 %v2939, %v2935
          %v3272 = vpack.c.b16 %v2940, %v2936
          %v3273 = vpack.c.b16 %v2941, %v2937
          %v3274 = vpack.c.b16 %v2942, %v2938
          %v3275 = vpack.c.b16 %v2947, %v2943
          %v3276 = vpack.c.b16 %v2948, %v2944
          %v3277 = vpack.c.b16 %v2949, %v2945
          %v3278 = vpack.c.b16 %v2950, %v2946
          %v3279 = vpack.c.b16 %v2955, %v2951
          %v3280 = vpack.c.b16 %v2956, %v2952
          %v3281 = vpack.c.b16 %v2957, %v2953
          %v3282 = vpack.c.b16 %v2958, %v2954
          %v3283 = vpack.c.b16 %v2963, %v2959
          %v3284 = vpack.c.b16 %v2964, %v2960
          %v3285 = vpack.c.b16 %v2965, %v2961
          %v3286 = vpack.c.b16 %v2966, %v2962
          %v3287 = vpack.c.b16 %v2971, %v2967
          %v3288 = vpack.c.b16 %v2972, %v2968
          %v3289 = vpack.c.b16 %v2973, %v2969
          %v3290 = vpack.c.b16 %v2974, %v2970
          %v3291 = vpack.c.b16 %v2979, %v2975
          %v3292 = vpack.c.b16 %v2980, %v2976
          %v3293 = vpack.c.b16 %v2981, %v2977
          %v3294 = vpack.c.b16 %v2982, %v2978
          %v3295 = vpack.c.b16 %v2987, %v2983
          %v3296 = vpack.c.b16 %v2988, %v2984
          %v3297 = vpack.c.b16 %v2989, %v2985
          %v3298 = vpack.c.b16 %v2990, %v2986
          %v3299 = vpack.c.b16 %v2995, %v2991
          %v3300 = vpack.c.b16 %v2996, %v2992
          %v3301 = vpack.c.b16 %v2997, %v2993
          %v3302 = vpack.c.b16 %v2998, %v2994
          %v3303 = vpack.c.b16 %v3003, %v2999
          %v3304 = vpack.c.b16 %v3004, %v3000
          %v3305 = vpack.c.b16 %v3005, %v3001
          %v3306 = vpack.c.b16 %v3006, %v3002
          %v3307 = vpack.c.b16 %v3011, %v3007
          %v3308 = vpack.c.b16 %v3012, %v3008
          %v3309 = vpack.c.b16 %v3013, %v3009
          %v3310 = vpack.c.b16 %v3014, %v3010
          %v3311 = vpack.c.b16 %v3019, %v3015
          %v3312 = vpack.c.b16 %v3020, %v3016
          %v3313 = vpack.c.b16 %v3021, %v3017
          %v3314 = vpack.c.b16 %v3022, %v3018
          %v3315 = vpack.c.b16 %v3027, %v3023
          %v3316 = vpack.c.b16 %v3028, %v3024
          %v3317 = vpack.c.b16 %v3029, %v3025
          %v3318 = vpack.c.b16 %v3030, %v3026
          %v3319 = vpack.c.b16 %v3035, %v3031
          %v3320 = vpack.c.b16 %v3036, %v3032
          %v3321 = vpack.c.b16 %v3037, %v3033
          %v3322 = vpack.c.b16 %v3038, %v3034
          %v3323 = vpack.c.b16 %v3043, %v3039
          %v3324 = vpack.c.b16 %v3044, %v3040
          %v3325 = vpack.c.b16 %v3045, %v3041
          %v3326 = vpack.c.b16 %v3046, %v3042
          %v3327 = vpack.c.b16 %v3051, %v3047
          %v3328 = vpack.c.b16 %v3052, %v3048
          %v3329 = vpack.c.b16 %v3053, %v3049
          %v3330 = vpack.c.b16 %v3054, %v3050
          %v3331 = vpack.c.b16 %v3059, %v3055
          %v3332 = vpack.c.b16 %v3060, %v3056
          %v3333 = vpack.c.b16 %v3061, %v3057
          %v3334 = vpack.c.b16 %v3062, %v3058
          %v3335 = vpack.c.b16 %v3067, %v3063
          %v3336 = vpack.c.b16 %v3068, %v3064
          %v3337 = vpack.c.b16 %v3069, %v3065
          %v3338 = vpack.c.b16 %v3070, %v3066
          %v3339 = vpack.c.b16 %v3075, %v3071
          %v3340 = vpack.c.b16 %v3076, %v3072
          %v3341 = vpack.c.b16 %v3077, %v3073
          %v3342 = vpack.c.b16 %v3078, %v3074
          %v3343 = vpack.c.b16 %v3083, %v3079
          %v3344 = vpack.c.b16 %v3084, %v3080
          %v3345 = vpack.c.b16 %v3085, %v3081
          %v3346 = vpack.c.b16 %v3086, %v3082
          %v3347 = vpack.c.b16 %v3091, %v3087
          %v3348 = vpack.c.b16 %v3092, %v3088
          %v3349 = vpack.c.b16 %v3093, %v3089
          %v3350 = vpack.c.b16 %v3094, %v3090
          %v3608 = vlaneseq
          %v3609 = vshrl.u32 %v3608, 7
          %v3610 = vsub.s32 0, %v3609
          %v3611 = vrot.slane %v2326, %v3610
          %v3612 = vlaneseq
          %v3613 = vshrl.u32 %v3612, 7
          %v3614 = vsub.s32 1, %v3613
          %v3615 = vrot.slane %v2326, %v3614
          %v3616 = vlaneseq
          %v3617 = vshrl.u32 %v3616, 7
          %v3618 = vsub.s32 2, %v3617
          %v3619 = vrot.slane %v2326, %v3618
          %v3620 = vlaneseq
          %v3621 = vshrl.u32 %v3620, 7
          %v3622 = vsub.s32 3, %v3621
          %v3623 = vrot.slane %v2326, %v3622
          %3628 = vmatprep.subr.bf16.mxu0 %v3124
          %3629 = vmatpush1.bf16.msra.mxu0 %v3123
          %3630 = vmatprep.subr.bf16.mxu0 %v3120
          %3631 = vmatpush1.bf16.msra.mxu0 %v3119
          %3632 = vmatprep.subr.bf16.mxu0 %v3116
          %3633 = vmatpush1.bf16.msra.mxu0 %v3115
          %3634 = vmatprep.subr.bf16.mxu0 %v3112
          %3635 = vmatpush1.bf16.msra.mxu0 %v3111
          %3636 = vmatprep.subr.bf16.mxu0 %v3108
          %3637 = vmatpush1.bf16.msra.mxu0 %v3107
          %3638 = vmatprep.subr.bf16.mxu0 %v3104
          %3639 = vmatpush1.bf16.msra.mxu0 %v3103
          %3640 = vmatprep.subr.bf16.mxu0 %v3100
          %3641 = vmatpush1.bf16.msra.mxu0 %v3099
          %3642 = vmatprep.subr.bf16.mxu0 %v3096
          %3643 = vmatpush1.bf16.msra.mxu0 %v3095
          %3644 = vmatprep.subr.bf16.mxu0 %v3156
          %3645 = vmatpush2.bf16.msra.mxu0 %v3155
          %3646 = vmatprep.subr.bf16.mxu0 %v3152
          %3647 = vmatpush2.bf16.msra.mxu0 %v3151
          %3648 = vmatprep.subr.bf16.mxu0 %v3148
          %3649 = vmatpush2.bf16.msra.mxu0 %v3147
          %3650 = vmatprep.subr.bf16.mxu0 %v3144
          %3651 = vmatpush2.bf16.msra.mxu0 %v3143
          %3652 = vmatprep.subr.bf16.mxu0 %v3140
          %3653 = vmatpush2.bf16.msra.mxu0 %v3139
          %3654 = vmatprep.subr.bf16.mxu0 %v3136
          %3655 = vmatpush2.bf16.msra.mxu0 %v3135
          %3656 = vmatprep.subr.bf16.mxu0 %v3132
          %3657 = vmatpush2.bf16.msra.mxu0 %v3131
          %3658 = vmatprep.subr.bf16.mxu0 %v3128
          %3659 = vmatpush2.bf16.msra.mxu0 %v3127
          %3660 = vmatprep.mubr.bf16.mxu0 %v2063
          %3661 = vmatmul.mubr.bf16.gmra.mxu0 %v2062
          %v3662 = vpop.f32.mrf.mxu0
          %v3663 = vadd.f32 %v3611, %v3662
          %v3664 = vpop.f32.mrf.mxu0
          %v3665 = vadd.f32 %v3615, %v3664
          %v3666 = vpop.f32.mrf.mxu0
          %v3667 = vpop.f32.mrf.mxu0
          %3668 = vdwg.mxu0
          %3669 = vmatprep.subr.bf16.mxu0 %v3188
          %3670 = vmatpush1.bf16.msra.mxu0 %v3187
          %3671 = vmatprep.subr.bf16.mxu0 %v3184
          %3672 = vmatpush1.bf16.msra.mxu0 %v3183
          %3673 = vmatprep.subr.bf16.mxu0 %v3180
          %3674 = vmatpush1.bf16.msra.mxu0 %v3179
          %3675 = vmatprep.subr.bf16.mxu0 %v3176
          %3676 = vmatpush1.bf16.msra.mxu0 %v3175
          %3677 = vmatprep.subr.bf16.mxu0 %v3172
          %3678 = vmatpush1.bf16.msra.mxu0 %v3171
          %3679 = vmatprep.subr.bf16.mxu0 %v3168
          %3680 = vmatpush1.bf16.msra.mxu0 %v3167
          %3681 = vmatprep.subr.bf16.mxu0 %v3164
          %3682 = vmatpush1.bf16.msra.mxu0 %v3163
          %3683 = vmatprep.subr.bf16.mxu0 %v3160
          %3684 = vmatpush1.bf16.msra.mxu0 %v3159
          %3685 = vmatprep.subr.bf16.mxu0 %v3220
          %3686 = vmatpush2.bf16.msra.mxu0 %v3219
          %3687 = vmatprep.subr.bf16.mxu0 %v3216
          %3688 = vmatpush2.bf16.msra.mxu0 %v3215
          %3689 = vmatprep.subr.bf16.mxu0 %v3212
          %3690 = vmatpush2.bf16.msra.mxu0 %v3211
          %3691 = vmatprep.subr.bf16.mxu0 %v3208
          %3692 = vmatpush2.bf16.msra.mxu0 %v3207
          %3693 = vmatprep.subr.bf16.mxu0 %v3204
          %3694 = vmatpush2.bf16.msra.mxu0 %v3203
          %3695 = vmatprep.subr.bf16.mxu0 %v3200
          %3696 = vmatpush2.bf16.msra.mxu0 %v3199
          %3697 = vmatprep.subr.bf16.mxu0 %v3196
          %3698 = vmatpush2.bf16.msra.mxu0 %v3195
          %3699 = vmatprep.subr.bf16.mxu0 %v3192
          %3700 = vmatpush2.bf16.msra.mxu0 %v3191
          %3701 = vmatprep.mubr.bf16.mxu0 %v2065
          %3702 = vmatmul.mubr.bf16.gmra.mxu0 %v2064
          %v3703 = vpop.f32.mrf.mxu0
          %v3704 = vadd.f32 %v3663, %v3703
          %v3705 = vpop.f32.mrf.mxu0
          %v3706 = vadd.f32 %v3665, %v3705
          %v3707 = vpop.f32.mrf.mxu0
          %v3708 = vpop.f32.mrf.mxu0
          %3709 = vdwg.mxu0
          %3710 = vmatprep.subr.bf16.mxu0 %v3252
          %3711 = vmatpush1.bf16.msra.mxu0 %v3251
          %3712 = vmatprep.subr.bf16.mxu0 %v3248
          %3713 = vmatpush1.bf16.msra.mxu0 %v3247
          %3714 = vmatprep.subr.bf16.mxu0 %v3244
          %3715 = vmatpush1.bf16.msra.mxu0 %v3243
          %3716 = vmatprep.subr.bf16.mxu0 %v3240
          %3717 = vmatpush1.bf16.msra.mxu0 %v3239
          %3718 = vmatprep.subr.bf16.mxu0 %v3236
          %3719 = vmatpush1.bf16.msra.mxu0 %v3235
          %3720 = vmatprep.subr.bf16.mxu0 %v3232
          %3721 = vmatpush1.bf16.msra.mxu0 %v3231
          %3722 = vmatprep.subr.bf16.mxu0 %v3228
          %3723 = vmatpush1.bf16.msra.mxu0 %v3227
          %3724 = vmatprep.subr.bf16.mxu0 %v3224
          %3725 = vmatpush1.bf16.msra.mxu0 %v3223
          %3726 = vmatprep.subr.bf16.mxu0 %v3284
          %3727 = vmatpush2.bf16.msra.mxu0 %v3283
          %3728 = vmatprep.subr.bf16.mxu0 %v3280
          %3729 = vmatpush2.bf16.msra.mxu0 %v3279
          %3730 = vmatprep.subr.bf16.mxu0 %v3276
          %3731 = vmatpush2.bf16.msra.mxu0 %v3275
          %3732 = vmatprep.subr.bf16.mxu0 %v3272
          %3733 = vmatpush2.bf16.msra.mxu0 %v3271
          %3734 = vmatprep.subr.bf16.mxu0 %v3268
          %3735 = vmatpush2.bf16.msra.mxu0 %v3267
          %3736 = vmatprep.subr.bf16.mxu0 %v3264
          %3737 = vmatpush2.bf16.msra.mxu0 %v3263
          %3738 = vmatprep.subr.bf16.mxu0 %v3260
          %3739 = vmatpush2.bf16.msra.mxu0 %v3259
          %3740 = vmatprep.subr.bf16.mxu0 %v3256
          %3741 = vmatpush2.bf16.msra.mxu0 %v3255
          %3742 = vmatprep.mubr.bf16.mxu0 %v2067
          %3743 = vmatmul.mubr.bf16.gmra.mxu0 %v2066
          %v3744 = vpop.f32.mrf.mxu0
          %v3745 = vadd.f32 %v3704, %v3744
          %v3746 = vpop.f32.mrf.mxu0
          %v3747 = vadd.f32 %v3706, %v3746
          %v3748 = vpop.f32.mrf.mxu0
          %v3749 = vpop.f32.mrf.mxu0
          %3750 = vdwg.mxu0
          %3751 = vmatprep.subr.bf16.mxu0 %v3316
          %3752 = vmatpush1.bf16.msra.mxu0 %v3315
          %3753 = vmatprep.subr.bf16.mxu0 %v3312
          %3754 = vmatpush1.bf16.msra.mxu0 %v3311
          %3755 = vmatprep.subr.bf16.mxu0 %v3308
          %3756 = vmatpush1.bf16.msra.mxu0 %v3307
          %3757 = vmatprep.subr.bf16.mxu0 %v3304
          %3758 = vmatpush1.bf16.msra.mxu0 %v3303
          %3759 = vmatprep.subr.bf16.mxu0 %v3300
          %3760 = vmatpush1.bf16.msra.mxu0 %v3299
          %3761 = vmatprep.subr.bf16.mxu0 %v3296
          %3762 = vmatpush1.bf16.msra.mxu0 %v3295
          %3763 = vmatprep.subr.bf16.mxu0 %v3292
          %3764 = vmatpush1.bf16.msra.mxu0 %v3291
          %3765 = vmatprep.subr.bf16.mxu0 %v3288
          %3766 = vmatpush1.bf16.msra.mxu0 %v3287
          %3767 = vmatprep.subr.bf16.mxu0 %v3348
          %3768 = vmatpush2.bf16.msra.mxu0 %v3347
          %3769 = vmatprep.subr.bf16.mxu0 %v3344
          %3770 = vmatpush2.bf16.msra.mxu0 %v3343
          %3771 = vmatprep.subr.bf16.mxu0 %v3340
          %3772 = vmatpush2.bf16.msra.mxu0 %v3339
          %3773 = vmatprep.subr.bf16.mxu0 %v3336
          %3774 = vmatpush2.bf16.msra.mxu0 %v3335
          %3775 = vmatprep.subr.bf16.mxu0 %v3332
          %3776 = vmatpush2.bf16.msra.mxu0 %v3331
          %3777 = vmatprep.subr.bf16.mxu0 %v3328
          %3778 = vmatpush2.bf16.msra.mxu0 %v3327
          %3779 = vmatprep.subr.bf16.mxu0 %v3324
          %3780 = vmatpush2.bf16.msra.mxu0 %v3323
          %3781 = vmatprep.subr.bf16.mxu0 %v3320
          %3782 = vmatpush2.bf16.msra.mxu0 %v3319
          %3783 = vmatprep.mubr.bf16.mxu0 %v2069
          %3784 = vmatmul.mubr.bf16.gmra.mxu0 %v2068
          %v3785 = vpop.f32.mrf.mxu0
          %v3786 = vadd.f32 %v3745, %v3785
          %v3787 = vpop.f32.mrf.mxu0
          %v3788 = vadd.f32 %v3747, %v3787
          %v3789 = vpop.f32.mrf.mxu0
          %v3790 = vpop.f32.mrf.mxu0
          %3791 = vdwg.mxu0
          %3792 = vmatprep.subr.bf16.mxu0 %v3126
          %3793 = vmatpush1.bf16.msra.mxu0 %v3125
          %3794 = vmatprep.subr.bf16.mxu0 %v3122
          %3795 = vmatpush1.bf16.msra.mxu0 %v3121
          %3796 = vmatprep.subr.bf16.mxu0 %v3118
          %3797 = vmatpush1.bf16.msra.mxu0 %v3117
          %3798 = vmatprep.subr.bf16.mxu0 %v3114
          %3799 = vmatpush1.bf16.msra.mxu0 %v3113
          %3800 = vmatprep.subr.bf16.mxu0 %v3110
          %3801 = vmatpush1.bf16.msra.mxu0 %v3109
          %3802 = vmatprep.subr.bf16.mxu0 %v3106
          %3803 = vmatpush1.bf16.msra.mxu0 %v3105
          %3804 = vmatprep.subr.bf16.mxu0 %v3102
          %3805 = vmatpush1.bf16.msra.mxu0 %v3101
          %3806 = vmatprep.subr.bf16.mxu0 %v3098
          %3807 = vmatpush1.bf16.msra.mxu0 %v3097
          %3808 = vmatprep.subr.bf16.mxu0 %v3158
          %3809 = vmatpush2.bf16.msra.mxu0 %v3157
          %3810 = vmatprep.subr.bf16.mxu0 %v3154
          %3811 = vmatpush2.bf16.msra.mxu0 %v3153
          %3812 = vmatprep.subr.bf16.mxu0 %v3150
          %3813 = vmatpush2.bf16.msra.mxu0 %v3149
          %3814 = vmatprep.subr.bf16.mxu0 %v3146
          %3815 = vmatpush2.bf16.msra.mxu0 %v3145
          %3816 = vmatprep.subr.bf16.mxu0 %v3142
          %3817 = vmatpush2.bf16.msra.mxu0 %v3141
          %3818 = vmatprep.subr.bf16.mxu0 %v3138
          %3819 = vmatpush2.bf16.msra.mxu0 %v3137
          %3820 = vmatprep.subr.bf16.mxu0 %v3134
          %3821 = vmatpush2.bf16.msra.mxu0 %v3133
          %3822 = vmatprep.subr.bf16.mxu0 %v3130
          %3823 = vmatpush2.bf16.msra.mxu0 %v3129
          %3824 = vmatprep.mubr.bf16.mxu0 %v2063
          %3825 = vmatmul.mubr.bf16.gmra.mxu0 %v2062
          %v3826 = vpop.f32.mrf.mxu0
          %v3827 = vadd.f32 %v3619, %v3826
          %v3828 = vpop.f32.mrf.mxu0
          %v3829 = vadd.f32 %v3623, %v3828
          %v3830 = vpop.f32.mrf.mxu0
          %v3831 = vpop.f32.mrf.mxu0
          %3832 = vdwg.mxu0
          %3833 = vmatprep.subr.bf16.mxu0 %v3190
          %3834 = vmatpush1.bf16.msra.mxu0 %v3189
          %3835 = vmatprep.subr.bf16.mxu0 %v3186
          %3836 = vmatpush1.bf16.msra.mxu0 %v3185
          %3837 = vmatprep.subr.bf16.mxu0 %v3182
          %3838 = vmatpush1.bf16.msra.mxu0 %v3181
          %3839 = vmatprep.subr.bf16.mxu0 %v3178
          %3840 = vmatpush1.bf16.msra.mxu0 %v3177
          %3841 = vmatprep.subr.bf16.mxu0 %v3174
          %3842 = vmatpush1.bf16.msra.mxu0 %v3173
          %3843 = vmatprep.subr.bf16.mxu0 %v3170
          %3844 = vmatpush1.bf16.msra.mxu0 %v3169
          %3845 = vmatprep.subr.bf16.mxu0 %v3166
          %3846 = vmatpush1.bf16.msra.mxu0 %v3165
          %3847 = vmatprep.subr.bf16.mxu0 %v3162
          %3848 = vmatpush1.bf16.msra.mxu0 %v3161
          %3849 = vmatprep.subr.bf16.mxu0 %v3222
          %3850 = vmatpush2.bf16.msra.mxu0 %v3221
          %3851 = vmatprep.subr.bf16.mxu0 %v3218
          %3852 = vmatpush2.bf16.msra.mxu0 %v3217
          %3853 = vmatprep.subr.bf16.mxu0 %v3214
          %3854 = vmatpush2.bf16.msra.mxu0 %v3213
          %3855 = vmatprep.subr.bf16.mxu0 %v3210
          %3856 = vmatpush2.bf16.msra.mxu0 %v3209
          %3857 = vmatprep.subr.bf16.mxu0 %v3206
          %3858 = vmatpush2.bf16.msra.mxu0 %v3205
          %3859 = vmatprep.subr.bf16.mxu0 %v3202
          %3860 = vmatpush2.bf16.msra.mxu0 %v3201
          %3861 = vmatprep.subr.bf16.mxu0 %v3198
          %3862 = vmatpush2.bf16.msra.mxu0 %v3197
          %3863 = vmatprep.subr.bf16.mxu0 %v3194
          %3864 = vmatpush2.bf16.msra.mxu0 %v3193
          %3865 = vmatprep.mubr.bf16.mxu0 %v2065
          %3866 = vmatmul.mubr.bf16.gmra.mxu0 %v2064
          %v3867 = vpop.f32.mrf.mxu0
          %v3868 = vadd.f32 %v3827, %v3867
          %v3869 = vpop.f32.mrf.mxu0
          %v3870 = vadd.f32 %v3829, %v3869
          %v3871 = vpop.f32.mrf.mxu0
          %v3872 = vpop.f32.mrf.mxu0
          %3873 = vdwg.mxu0
          %3874 = vmatprep.subr.bf16.mxu0 %v3254
          %3875 = vmatpush1.bf16.msra.mxu0 %v3253
          %3876 = vmatprep.subr.bf16.mxu0 %v3250
          %3877 = vmatpush1.bf16.msra.mxu0 %v3249
          %3878 = vmatprep.subr.bf16.mxu0 %v3246
          %3879 = vmatpush1.bf16.msra.mxu0 %v3245
          %3880 = vmatprep.subr.bf16.mxu0 %v3242
          %3881 = vmatpush1.bf16.msra.mxu0 %v3241
          %3882 = vmatprep.subr.bf16.mxu0 %v3238
          %3883 = vmatpush1.bf16.msra.mxu0 %v3237
          %3884 = vmatprep.subr.bf16.mxu0 %v3234
          %3885 = vmatpush1.bf16.msra.mxu0 %v3233
          %3886 = vmatprep.subr.bf16.mxu0 %v3230
          %3887 = vmatpush1.bf16.msra.mxu0 %v3229
          %3888 = vmatprep.subr.bf16.mxu0 %v3226
          %3889 = vmatpush1.bf16.msra.mxu0 %v3225
          %3890 = vmatprep.subr.bf16.mxu0 %v3286
          %3891 = vmatpush2.bf16.msra.mxu0 %v3285
          %3892 = vmatprep.subr.bf16.mxu0 %v3282
          %3893 = vmatpush2.bf16.msra.mxu0 %v3281
          %3894 = vmatprep.subr.bf16.mxu0 %v3278
          %3895 = vmatpush2.bf16.msra.mxu0 %v3277
          %3896 = vmatprep.subr.bf16.mxu0 %v3274
          %3897 = vmatpush2.bf16.msra.mxu0 %v3273
          %3898 = vmatprep.subr.bf16.mxu0 %v3270
          %3899 = vmatpush2.bf16.msra.mxu0 %v3269
          %3900 = vmatprep.subr.bf16.mxu0 %v3266
          %3901 = vmatpush2.bf16.msra.mxu0 %v3265
          %3902 = vmatprep.subr.bf16.mxu0 %v3262
          %3903 = vmatpush2.bf16.msra.mxu0 %v3261
          %3904 = vmatprep.subr.bf16.mxu0 %v3258
          %3905 = vmatpush2.bf16.msra.mxu0 %v3257
          %3906 = vmatprep.mubr.bf16.mxu0 %v2067
          %3907 = vmatmul.mubr.bf16.gmra.mxu0 %v2066
          %v3908 = vpop.f32.mrf.mxu0
          %v3909 = vadd.f32 %v3868, %v3908
          %v3910 = vpop.f32.mrf.mxu0
          %v3911 = vadd.f32 %v3870, %v3910
          %v3912 = vpop.f32.mrf.mxu0
          %v3913 = vpop.f32.mrf.mxu0
          %3914 = vdwg.mxu0
          %3915 = vmatprep.subr.bf16.mxu0 %v3318
          %3916 = vmatpush1.bf16.msra.mxu0 %v3317
          %3917 = vmatprep.subr.bf16.mxu0 %v3314
          %3918 = vmatpush1.bf16.msra.mxu0 %v3313
          %3919 = vmatprep.subr.bf16.mxu0 %v3310
          %3920 = vmatpush1.bf16.msra.mxu0 %v3309
          %3921 = vmatprep.subr.bf16.mxu0 %v3306
          %3922 = vmatpush1.bf16.msra.mxu0 %v3305
          %3923 = vmatprep.subr.bf16.mxu0 %v3302
          %3924 = vmatpush1.bf16.msra.mxu0 %v3301
          %3925 = vmatprep.subr.bf16.mxu0 %v3298
          %3926 = vmatpush1.bf16.msra.mxu0 %v3297
          %3927 = vmatprep.subr.bf16.mxu0 %v3294
          %3928 = vmatpush1.bf16.msra.mxu0 %v3293
          %3929 = vmatprep.subr.bf16.mxu0 %v3290
          %3930 = vmatpush1.bf16.msra.mxu0 %v3289
          %3931 = vmatprep.subr.bf16.mxu0 %v3350
          %3932 = vmatpush2.bf16.msra.mxu0 %v3349
          %3933 = vmatprep.subr.bf16.mxu0 %v3346
          %3934 = vmatpush2.bf16.msra.mxu0 %v3345
          %3935 = vmatprep.subr.bf16.mxu0 %v3342
          %3936 = vmatpush2.bf16.msra.mxu0 %v3341
          %3937 = vmatprep.subr.bf16.mxu0 %v3338
          %3938 = vmatpush2.bf16.msra.mxu0 %v3337
          %3939 = vmatprep.subr.bf16.mxu0 %v3334
          %3940 = vmatpush2.bf16.msra.mxu0 %v3333
          %3941 = vmatprep.subr.bf16.mxu0 %v3330
          %3942 = vmatpush2.bf16.msra.mxu0 %v3329
          %3943 = vmatprep.subr.bf16.mxu0 %v3326
          %3944 = vmatpush2.bf16.msra.mxu0 %v3325
          %3945 = vmatprep.subr.bf16.mxu0 %v3322
          %3946 = vmatpush2.bf16.msra.mxu0 %v3321
          %3947 = vmatprep.mubr.bf16.mxu0 %v2069
          %3948 = vmatmul.mubr.bf16.gmra.mxu0 %v2068
          %v3949 = vpop.f32.mrf.mxu0
          %v3950 = vadd.f32 %v3909, %v3949
          %v3951 = vpop.f32.mrf.mxu0
          %v3952 = vadd.f32 %v3911, %v3951
          %v3953 = vpop.f32.mrf.mxu0
          %v3954 = vpop.f32.mrf.mxu0
          %3955 = vdwg.mxu0
          %v3956 = vmax.f32 %v3786, 0.0
          %v3957 = vmax.f32 %v3788, 0.0
          %v3958 = vmax.f32 %v3950, 0.0
          %v3959 = vmax.f32 %v3952, 0.0
          %v3960 = vpack.c.bf16 %v3956, %v3956
          %v3961 = vpack.c.bf16 %v3957, %v3957
          %v3962 = vpack.c.bf16 %v3958, %v3958
          %v3963 = vpack.c.bf16 %v3959, %v3959
          %v3964 = vld [vmem:[%s9] sm:$0xff]
          %v3965 = vld [vmem:[%s9 + $0x8] sm:$0xff]
          %v3966 = vld [vmem:[%s9 + $0x10] sm:$0xff]
          %v3967 = vld [vmem:[%s9 + $0x18] sm:$0xff]
          %v3968 = vld [vmem:[%s9 + $0x20] sm:$0xff]
          %v3969 = vld [vmem:[%s9 + $0x28] sm:$0xff]
          %v3970 = vld [vmem:[%s9 + $0x30] sm:$0xff]
          %v3971 = vld [vmem:[%s9 + $0x38] sm:$0xff]
          %v3972 = vld [vmem:[%s9 + $0x40] sm:$0xff]
          %v3973 = vld [vmem:[%s9 + $0x48] sm:$0xff]
          %v3974 = vld [vmem:[%s9 + $0x50] sm:$0xff]
          %v3975 = vld [vmem:[%s9 + $0x58] sm:$0xff]
          %v3976 = vld [vmem:[%s9 + $0x60] sm:$0xff]
          %v3977 = vld [vmem:[%s9 + $0x68] sm:$0xff]
          %v3978 = vld [vmem:[%s9 + $0x70] sm:$0xff]
          %v3979 = vld [vmem:[%s9 + $0x78] sm:$0xff]
          %v3980 = vld [vmem:[%s9 + $0x80] sm:$0xff]
          %v3981 = vld [vmem:[%s9 + $0x88] sm:$0xff]
          %v3982 = vld [vmem:[%s9 + $0x90] sm:$0xff]
          %v3983 = vld [vmem:[%s9 + $0x98] sm:$0xff]
          %v3984 = vld [vmem:[%s9 + $0xa0] sm:$0xff]
          %v3985 = vld [vmem:[%s9 + $0xa8] sm:$0xff]
          %v3986 = vld [vmem:[%s9 + $0xb0] sm:$0xff]
          %v3987 = vld [vmem:[%s9 + $0xb8] sm:$0xff]
          %v3988 = vld [vmem:[%s9 + $0xc0] sm:$0xff]
          %v3989 = vld [vmem:[%s9 + $0xc8] sm:$0xff]
          %v3990 = vld [vmem:[%s9 + $0xd0] sm:$0xff]
          %v3991 = vld [vmem:[%s9 + $0xd8] sm:$0xff]
          %v3992 = vld [vmem:[%s9 + $0xe0] sm:$0xff]
          %v3993 = vld [vmem:[%s9 + $0xe8] sm:$0xff]
          %v3994 = vld [vmem:[%s9 + $0xf0] sm:$0xff]
          %v3995 = vld [vmem:[%s9 + $0xf8] sm:$0xff]
          %v3996 = vld [vmem:[%s9 + $0x100] sm:$0xff]
          %v3997 = vld [vmem:[%s9 + $0x108] sm:$0xff]
          %v3998 = vld [vmem:[%s9 + $0x110] sm:$0xff]
          %v3999 = vld [vmem:[%s9 + $0x118] sm:$0xff]
          %v4000 = vld [vmem:[%s9 + $0x120] sm:$0xff]
          %v4001 = vld [vmem:[%s9 + $0x128] sm:$0xff]
          %v4002 = vld [vmem:[%s9 + $0x130] sm:$0xff]
          %v4003 = vld [vmem:[%s9 + $0x138] sm:$0xff]
          %v4004 = vld [vmem:[%s9 + $0x140] sm:$0xff]
          %v4005 = vld [vmem:[%s9 + $0x148] sm:$0xff]
          %v4006 = vld [vmem:[%s9 + $0x150] sm:$0xff]
          %v4007 = vld [vmem:[%s9 + $0x158] sm:$0xff]
          %v4008 = vld [vmem:[%s9 + $0x160] sm:$0xff]
          %v4009 = vld [vmem:[%s9 + $0x168] sm:$0xff]
          %v4010 = vld [vmem:[%s9 + $0x170] sm:$0xff]
          %v4011 = vld [vmem:[%s9 + $0x178] sm:$0xff]
          %v4012 = vld [vmem:[%s9 + $0x180] sm:$0xff]
          %v4013 = vld [vmem:[%s9 + $0x188] sm:$0xff]
          %v4014 = vld [vmem:[%s9 + $0x190] sm:$0xff]
          %v4015 = vld [vmem:[%s9 + $0x198] sm:$0xff]
          %v4016 = vld [vmem:[%s9 + $0x1a0] sm:$0xff]
          %v4017 = vld [vmem:[%s9 + $0x1a8] sm:$0xff]
          %v4018 = vld [vmem:[%s9 + $0x1b0] sm:$0xff]
          %v4019 = vld [vmem:[%s9 + $0x1b8] sm:$0xff]
          %v4020 = vld [vmem:[%s9 + $0x1c0] sm:$0xff]
          %v4021 = vld [vmem:[%s9 + $0x1c8] sm:$0xff]
          %v4022 = vld [vmem:[%s9 + $0x1d0] sm:$0xff]
          %v4023 = vld [vmem:[%s9 + $0x1d8] sm:$0xff]
          %v4024 = vld [vmem:[%s9 + $0x1e0] sm:$0xff]
          %v4025 = vld [vmem:[%s9 + $0x1e8] sm:$0xff]
          %v4026 = vld [vmem:[%s9 + $0x1f0] sm:$0xff]
          %v4027 = vld [vmem:[%s9 + $0x1f8] sm:$0xff]
          %v4028 = vld [vmem:[#allocation11] sm:$0x3]
          %v4093 = vunpack.c.l.b16 %v3964
          %v4094 = vunpack.c.h.b16 %v3964
          %v4095 = vunpack.c.l.b16 %v3965
          %v4096 = vunpack.c.h.b16 %v3965
          %v4097 = vunpack.c.l.b16 %v3966
          %v4098 = vunpack.c.h.b16 %v3966
          %v4099 = vunpack.c.l.b16 %v3967
          %v4100 = vunpack.c.h.b16 %v3967
          %v4101 = vunpack.c.l.b16 %v3968
          %v4102 = vunpack.c.h.b16 %v3968
          %v4103 = vunpack.c.l.b16 %v3969
          %v4104 = vunpack.c.h.b16 %v3969
          %v4105 = vunpack.c.l.b16 %v3970
          %v4106 = vunpack.c.h.b16 %v3970
          %v4107 = vunpack.c.l.b16 %v3971
          %v4108 = vunpack.c.h.b16 %v3971
          %v4109 = vunpack.c.l.b16 %v3972
          %v4110 = vunpack.c.h.b16 %v3972
          %v4111 = vunpack.c.l.b16 %v3973
          %v4112 = vunpack.c.h.b16 %v3973
          %v4113 = vunpack.c.l.b16 %v3974
          %v4114 = vunpack.c.h.b16 %v3974
          %v4115 = vunpack.c.l.b16 %v3975
          %v4116 = vunpack.c.h.b16 %v3975
          %v4117 = vunpack.c.l.b16 %v3976
          %v4118 = vunpack.c.h.b16 %v3976
          %v4119 = vunpack.c.l.b16 %v3977
          %v4120 = vunpack.c.h.b16 %v3977
          %v4121 = vunpack.c.l.b16 %v3978
          %v4122 = vunpack.c.h.b16 %v3978
          %v4123 = vunpack.c.l.b16 %v3979
          %v4124 = vunpack.c.h.b16 %v3979
          %v4125 = vunpack.c.l.b16 %v3980
          %v4126 = vunpack.c.h.b16 %v3980
          %v4127 = vunpack.c.l.b16 %v3981
          %v4128 = vunpack.c.h.b16 %v3981
          %v4129 = vunpack.c.l.b16 %v3982
          %v4130 = vunpack.c.h.b16 %v3982
          %v4131 = vunpack.c.l.b16 %v3983
          %v4132 = vunpack.c.h.b16 %v3983
          %v4133 = vunpack.c.l.b16 %v3984
          %v4134 = vunpack.c.h.b16 %v3984
          %v4135 = vunpack.c.l.b16 %v3985
          %v4136 = vunpack.c.h.b16 %v3985
          %v4137 = vunpack.c.l.b16 %v3986
          %v4138 = vunpack.c.h.b16 %v3986
          %v4139 = vunpack.c.l.b16 %v3987
          %v4140 = vunpack.c.h.b16 %v3987
          %v4141 = vunpack.c.l.b16 %v3988
          %v4142 = vunpack.c.h.b16 %v3988
          %v4143 = vunpack.c.l.b16 %v3989
          %v4144 = vunpack.c.h.b16 %v3989
          %v4145 = vunpack.c.l.b16 %v3990
          %v4146 = vunpack.c.h.b16 %v3990
          %v4147 = vunpack.c.l.b16 %v3991
          %v4148 = vunpack.c.h.b16 %v3991
          %v4149 = vunpack.c.l.b16 %v3992
          %v4150 = vunpack.c.h.b16 %v3992
          %v4151 = vunpack.c.l.b16 %v3993
          %v4152 = vunpack.c.h.b16 %v3993
          %v4153 = vunpack.c.l.b16 %v3994
          %v4154 = vunpack.c.h.b16 %v3994
          %v4155 = vunpack.c.l.b16 %v3995
          %v4156 = vunpack.c.h.b16 %v3995
          %v4157 = vunpack.c.l.b16 %v3996
          %v4158 = vunpack.c.h.b16 %v3996
          %v4159 = vunpack.c.l.b16 %v3997
          %v4160 = vunpack.c.h.b16 %v3997
          %v4161 = vunpack.c.l.b16 %v3998
          %v4162 = vunpack.c.h.b16 %v3998
          %v4163 = vunpack.c.l.b16 %v3999
          %v4164 = vunpack.c.h.b16 %v3999
          %v4165 = vunpack.c.l.b16 %v4000
          %v4166 = vunpack.c.h.b16 %v4000
          %v4167 = vunpack.c.l.b16 %v4001
          %v4168 = vunpack.c.h.b16 %v4001
          %v4169 = vunpack.c.l.b16 %v4002
          %v4170 = vunpack.c.h.b16 %v4002
          %v4171 = vunpack.c.l.b16 %v4003
          %v4172 = vunpack.c.h.b16 %v4003
          %v4173 = vunpack.c.l.b16 %v4004
          %v4174 = vunpack.c.h.b16 %v4004
          %v4175 = vunpack.c.l.b16 %v4005
          %v4176 = vunpack.c.h.b16 %v4005
          %v4177 = vunpack.c.l.b16 %v4006
          %v4178 = vunpack.c.h.b16 %v4006
          %v4179 = vunpack.c.l.b16 %v4007
          %v4180 = vunpack.c.h.b16 %v4007
          %v4181 = vunpack.c.l.b16 %v4008
          %v4182 = vunpack.c.h.b16 %v4008
          %v4183 = vunpack.c.l.b16 %v4009
          %v4184 = vunpack.c.h.b16 %v4009
          %v4185 = vunpack.c.l.b16 %v4010
          %v4186 = vunpack.c.h.b16 %v4010
          %v4187 = vunpack.c.l.b16 %v4011
          %v4188 = vunpack.c.h.b16 %v4011
          %v4189 = vunpack.c.l.b16 %v4012
          %v4190 = vunpack.c.h.b16 %v4012
          %v4191 = vunpack.c.l.b16 %v4013
          %v4192 = vunpack.c.h.b16 %v4013
          %v4193 = vunpack.c.l.b16 %v4014
          %v4194 = vunpack.c.h.b16 %v4014
          %v4195 = vunpack.c.l.b16 %v4015
          %v4196 = vunpack.c.h.b16 %v4015
          %v4197 = vunpack.c.l.b16 %v4016
          %v4198 = vunpack.c.h.b16 %v4016
          %v4199 = vunpack.c.l.b16 %v4017
          %v4200 = vunpack.c.h.b16 %v4017
          %v4201 = vunpack.c.l.b16 %v4018
          %v4202 = vunpack.c.h.b16 %v4018
          %v4203 = vunpack.c.l.b16 %v4019
          %v4204 = vunpack.c.h.b16 %v4019
          %v4205 = vunpack.c.l.b16 %v4020
          %v4206 = vunpack.c.h.b16 %v4020
          %v4207 = vunpack.c.l.b16 %v4021
          %v4208 = vunpack.c.h.b16 %v4021
          %v4209 = vunpack.c.l.b16 %v4022
          %v4210 = vunpack.c.h.b16 %v4022
          %v4211 = vunpack.c.l.b16 %v4023
          %v4212 = vunpack.c.h.b16 %v4023
          %v4213 = vunpack.c.l.b16 %v4024
          %v4214 = vunpack.c.h.b16 %v4024
          %v4215 = vunpack.c.l.b16 %v4025
          %v4216 = vunpack.c.h.b16 %v4025
          %v4217 = vunpack.c.l.b16 %v4026
          %v4218 = vunpack.c.h.b16 %v4026
          %v4219 = vunpack.c.l.b16 %v4027
          %v4220 = vunpack.c.h.b16 %v4027
          %v4221 = vpack.c.b16 %v4095, %v4093
          %v4222 = vpack.c.b16 %v4096, %v4094
          %v4223 = vpack.c.b16 %v4099, %v4097
          %v4224 = vpack.c.b16 %v4100, %v4098
          %v4225 = vpack.c.b16 %v4103, %v4101
          %v4226 = vpack.c.b16 %v4104, %v4102
          %v4227 = vpack.c.b16 %v4107, %v4105
          %v4228 = vpack.c.b16 %v4108, %v4106
          %v4229 = vpack.c.b16 %v4111, %v4109
          %v4230 = vpack.c.b16 %v4112, %v4110
          %v4231 = vpack.c.b16 %v4115, %v4113
          %v4232 = vpack.c.b16 %v4116, %v4114
          %v4233 = vpack.c.b16 %v4119, %v4117
          %v4234 = vpack.c.b16 %v4120, %v4118
          %v4235 = vpack.c.b16 %v4123, %v4121
          %v4236 = vpack.c.b16 %v4124, %v4122
          %v4237 = vpack.c.b16 %v4127, %v4125
          %v4238 = vpack.c.b16 %v4128, %v4126
          %v4239 = vpack.c.b16 %v4131, %v4129
          %v4240 = vpack.c.b16 %v4132, %v4130
          %v4241 = vpack.c.b16 %v4135, %v4133
          %v4242 = vpack.c.b16 %v4136, %v4134
          %v4243 = vpack.c.b16 %v4139, %v4137
          %v4244 = vpack.c.b16 %v4140, %v4138
          %v4245 = vpack.c.b16 %v4143, %v4141
          %v4246 = vpack.c.b16 %v4144, %v4142
          %v4247 = vpack.c.b16 %v4147, %v4145
          %v4248 = vpack.c.b16 %v4148, %v4146
          %v4249 = vpack.c.b16 %v4151, %v4149
          %v4250 = vpack.c.b16 %v4152, %v4150
          %v4251 = vpack.c.b16 %v4155, %v4153
          %v4252 = vpack.c.b16 %v4156, %v4154
          %v4253 = vpack.c.b16 %v4159, %v4157
          %v4254 = vpack.c.b16 %v4160, %v4158
          %v4255 = vpack.c.b16 %v4163, %v4161
          %v4256 = vpack.c.b16 %v4164, %v4162
          %v4257 = vpack.c.b16 %v4167, %v4165
          %v4258 = vpack.c.b16 %v4168, %v4166
          %v4259 = vpack.c.b16 %v4171, %v4169
          %v4260 = vpack.c.b16 %v4172, %v4170
          %v4261 = vpack.c.b16 %v4175, %v4173
          %v4262 = vpack.c.b16 %v4176, %v4174
          %v4263 = vpack.c.b16 %v4179, %v4177
          %v4264 = vpack.c.b16 %v4180, %v4178
          %v4265 = vpack.c.b16 %v4183, %v4181
          %v4266 = vpack.c.b16 %v4184, %v4182
          %v4267 = vpack.c.b16 %v4187, %v4185
          %v4268 = vpack.c.b16 %v4188, %v4186
          %v4269 = vpack.c.b16 %v4191, %v4189
          %v4270 = vpack.c.b16 %v4192, %v4190
          %v4271 = vpack.c.b16 %v4195, %v4193
          %v4272 = vpack.c.b16 %v4196, %v4194
          %v4273 = vpack.c.b16 %v4199, %v4197
          %v4274 = vpack.c.b16 %v4200, %v4198
          %v4275 = vpack.c.b16 %v4203, %v4201
          %v4276 = vpack.c.b16 %v4204, %v4202
          %v4277 = vpack.c.b16 %v4207, %v4205
          %v4278 = vpack.c.b16 %v4208, %v4206
          %v4279 = vpack.c.b16 %v4211, %v4209
          %v4280 = vpack.c.b16 %v4212, %v4210
          %v4281 = vpack.c.b16 %v4215, %v4213
          %v4282 = vpack.c.b16 %v4216, %v4214
          %v4283 = vpack.c.b16 %v4219, %v4217
          %v4284 = vpack.c.b16 %v4220, %v4218
          %v4350 = vlaneseq
          %v4351 = vshrl.u32 %v4350, 7
          %v4352 = vsub.s32 0, %v4351
          %v4353 = vrot.slane %v4028, %v4352
          %v4354 = vlaneseq
          %v4355 = vshrl.u32 %v4354, 7
          %v4356 = vsub.s32 1, %v4355
          %v4357 = vrot.slane %v4028, %v4356
          %4360 = vmatprep.subr.bf16.mxu0 %v4236
          %4361 = vmatpush1.bf16.msra.mxu0 %v4235
          %4362 = vmatprep.subr.bf16.mxu0 %v4234
          %4363 = vmatpush1.bf16.msra.mxu0 %v4233
          %4364 = vmatprep.subr.bf16.mxu0 %v4232
          %4365 = vmatpush1.bf16.msra.mxu0 %v4231
          %4366 = vmatprep.subr.bf16.mxu0 %v4230
          %4367 = vmatpush1.bf16.msra.mxu0 %v4229
          %4368 = vmatprep.subr.bf16.mxu0 %v4228
          %4369 = vmatpush1.bf16.msra.mxu0 %v4227
          %4370 = vmatprep.subr.bf16.mxu0 %v4226
          %4371 = vmatpush1.bf16.msra.mxu0 %v4225
          %4372 = vmatprep.subr.bf16.mxu0 %v4224
          %4373 = vmatpush1.bf16.msra.mxu0 %v4223
          %4374 = vmatprep.subr.bf16.mxu0 %v4222
          %4375 = vmatpush1.bf16.msra.mxu0 %v4221
          %4376 = vmatprep.subr.bf16.mxu0 %v4252
          %4377 = vmatpush2.bf16.msra.mxu0 %v4251
          %4378 = vmatprep.subr.bf16.mxu0 %v4250
          %4379 = vmatpush2.bf16.msra.mxu0 %v4249
          %4380 = vmatprep.subr.bf16.mxu0 %v4248
          %4381 = vmatpush2.bf16.msra.mxu0 %v4247
          %4382 = vmatprep.subr.bf16.mxu0 %v4246
          %4383 = vmatpush2.bf16.msra.mxu0 %v4245
          %4384 = vmatprep.subr.bf16.mxu0 %v4244
          %4385 = vmatpush2.bf16.msra.mxu0 %v4243
          %4386 = vmatprep.subr.bf16.mxu0 %v4242
          %4387 = vmatpush2.bf16.msra.mxu0 %v4241
          %4388 = vmatprep.subr.bf16.mxu0 %v4240
          %4389 = vmatpush2.bf16.msra.mxu0 %v4239
          %4390 = vmatprep.subr.bf16.mxu0 %v4238
          %4391 = vmatpush2.bf16.msra.mxu0 %v4237
          %4392 = vmatprep.mubr.bf16.mxu0 %v3961
          %4393 = vmatmul.mubr.bf16.gmra.mxu0 %v3960
          %v4394 = vpop.f32.mrf.mxu0
          %v4395 = vadd.f32 %v4353, %v4394
          %v4396 = vpop.f32.mrf.mxu0
          %v4397 = vadd.f32 %v4357, %v4396
          %v4398 = vpop.f32.mrf.mxu0
          %v4399 = vpop.f32.mrf.mxu0
          %4400 = vdwg.mxu0
          %4401 = vmatprep.subr.bf16.mxu0 %v4268
          %4402 = vmatpush1.bf16.msra.mxu0 %v4267
          %4403 = vmatprep.subr.bf16.mxu0 %v4266
          %4404 = vmatpush1.bf16.msra.mxu0 %v4265
          %4405 = vmatprep.subr.bf16.mxu0 %v4264
          %4406 = vmatpush1.bf16.msra.mxu0 %v4263
          %4407 = vmatprep.subr.bf16.mxu0 %v4262
          %4408 = vmatpush1.bf16.msra.mxu0 %v4261
          %4409 = vmatprep.subr.bf16.mxu0 %v4260
          %4410 = vmatpush1.bf16.msra.mxu0 %v4259
          %4411 = vmatprep.subr.bf16.mxu0 %v4258
          %4412 = vmatpush1.bf16.msra.mxu0 %v4257
          %4413 = vmatprep.subr.bf16.mxu0 %v4256
          %4414 = vmatpush1.bf16.msra.mxu0 %v4255
          %4415 = vmatprep.subr.bf16.mxu0 %v4254
          %4416 = vmatpush1.bf16.msra.mxu0 %v4253
          %4417 = vmatprep.subr.bf16.mxu0 %v4284
          %4418 = vmatpush2.bf16.msra.mxu0 %v4283
          %4419 = vmatprep.subr.bf16.mxu0 %v4282
          %4420 = vmatpush2.bf16.msra.mxu0 %v4281
          %4421 = vmatprep.subr.bf16.mxu0 %v4280
          %4422 = vmatpush2.bf16.msra.mxu0 %v4279
          %4423 = vmatprep.subr.bf16.mxu0 %v4278
          %4424 = vmatpush2.bf16.msra.mxu0 %v4277
          %4425 = vmatprep.subr.bf16.mxu0 %v4276
          %4426 = vmatpush2.bf16.msra.mxu0 %v4275
          %4427 = vmatprep.subr.bf16.mxu0 %v4274
          %4428 = vmatpush2.bf16.msra.mxu0 %v4273
          %4429 = vmatprep.subr.bf16.mxu0 %v4272
          %4430 = vmatpush2.bf16.msra.mxu0 %v4271
          %4431 = vmatprep.subr.bf16.mxu0 %v4270
          %4432 = vmatpush2.bf16.msra.mxu0 %v4269
          %4433 = vmatprep.mubr.bf16.mxu0 %v3963
          %4434 = vmatmul.mubr.bf16.gmra.mxu0 %v3962
          %v4435 = vpop.f32.mrf.mxu0
          %v4436 = vadd.f32 %v4395, %v4435
          %v4437 = vpop.f32.mrf.mxu0
          %v4438 = vadd.f32 %v4397, %v4437
          %v4439 = vpop.f32.mrf.mxu0
          %v4440 = vpop.f32.mrf.mxu0
          %4441 = vdwg.mxu0
          %v4442 = vmax.f32 %v4436, 0.0
          %v4443 = vmax.f32 %v4438, 0.0
          %v4444 = vpack.c.bf16 %v4442, %v4442
          %v4445 = vpack.c.bf16 %v4443, %v4443
          %v4446 = vld [vmem:[%s11] sm:$0xf]
          %v4447 = vld [vmem:[%s11 + $0x4] sm:$0xf]
          %v4448 = vld [vmem:[%s11 + $0x8] sm:$0xf]
          %v4449 = vld [vmem:[%s11 + $0xc] sm:$0xf]
          %v4450 = vld [vmem:[%s11 + $0x10] sm:$0xf]
          %v4451 = vld [vmem:[%s11 + $0x14] sm:$0xf]
          %v4452 = vld [vmem:[%s11 + $0x18] sm:$0xf]
          %v4453 = vld [vmem:[%s11 + $0x1c] sm:$0xf]
          %v4454 = vld [vmem:[%s11 + $0x20] sm:$0xf]
          %v4455 = vld [vmem:[%s11 + $0x24] sm:$0xf]
          %v4456 = vld [vmem:[%s11 + $0x28] sm:$0xf]
          %v4457 = vld [vmem:[%s11 + $0x2c] sm:$0xf]
          %v4458 = vld [vmem:[%s11 + $0x30] sm:$0xf]
          %v4459 = vld [vmem:[%s11 + $0x34] sm:$0xf]
          %v4460 = vld [vmem:[%s11 + $0x38] sm:$0xf]
          %v4461 = vld [vmem:[%s11 + $0x3c] sm:$0xf]
          %v4462 = vld [vmem:[%s11 + $0x40] sm:$0xf]
          %v4463 = vld [vmem:[%s11 + $0x44] sm:$0xf]
          %v4464 = vld [vmem:[%s11 + $0x48] sm:$0xf]
          %v4465 = vld [vmem:[%s11 + $0x4c] sm:$0xf]
          %v4466 = vld [vmem:[%s11 + $0x50] sm:$0xf]
          %v4467 = vld [vmem:[%s11 + $0x54] sm:$0xf]
          %v4468 = vld [vmem:[%s11 + $0x58] sm:$0xf]
          %v4469 = vld [vmem:[%s11 + $0x5c] sm:$0xf]
          %v4470 = vld [vmem:[%s11 + $0x60] sm:$0xf]
          %v4471 = vld [vmem:[%s11 + $0x64] sm:$0xf]
          %v4472 = vld [vmem:[%s11 + $0x68] sm:$0xf]
          %v4473 = vld [vmem:[%s11 + $0x6c] sm:$0xf]
          %v4474 = vld [vmem:[%s11 + $0x70] sm:$0xf]
          %v4475 = vld [vmem:[%s11 + $0x74] sm:$0xf]
          %v4476 = vld [vmem:[%s11 + $0x78] sm:$0xf]
          %v4477 = vld [vmem:[%s11 + $0x7c] sm:$0xf]
          %v4478 = vld [vmem:[%s12] sm:$0x1]
          %v4511 = vunpack.c.l.b16 %v4446
          %v4512 = vunpack.c.l.b16 %v4447
          %v4513 = vunpack.c.l.b16 %v4448
          %v4514 = vunpack.c.l.b16 %v4449
          %v4515 = vunpack.c.l.b16 %v4450
          %v4516 = vunpack.c.l.b16 %v4451
          %v4517 = vunpack.c.l.b16 %v4452
          %v4518 = vunpack.c.l.b16 %v4453
          %v4519 = vunpack.c.l.b16 %v4454
          %v4520 = vunpack.c.l.b16 %v4455
          %v4521 = vunpack.c.l.b16 %v4456
          %v4522 = vunpack.c.l.b16 %v4457
          %v4523 = vunpack.c.l.b16 %v4458
          %v4524 = vunpack.c.l.b16 %v4459
          %v4525 = vunpack.c.l.b16 %v4460
          %v4526 = vunpack.c.l.b16 %v4461
          %v4527 = vunpack.c.l.b16 %v4462
          %v4528 = vunpack.c.l.b16 %v4463
          %v4529 = vunpack.c.l.b16 %v4464
          %v4530 = vunpack.c.l.b16 %v4465
          %v4531 = vunpack.c.l.b16 %v4466
          %v4532 = vunpack.c.l.b16 %v4467
          %v4533 = vunpack.c.l.b16 %v4468
          %v4534 = vunpack.c.l.b16 %v4469
          %v4535 = vunpack.c.l.b16 %v4470
          %v4536 = vunpack.c.l.b16 %v4471
          %v4537 = vunpack.c.l.b16 %v4472
          %v4538 = vunpack.c.l.b16 %v4473
          %v4539 = vunpack.c.l.b16 %v4474
          %v4540 = vunpack.c.l.b16 %v4475
          %v4541 = vunpack.c.l.b16 %v4476
          %v4542 = vunpack.c.l.b16 %v4477
          %v4543 = vpack.c.b16 %v4512, %v4511
          %v4544 = vpack.c.b16 %v4514, %v4513
          %v4545 = vpack.c.b16 %v4516, %v4515
          %v4546 = vpack.c.b16 %v4518, %v4517
          %v4547 = vpack.c.b16 %v4520, %v4519
          %v4548 = vpack.c.b16 %v4522, %v4521
          %v4549 = vpack.c.b16 %v4524, %v4523
          %v4550 = vpack.c.b16 %v4526, %v4525
          %v4551 = vpack.c.b16 %v4528, %v4527
          %v4552 = vpack.c.b16 %v4530, %v4529
          %v4553 = vpack.c.b16 %v4532, %v4531
          %v4554 = vpack.c.b16 %v4534, %v4533
          %v4555 = vpack.c.b16 %v4536, %v4535
          %v4556 = vpack.c.b16 %v4538, %v4537
          %v4557 = vpack.c.b16 %v4540, %v4539
          %v4558 = vpack.c.b16 %v4542, %v4541
          %4575 = vmatprep.subr.bf16.mxu0 0
          %4576 = vmatpush1.bf16.msra.mxu0 %v4550
          %4577 = vmatprep.subr.bf16.mxu0 0
          %4578 = vmatpush1.bf16.msra.mxu0 %v4549
          %4579 = vmatprep.subr.bf16.mxu0 0
          %4580 = vmatpush1.bf16.msra.mxu0 %v4548
          %4581 = vmatprep.subr.bf16.mxu0 0
          %4582 = vmatpush1.bf16.msra.mxu0 %v4547
          %4583 = vmatprep.subr.bf16.mxu0 0
          %4584 = vmatpush1.bf16.msra.mxu0 %v4546
          %4585 = vmatprep.subr.bf16.mxu0 0
          %4586 = vmatpush1.bf16.msra.mxu0 %v4545
          %4587 = vmatprep.subr.bf16.mxu0 0
          %4588 = vmatpush1.bf16.msra.mxu0 %v4544
          %4589 = vmatprep.subr.bf16.mxu0 0
          %4590 = vmatpush1.bf16.msra.mxu0 %v4543
          %4591 = vmatprep.subr.bf16.mxu0 0
          %4592 = vmatpush2.bf16.msra.mxu0 %v4558
          %4593 = vmatprep.subr.bf16.mxu0 0
          %4594 = vmatpush2.bf16.msra.mxu0 %v4557
          %4595 = vmatprep.subr.bf16.mxu0 0
          %4596 = vmatpush2.bf16.msra.mxu0 %v4556
          %4597 = vmatprep.subr.bf16.mxu0 0
          %4598 = vmatpush2.bf16.msra.mxu0 %v4555
          %4599 = vmatprep.subr.bf16.mxu0 0
          %4600 = vmatpush2.bf16.msra.mxu0 %v4554
          %4601 = vmatprep.subr.bf16.mxu0 0
          %4602 = vmatpush2.bf16.msra.mxu0 %v4553
          %4603 = vmatprep.subr.bf16.mxu0 0
          %4604 = vmatpush2.bf16.msra.mxu0 %v4552
          %4605 = vmatprep.subr.bf16.mxu0 0
          %4606 = vmatpush2.bf16.msra.mxu0 %v4551
          %4607 = vmatprep.mubr.bf16.mxu0 %v4445
          %4608 = vmatmul.mubr.bf16.gmra.mxu0 %v4444
          %v4609 = vpop.f32.mrf.mxu0
          %v4610 = vadd.f32 %v4478, %v4609
          %v4611 = vpop.f32.mrf.mxu0
          %v4612 = vpop.f32.mrf.mxu0
          %v4613 = vpop.f32.mrf.mxu0
          %4614 = vdwg.mxu0
          %vm4615 = vcmask 65536
          %4616 = vst.msk [vmem:[%s544] sm:$0x1] %vm4615, %v4610
        $region104: #{stn3d_forward.1} parent=71 // pred_fallthru
          _
        %p4617 = scmp.lt.s32.totalorder %s32, 1
        %s4618 = scalar_select %p4617, %s32, 1
        %s4619 = scalar_lea.vmem %s13, %s4618
        // Predicated region
        $region105: #{stn3d_forward.1} parent=71 // pred_check
          %p4620 = pneg %p338
        $region106: #{stn3d_forward.1} parent=71 // pred_check_branch
          %4622 = sbr.rel (%p4620) target = $region108
        $region107: #{stn3d_forward.1} parent=71 // pred_region
          _
        $region108: #{stn3d_forward.1} parent=71 // pred_fallthru
          _
      $region72: #{stn3d_forward.1} parent=5 // pred_fallthru
        _
      %p4623 = scmp.le.s32.totalorder 2, %s23
      // Predicated region
      $region109: #{stn3d_forward.1} parent=5 // pred_check
        %p4624 = pneg %p4623
      $region110: #{stn3d_forward.1} parent=5 // pred_check_branch
        %4626 = sbr.rel (%p4624) target = $region112
      $region111: #{stn3d_forward.1} parent=5 // pred_region
        %s4627 = ssub.s32 %s23, 2
        // Predicated region
        $region113: #{stn3d_forward.1} parent=111 // pred_check
          %p4628 = pneg %p344
        $region114: #{stn3d_forward.1} parent=111 // pred_check_branch
          %4630 = sbr.rel (%p4628) target = $region116
        $region115: #{stn3d_forward.1} parent=111 // pred_region
          %p4631 = scmp.lt.s32.totalorder %s34, 1
          %s4632 = scalar_select %p4631, %s34, 1
          %s4633 = scalar_lea.vmem %s13, %s4632
        $region116: #{stn3d_forward.1} parent=111 // pred_fallthru
          _
      $region112: #{stn3d_forward.1} parent=5 // pred_fallthru
        _
    $region6: #{stn3d_forward.1} parent=1 // loop_footer
      %s27 = sadd.s32 1, %s23
    $region7: #{stn3d_forward.1} parent=1 // loop_footer_branch
      %22 = sbr.rel target = $region3
    $region8: #{stn3d_forward.1} parent=1 // loop_exit
      _
    %4634 = vsyncpa [#allocation4], 1
    %s4635 = scalar_lea.sflag [#allocation4], 1
    %4636 = vsyncpa %s4635, 1
    %4637 = vsyncpa [#allocation6], 1
    %4638 = vsyncpa [#allocation9], 1
    %4639 = vsyncpa [#allocation12], 1

</llo_original>
